<compile_context>
chip_gen: v7x
topology: tpu7x:2x2x1
jax: 0.10.0
libtpu: 0.0.40
codegen_flags: <defaults>
</compile_context>

<pallas_src>
import jax
import jax.numpy as jnp
from jax.experimental import pallas as pl
from jax.experimental.pallas import tpu as pltpu

_LANES = 128          # lane quantum
_CHUNK = 32           # input lanes per inner step -> exactly 128 output lanes
_MAX_ROW_TILE = 128   # rows per block (multiple of every sublane quantum)
_MAX_TIME_TILE = 2048 # input time per block -> output block minor dim 8192 lanes


def _interleave4_kernel(x0_ref, x1_ref, x2_ref, x3_ref, out_ref):
    """out[r, 4*t + k] = [x0, x2, x1, x3][k][r, t] for one (TR, TT) block.

    The nested PixelShuffle1D(2) composition gives the time-interleave order
    (s0, s2, s1, s3).  The time tile is processed in 32-input-lane chunks so
    that every output store is a dense, 128-lane-aligned (TR, 128) group and
    the per-chunk interleave intermediate is bounded at (TR, 32, 4).
    """
    tr, tt = x0_ref.shape
    # TODO(synk): if bundle dumps show Mosaic spending significant time on the
    # per-chunk stack+reshape relayout, replace it with a within-vreg lane
    # gather (single XLU permute per output vreg); verify via pl.lower_as_mlir.
    for q in range(0, tt, _CHUNK):
        w = min(_CHUNK, tt - q)
        c0 = x0_ref[:, q:q + w]
        c1 = x1_ref[:, q:q + w]
        c2 = x2_ref[:, q:q + w]
        c3 = x3_ref[:, q:q + w]
        grp = jnp.stack([c0, c2, c1, c3], axis=-1).reshape(tr, 4 * w)
        # Dense store: offset 4*q is a multiple of 128, width 4*w == 128 except
        # for the (tiny-T) ragged tail chunk.
        out_ref[:, 4 * q:4 * (q + w)] = grp


def _vmem_capacity_bytes():
    try:
        return int(pltpu.get_tpu_info().vmem_capacity_bytes)
    except Exception:
        return 64 * 1024 * 1024   # conservative: v7x per-core VMEM


def _tile_params(dtype):
    """(sublane_quantum, max_row_tile, max_time_tile, vmem_limit_bytes)."""
    itemsize = jnp.dtype(dtype).itemsize
    sub_q = max(8, 32 // itemsize)            # 8 f32, 16 bf16, 32 int8/fp8
    cap = _vmem_capacity_bytes()
    # ~16 MiB double-buffered working set (f32) fits all generations; only
    # shrink the time tile defensively if VMEM is unexpectedly small.
    max_tt = _MAX_TIME_TILE if cap >= 48 * 1024 * 1024 else _MAX_TIME_TILE // 2
    vmem_limit = min(48 * 1024 * 1024, max(32 * 1024 * 1024, cap // 2))
    return sub_q, _MAX_ROW_TILE, max_tt, vmem_limit


def divided_sp_comb(signals):
    """Pallas combiner. signals: sequence of 4 arrays [B, C, T] -> [B, C, 4*T]."""
    x0, x1, x2, x3 = signals
    B, C, T = x0.shape
    dtype = x0.dtype
    for x in (x1, x2, x3):
        assert x.shape == (B, C, T) and x.dtype == dtype

    # Flatten batch and channels into one row axis (free reshape on major dims).
    R = B * C
    xs = [x.reshape(R, T) for x in (x0, x1, x2, x3)]

    sub_q, max_tr, max_tt, vmem_limit = _tile_params(dtype)

    # Block shapes: either the full extent (always legal) or a capped tile that
    # is a multiple of the (sublane, lane) quantum; cdiv grid + Pallas edge
    # masking absorb any remainder, so no wrapper padding / slicing is needed.
    tr = R if R <= max_tr else (max_tr // sub_q) * sub_q
    tt = T if T <= max_tt else max_tt          # max_tt is a multiple of 128
    grid = (pl.cdiv(R, tr), pl.cdiv(T, tt))

    itemsize = jnp.dtype(dtype).itemsize
    cost = pl.CostEstimate(
        flops=0,
        transcendentals=0,
        bytes_accessed=2 * R * 4 * T * itemsize,   # read 4 inputs + write output
    )

    in_spec = pl.BlockSpec((tr, tt), lambda i, j: (i, j))
    out_spec = pl.BlockSpec((tr, 4 * tt), lambda i, j: (i, j))

    out = pl.pallas_call(
        _interleave4_kernel,
        out_shape=jax.ShapeDtypeStruct((R, 4 * T), dtype),
        grid=grid,
        in_specs=[in_spec, in_spec, in_spec, in_spec],
        out_specs=out_spec,
        compiler_params=pltpu.CompilerParams(
            dimension_semantics=("parallel", "parallel"),
            vmem_limit_bytes=vmem_limit,
        ),
        cost_estimate=cost,
    )(*xs)

    return out.reshape(B, C, 4 * T)


# ----------------------------- pure-JAX reference -----------------------------

def _pixel_shuffle_1d_ref(x, r=2):
    """Standard PixelShuffle1D: [B, C*r, T] -> [B, C, T*r]."""
    Bx, Cr, Tx = x.shape
    Cx = Cr // r
    return x.reshape(Bx, r, Cx, Tx).transpose(0, 2, 3, 1).reshape(Bx, Cx, Tx * r)


def _divided_sp_comb_ref(signals):
    x0, x1, x2, x3 = signals
    left = _pixel_shuffle_1d_ref(jnp.concatenate([x0, x1], axis=1))
    right = _pixel_shuffle_1d_ref(jnp.concatenate([x2, x3], axis=1))
    return _pixel_shuffle_1d_ref(jnp.concatenate([left, right], axis=1))


if __name__ == "__main__":
    key = jax.random.PRNGKey(0)

    def make(shape, dtype, k):
        return jax.random.normal(k, shape, dtype=jnp.float32).astype(dtype)

    cases = [
        ((2, 4, 128), jnp.float32),   # lane-aligned, single block
        ((2, 4, 16), jnp.float32),    # tiny unaligned T (single ragged chunk)
        ((2, 4, 40), jnp.float32),    # ragged 32-lane chunk tail inside a block
        ((3, 50, 96), jnp.float32),   # R=150 > row tile -> cdiv row grid + masked edge
        ((2, 8, 160), jnp.bfloat16),  # packed dtype (16-row sublane quantum) path
    ]

    for idx, ((B, C, T), dtype) in enumerate(cases):
        keys = jax.random.split(jax.random.fold_in(key, idx), 4)
        signals = [make((B, C, T), dtype, k) for k in keys]
        out = jax.block_until_ready(divided_sp_comb(signals))
        ref = _divided_sp_comb_ref(signals)
        assert out.shape == (B, C, 4 * T), (out.shape, (B, C, 4 * T))
        assert out.dtype == jnp.dtype(dtype), out.dtype
        assert jnp.array_equal(out, ref), f"mismatch vs reference in case {idx}: {(B, C, T)}"

    print("KERNEL_OK")
</pallas_src>

<mosaic_0001>
module attributes {stable_mosaic.version = 11 : i64} {
  func.func @_interleave4_kernel(%arg0: i32, %arg1: i32, %arg2: memref<8x128xf32, #tpu.memory_space<vmem>>, %arg3: memref<8x128xf32, #tpu.memory_space<vmem>>, %arg4: memref<8x128xf32, #tpu.memory_space<vmem>>, %arg5: memref<8x128xf32, #tpu.memory_space<vmem>>, %arg6: memref<8x512xf32, #tpu.memory_space<vmem>>) attributes {dimension_semantics = [#tpu.dimension_semantics<parallel>, #tpu.dimension_semantics<parallel>], iteration_bounds = array<i64: 1, 1>, scalar_prefetch = 0 : i64, scratch_operands = 0 : i64, tpu.core_type = #tpu.core_type<tc>, window_params = [{transform_indices = @transform_0, window_bounds = array<i64: 8, 128>}, {transform_indices = @transform_1, window_bounds = array<i64: 8, 128>}, {transform_indices = @transform_2, window_bounds = array<i64: 8, 128>}, {transform_indices = @transform_3, window_bounds = array<i64: 8, 128>}, {transform_indices = @transform_4, window_bounds = array<i64: 8, 512>}]} {
    %c0 = arith.constant 0 : index
    %c0_0 = arith.constant 0 : index
    %0 = vector.load %arg2[%c0, %c0_0] : memref<8x128xf32, #tpu.memory_space<vmem>>, vector<8x32xf32>
    %c0_1 = arith.constant 0 : index
    %c0_2 = arith.constant 0 : index
    %1 = vector.load %arg3[%c0_1, %c0_2] : memref<8x128xf32, #tpu.memory_space<vmem>>, vector<8x32xf32>
    %c0_3 = arith.constant 0 : index
    %c0_4 = arith.constant 0 : index
    %2 = vector.load %arg4[%c0_3, %c0_4] : memref<8x128xf32, #tpu.memory_space<vmem>>, vector<8x32xf32>
    %c0_5 = arith.constant 0 : index
    %c0_6 = arith.constant 0 : index
    %3 = vector.load %arg5[%c0_5, %c0_6] : memref<8x128xf32, #tpu.memory_space<vmem>>, vector<8x32xf32>
    %4 = vector.shape_cast %0 : vector<8x32xf32> to vector<8x32x1xf32>
    %5 = vector.shape_cast %2 : vector<8x32xf32> to vector<8x32x1xf32>
    %6 = vector.shape_cast %1 : vector<8x32xf32> to vector<8x32x1xf32>
    %7 = vector.shape_cast %3 : vector<8x32xf32> to vector<8x32x1xf32>
    %8 = tpu.concatenate %4, %5, %6, %7 in 2 : vector<8x32x1xf32>, vector<8x32x1xf32>, vector<8x32x1xf32>, vector<8x32x1xf32> -> vector<8x32x4xf32>
    %9 = vector.shape_cast %8 : vector<8x32x4xf32> to vector<8x128xf32>
    %c0_7 = arith.constant 0 : index
    %c0_8 = arith.constant 0 : index
    %10 = vector.load %arg6[%c0_7, %c0_8] : memref<8x512xf32, #tpu.memory_space<vmem>>, vector<8x128xf32>
    tpu.vector_store %arg6[%c0_7, %c0_8], %9 {strides = array<i32>} : memref<8x512xf32, #tpu.memory_space<vmem>>, vector<8x128xf32>,
    %c0_9 = arith.constant 0 : index
    %c32 = arith.constant 32 : index
    %11 = vector.load %arg2[%c0_9, %c32] : memref<8x128xf32, #tpu.memory_space<vmem>>, vector<8x32xf32>
    %c0_10 = arith.constant 0 : index
    %c32_11 = arith.constant 32 : index
    %12 = vector.load %arg3[%c0_10, %c32_11] : memref<8x128xf32, #tpu.memory_space<vmem>>, vector<8x32xf32>
    %c0_12 = arith.constant 0 : index
    %c32_13 = arith.constant 32 : index
    %13 = vector.load %arg4[%c0_12, %c32_13] : memref<8x128xf32, #tpu.memory_space<vmem>>, vector<8x32xf32>
    %c0_14 = arith.constant 0 : index
    %c32_15 = arith.constant 32 : index
    %14 = vector.load %arg5[%c0_14, %c32_15] : memref<8x128xf32, #tpu.memory_space<vmem>>, vector<8x32xf32>
    %15 = vector.shape_cast %11 : vector<8x32xf32> to vector<8x32x1xf32>
    %16 = vector.shape_cast %13 : vector<8x32xf32> to vector<8x32x1xf32>
    %17 = vector.shape_cast %12 : vector<8x32xf32> to vector<8x32x1xf32>
    %18 = vector.shape_cast %14 : vector<8x32xf32> to vector<8x32x1xf32>
    %19 = tpu.concatenate %15, %16, %17, %18 in 2 : vector<8x32x1xf32>, vector<8x32x1xf32>, vector<8x32x1xf32>, vector<8x32x1xf32> -> vector<8x32x4xf32>
    %20 = vector.shape_cast %19 : vector<8x32x4xf32> to vector<8x128xf32>
    %c0_16 = arith.constant 0 : index
    %c128 = arith.constant 128 : index
    %21 = vector.load %arg6[%c0_16, %c128] : memref<8x512xf32, #tpu.memory_space<vmem>>, vector<8x128xf32>
    tpu.vector_store %arg6[%c0_16, %c128], %20 {strides = array<i32>} : memref<8x512xf32, #tpu.memory_space<vmem>>, vector<8x128xf32>,
    %c0_17 = arith.constant 0 : index
    %c64 = arith.constant 64 : index
    %22 = vector.load %arg2[%c0_17, %c64] : memref<8x128xf32, #tpu.memory_space<vmem>>, vector<8x32xf32>
    %c0_18 = arith.constant 0 : index
    %c64_19 = arith.constant 64 : index
    %23 = vector.load %arg3[%c0_18, %c64_19] : memref<8x128xf32, #tpu.memory_space<vmem>>, vector<8x32xf32>
    %c0_20 = arith.constant 0 : index
    %c64_21 = arith.constant 64 : index
    %24 = vector.load %arg4[%c0_20, %c64_21] : memref<8x128xf32, #tpu.memory_space<vmem>>, vector<8x32xf32>
    %c0_22 = arith.constant 0 : index
    %c64_23 = arith.constant 64 : index
    %25 = vector.load %arg5[%c0_22, %c64_23] : memref<8x128xf32, #tpu.memory_space<vmem>>, vector<8x32xf32>
    %26 = vector.shape_cast %22 : vector<8x32xf32> to vector<8x32x1xf32>
    %27 = vector.shape_cast %24 : vector<8x32xf32> to vector<8x32x1xf32>
    %28 = vector.shape_cast %23 : vector<8x32xf32> to vector<8x32x1xf32>
    %29 = vector.shape_cast %25 : vector<8x32xf32> to vector<8x32x1xf32>
    %30 = tpu.concatenate %26, %27, %28, %29 in 2 : vector<8x32x1xf32>, vector<8x32x1xf32>, vector<8x32x1xf32>, vector<8x32x1xf32> -> vector<8x32x4xf32>
    %31 = vector.shape_cast %30 : vector<8x32x4xf32> to vector<8x128xf32>
    %c0_24 = arith.constant 0 : index
    %c256 = arith.constant 256 : index
    %32 = vector.load %arg6[%c0_24, %c256] : memref<8x512xf32, #tpu.memory_space<vmem>>, vector<8x128xf32>
    tpu.vector_store %arg6[%c0_24, %c256], %31 {strides = array<i32>} : memref<8x512xf32, #tpu.memory_space<vmem>>, vector<8x128xf32>,
    %c0_25 = arith.constant 0 : index
    %c96 = arith.constant 96 : index
    %33 = vector.load %arg2[%c0_25, %c96] : memref<8x128xf32, #tpu.memory_space<vmem>>, vector<8x32xf32>
    %c0_26 = arith.constant 0 : index
    %c96_27 = arith.constant 96 : index
    %34 = vector.load %arg3[%c0_26, %c96_27] : memref<8x128xf32, #tpu.memory_space<vmem>>, vector<8x32xf32>
    %c0_28 = arith.constant 0 : index
    %c96_29 = arith.constant 96 : index
    %35 = vector.load %arg4[%c0_28, %c96_29] : memref<8x128xf32, #tpu.memory_space<vmem>>, vector<8x32xf32>
    %c0_30 = arith.constant 0 : index
    %c96_31 = arith.constant 96 : index
    %36 = vector.load %arg5[%c0_30, %c96_31] : memref<8x128xf32, #tpu.memory_space<vmem>>, vector<8x32xf32>
    %37 = vector.shape_cast %33 : vector<8x32xf32> to vector<8x32x1xf32>
    %38 = vector.shape_cast %35 : vector<8x32xf32> to vector<8x32x1xf32>
    %39 = vector.shape_cast %34 : vector<8x32xf32> to vector<8x32x1xf32>
    %40 = vector.shape_cast %36 : vector<8x32xf32> to vector<8x32x1xf32>
    %41 = tpu.concatenate %37, %38, %39, %40 in 2 : vector<8x32x1xf32>, vector<8x32x1xf32>, vector<8x32x1xf32>, vector<8x32x1xf32> -> vector<8x32x4xf32>
    %42 = vector.shape_cast %41 : vector<8x32x4xf32> to vector<8x128xf32>
    %c0_32 = arith.constant 0 : index
    %c384 = arith.constant 384 : index
    %43 = vector.load %arg6[%c0_32, %c384] : memref<8x512xf32, #tpu.memory_space<vmem>>, vector<8x128xf32>
    tpu.vector_store %arg6[%c0_32, %c384], %42 {strides = array<i32>} : memref<8x512xf32, #tpu.memory_space<vmem>>, vector<8x128xf32>,
    return
  }
  func.func @transform_0(%arg0: i32, %arg1: i32) -> (i32, i32) {
    %c0_i32 = arith.constant 0 : i32
    return %arg0, %arg1 : i32, i32
  }
  func.func @transform_1(%arg0: i32, %arg1: i32) -> (i32, i32) {
    %c0_i32 = arith.constant 0 : i32
    return %arg0, %arg1 : i32, i32
  }
  func.func @transform_2(%arg0: i32, %arg1: i32) -> (i32, i32) {
    %c0_i32 = arith.constant 0 : i32
    return %arg0, %arg1 : i32, i32
  }
  func.func @transform_3(%arg0: i32, %arg1: i32) -> (i32, i32) {
    %c0_i32 = arith.constant 0 : i32
    return %arg0, %arg1 : i32, i32
  }
  func.func @transform_4(%arg0: i32, %arg1: i32) -> (i32, i32) {
    %c0_i32 = arith.constant 0 : i32
    return %arg0, %arg1 : i32, i32
  }
}

</mosaic_0001>

<llo_original>
// kernel: tpu_custom_call.1
$region0: #{tpu_custom_call.1}
  #allocation0 [shape = 'u32[]', space=smem, size = 0x4, offset = 0x4, fixed_abs, tag = 'smem constant byte address 0x4 - core index']
  #allocation1 [shape = 'u32[144,128]{1,0:T(1,128)}', space=vmem, size = 0x12000, scoped, tag = 'internal scratch']
  %s0 = inlined_call_operand.hbm [shape: f32[8,128], index: 0, kind: input, shape index: {}]
  %s1 = inlined_call_operand.hbm [shape: f32[8,128], index: 1, kind: input, shape index: {}]
  %s2 = inlined_call_operand.hbm [shape: f32[8,128], index: 2, kind: input, shape index: {}]
  %s3 = inlined_call_operand.vmem [shape: f32[8,128], index: 3, kind: input, shape index: {}]
  %s4 = inlined_call_operand.hbm [shape: f32[8,512], index: 4, kind: output, shape index: {}]
  %s5 = sld [smem:[#allocation0]]
  $region38: #{tpu_custom_call.1} parent=0
    _
  %s7 = ssub.s32 1, %s5
  %s8 = scalar_select 0, %s7, %s5
  $region1: #{tpu_custom_call.1} parent=0
    #allocation2 [shape = 'u8[4096]{0}', space=vmem, size = 0x1000, scoped, tag = 'input window, operand 0, single buffered']
    #allocation3 [shape = 's32[1]{0}', space=sflag, size = 0x4, scoped, tag = 'scoped memory for tpu_custom_call.1']
    #allocation4 [shape = 's32[1]{0}', space=sflag, size = 0x4, scoped, tag = 'scoped memory for tpu_custom_call.1']
    #allocation5 [shape = 'u8[4096]{0}', space=vmem, size = 0x1000, scoped, tag = 'input window, operand 1, single buffered']
    #allocation6 [shape = 's32[1]{0}', space=sflag, size = 0x4, scoped, tag = 'scoped memory for tpu_custom_call.1']
    #allocation7 [shape = 'u8[4096]{0}', space=vmem, size = 0x1000, scoped, tag = 'input window, operand 2, single buffered']
    #allocation8 [shape = 'u8[16384]{0}', space=vmem, size = 0x4000, scoped, tag = 'output window, operand 0, single buffered']
    %9 = vsyncpa [#allocation3], 0
    %10 = vsyncpa [#allocation6], 0
    %11 = vsyncpa [#allocation4], 0
    // Predicated region
    $region2: #{tpu_custom_call.1} parent=1 // pred_check
      _
    $region3: #{tpu_custom_call.1} parent=1 // pred_check_branch
      %13 = sbr.rel (0) target = $region5
    $region4: #{tpu_custom_call.1} parent=1 // pred_region
      %s15 = ssub.s32 128, 128
      %16 = vsyncadd [#allocation3], %s15
      %s18 = sshll.u32 [#allocation2], 4
      %s19 = int_to_ptr.vmem [resolvable:$true] %s18
      %21 = dma.hbm_to_vmem [thread:$0]  %s0, 128, %s19, [#allocation3]
    $region5: #{tpu_custom_call.1} parent=1 // pred_fallthru
      _
    // Predicated region
    $region6: #{tpu_custom_call.1} parent=1 // pred_check
      _
    $region7: #{tpu_custom_call.1} parent=1 // pred_check_branch
      %23 = sbr.rel (0) target = $region9
    $region8: #{tpu_custom_call.1} parent=1 // pred_region
      %s25 = ssub.s32 128, 128
      %26 = vsyncadd [#allocation6], %s25
      %s28 = sshll.u32 [#allocation5], 4
      %s29 = int_to_ptr.vmem [resolvable:$true] %s28
      %31 = dma.hbm_to_vmem [thread:$0]  %s1, 128, %s29, [#allocation6]
    $region9: #{tpu_custom_call.1} parent=1 // pred_fallthru
      _
    // Predicated region
    $region10: #{tpu_custom_call.1} parent=1 // pred_check
      _
    $region11: #{tpu_custom_call.1} parent=1 // pred_check_branch
      %33 = sbr.rel (0) target = $region13
    $region12: #{tpu_custom_call.1} parent=1 // pred_region
      %s35 = ssub.s32 128, 128
      %36 = vsyncadd [#allocation6], %s35
      %s38 = sshll.u32 [#allocation7], 4
      %s39 = int_to_ptr.vmem [resolvable:$true] %s38
      %41 = dma.hbm_to_vmem [thread:$0]  %s2, 128, %s39, [#allocation6]
    $region13: #{tpu_custom_call.1} parent=1 // pred_fallthru
      _
    // Predicated region
    $region14: #{tpu_custom_call.1} parent=1 // pred_check
      _
    $region15: #{tpu_custom_call.1} parent=1 // pred_check_branch
      %43 = sbr.rel (0) target = $region17
    $region16: #{tpu_custom_call.1} parent=1 // pred_region
      _
    $region17: #{tpu_custom_call.1} parent=1 // pred_fallthru
      _
    // Predicated region
    $region18: #{tpu_custom_call.1} parent=1 // pred_check
      _
    $region19: #{tpu_custom_call.1} parent=1 // pred_check_branch
      %45 = sbr.rel (0) target = $region21
    $region20: #{tpu_custom_call.1} parent=1 // pred_region
      %46 = dma.done [#allocation3], 128
    $region21: #{tpu_custom_call.1} parent=1 // pred_fallthru
      _
    // Predicated region
    $region22: #{tpu_custom_call.1} parent=1 // pred_check
      _
    $region23: #{tpu_custom_call.1} parent=1 // pred_check_branch
      %48 = sbr.rel (0) target = $region25
    $region24: #{tpu_custom_call.1} parent=1 // pred_region
      %49 = dma.done [#allocation6], 128
    $region25: #{tpu_custom_call.1} parent=1 // pred_fallthru
      _
    // Predicated region
    $region26: #{tpu_custom_call.1} parent=1 // pred_check
      _
    $region27: #{tpu_custom_call.1} parent=1 // pred_check_branch
      %51 = sbr.rel (0) target = $region29
    $region28: #{tpu_custom_call.1} parent=1 // pred_region
      %52 = dma.done [#allocation6], 128
    $region29: #{tpu_custom_call.1} parent=1 // pred_fallthru
      _
    %v53 = vld [vmem:[#allocation2] sm:$0xff]
    %v54 = vld [vmem:[#allocation5] sm:$0xff]
    %v55 = vld [vmem:[#allocation7] sm:$0xff]
    %v56 = vld [vmem:[%s3] sm:$0xff]
    %v57 = vlaneseq
    %v58 = vshrl.u32 %v57, 7
    %v59 = vsub.s32 0, %v58
    %v60 = vrot.slane %v53, %v59
    %62 = vbcast.lane.b32.xlu0 %v60, 256
    %v63 = vpop.permute.xlu0 %62
    %s65 = sor.u32 256, 8
    %66 = vbcast.lane.b32.xlu0 %v60, %s65
    %v67 = vpop.permute.xlu0 %66
    %s69 = sor.u32 256, 16
    %70 = vbcast.lane.b32.xlu0 %v60, %s69
    %v71 = vpop.permute.xlu0 %70
    %s73 = sor.u32 256, 24
    %74 = vbcast.lane.b32.xlu0 %v60, %s73
    %v75 = vpop.permute.xlu0 %74
    %v76 = vlaneseq
    %v77 = vshrl.u32 %v76, 7
    %v78 = vsub.s32 1, %v77
    %v79 = vrot.slane %v53, %v78
    %81 = vbcast.lane.b32.xlu0 %v79, 256
    %v82 = vpop.permute.xlu0 %81
    %s84 = sor.u32 256, 8
    %85 = vbcast.lane.b32.xlu0 %v79, %s84
    %v86 = vpop.permute.xlu0 %85
    %s88 = sor.u32 256, 16
    %89 = vbcast.lane.b32.xlu0 %v79, %s88
    %v90 = vpop.permute.xlu0 %89
    %s92 = sor.u32 256, 24
    %93 = vbcast.lane.b32.xlu0 %v79, %s92
    %v94 = vpop.permute.xlu0 %93
    %v95 = vlaneseq
    %v96 = vshrl.u32 %v95, 7
    %v97 = vsub.s32 2, %v96
    %v98 = vrot.slane %v53, %v97
    %100 = vbcast.lane.b32.xlu0 %v98, 256
    %v101 = vpop.permute.xlu0 %100
    %s103 = sor.u32 256, 8
    %104 = vbcast.lane.b32.xlu0 %v98, %s103
    %v105 = vpop.permute.xlu0 %104
    %s107 = sor.u32 256, 16
    %108 = vbcast.lane.b32.xlu0 %v98, %s107
    %v109 = vpop.permute.xlu0 %108
    %s111 = sor.u32 256, 24
    %112 = vbcast.lane.b32.xlu0 %v98, %s111
    %v113 = vpop.permute.xlu0 %112
    %v114 = vlaneseq
    %v115 = vshrl.u32 %v114, 7
    %v116 = vsub.s32 3, %v115
    %v117 = vrot.slane %v53, %v116
    %119 = vbcast.lane.b32.xlu0 %v117, 256
    %v120 = vpop.permute.xlu0 %119
    %s122 = sor.u32 256, 8
    %123 = vbcast.lane.b32.xlu0 %v117, %s122
    %v124 = vpop.permute.xlu0 %123
    %s126 = sor.u32 256, 16
    %127 = vbcast.lane.b32.xlu0 %v117, %s126
    %v128 = vpop.permute.xlu0 %127
    %s130 = sor.u32 256, 24
    %131 = vbcast.lane.b32.xlu0 %v117, %s130
    %v132 = vpop.permute.xlu0 %131
    %v133 = vlaneseq
    %v134 = vshrl.u32 %v133, 7
    %v135 = vsub.s32 4, %v134
    %v136 = vrot.slane %v53, %v135
    %138 = vbcast.lane.b32.xlu0 %v136, 256
    %v139 = vpop.permute.xlu0 %138
    %s141 = sor.u32 256, 8
    %142 = vbcast.lane.b32.xlu0 %v136, %s141
    %v143 = vpop.permute.xlu0 %142
    %s145 = sor.u32 256, 16
    %146 = vbcast.lane.b32.xlu0 %v136, %s145
    %v147 = vpop.permute.xlu0 %146
    %s149 = sor.u32 256, 24
    %150 = vbcast.lane.b32.xlu0 %v136, %s149
    %v151 = vpop.permute.xlu0 %150
    %v152 = vlaneseq
    %v153 = vshrl.u32 %v152, 7
    %v154 = vsub.s32 5, %v153
    %v155 = vrot.slane %v53, %v154
    %157 = vbcast.lane.b32.xlu0 %v155, 256
    %v158 = vpop.permute.xlu0 %157
    %s160 = sor.u32 256, 8
    %161 = vbcast.lane.b32.xlu0 %v155, %s160
    %v162 = vpop.permute.xlu0 %161
    %s164 = sor.u32 256, 16
    %165 = vbcast.lane.b32.xlu0 %v155, %s164
    %v166 = vpop.permute.xlu0 %165
    %s168 = sor.u32 256, 24
    %169 = vbcast.lane.b32.xlu0 %v155, %s168
    %v170 = vpop.permute.xlu0 %169
    %v171 = vlaneseq
    %v172 = vshrl.u32 %v171, 7
    %v173 = vsub.s32 6, %v172
    %v174 = vrot.slane %v53, %v173
    %176 = vbcast.lane.b32.xlu0 %v174, 256
    %v177 = vpop.permute.xlu0 %176
    %s179 = sor.u32 256, 8
    %180 = vbcast.lane.b32.xlu0 %v174, %s179
    %v181 = vpop.permute.xlu0 %180
    %s183 = sor.u32 256, 16
    %184 = vbcast.lane.b32.xlu0 %v174, %s183
    %v185 = vpop.permute.xlu0 %184
    %s187 = sor.u32 256, 24
    %188 = vbcast.lane.b32.xlu0 %v174, %s187
    %v189 = vpop.permute.xlu0 %188
    %v190 = vlaneseq
    %v191 = vshrl.u32 %v190, 7
    %v192 = vsub.s32 7, %v191
    %v193 = vrot.slane %v53, %v192
    %195 = vbcast.lane.b32.xlu0 %v193, 256
    %v196 = vpop.permute.xlu0 %195
    %s198 = sor.u32 256, 8
    %199 = vbcast.lane.b32.xlu0 %v193, %s198
    %v200 = vpop.permute.xlu0 %199
    %s202 = sor.u32 256, 16
    %203 = vbcast.lane.b32.xlu0 %v193, %s202
    %v204 = vpop.permute.xlu0 %203
    %s206 = sor.u32 256, 24
    %207 = vbcast.lane.b32.xlu0 %v193, %s206
    %v208 = vpop.permute.xlu0 %207
    %v209 = vlaneseq
    %v210 = vshrl.u32 %v209, 7
    %v211 = vsub.s32 0, %v210
    %v212 = vrot.slane %v55, %v211
    %214 = vbcast.lane.b32.xlu0 %v212, 256
    %v215 = vpop.permute.xlu0 %214
    %s217 = sor.u32 256, 8
    %218 = vbcast.lane.b32.xlu0 %v212, %s217
    %v219 = vpop.permute.xlu0 %218
    %s221 = sor.u32 256, 16
    %222 = vbcast.lane.b32.xlu0 %v212, %s221
    %v223 = vpop.permute.xlu0 %222
    %s225 = sor.u32 256, 24
    %226 = vbcast.lane.b32.xlu0 %v212, %s225
    %v227 = vpop.permute.xlu0 %226
    %v228 = vlaneseq
    %v229 = vshrl.u32 %v228, 7
    %v230 = vsub.s32 1, %v229
    %v231 = vrot.slane %v55, %v230
    %233 = vbcast.lane.b32.xlu0 %v231, 256
    %v234 = vpop.permute.xlu0 %233
    %s236 = sor.u32 256, 8
    %237 = vbcast.lane.b32.xlu0 %v231, %s236
    %v238 = vpop.permute.xlu0 %237
    %s240 = sor.u32 256, 16
    %241 = vbcast.lane.b32.xlu0 %v231, %s240
    %v242 = vpop.permute.xlu0 %241
    %s244 = sor.u32 256, 24
    %245 = vbcast.lane.b32.xlu0 %v231, %s244
    %v246 = vpop.permute.xlu0 %245
    %v247 = vlaneseq
    %v248 = vshrl.u32 %v247, 7
    %v249 = vsub.s32 2, %v248
    %v250 = vrot.slane %v55, %v249
    %252 = vbcast.lane.b32.xlu0 %v250, 256
    %v253 = vpop.permute.xlu0 %252
    %s255 = sor.u32 256, 8
    %256 = vbcast.lane.b32.xlu0 %v250, %s255
    %v257 = vpop.permute.xlu0 %256
    %s259 = sor.u32 256, 16
    %260 = vbcast.lane.b32.xlu0 %v250, %s259
    %v261 = vpop.permute.xlu0 %260
    %s263 = sor.u32 256, 24
    %264 = vbcast.lane.b32.xlu0 %v250, %s263
    %v265 = vpop.permute.xlu0 %264
    %v266 = vlaneseq
    %v267 = vshrl.u32 %v266, 7
    %v268 = vsub.s32 3, %v267
    %v269 = vrot.slane %v55, %v268
    %271 = vbcast.lane.b32.xlu0 %v269, 256
    %v272 = vpop.permute.xlu0 %271
    %s274 = sor.u32 256, 8
    %275 = vbcast.lane.b32.xlu0 %v269, %s274
    %v276 = vpop.permute.xlu0 %275
    %s278 = sor.u32 256, 16
    %279 = vbcast.lane.b32.xlu0 %v269, %s278
    %v280 = vpop.permute.xlu0 %279
    %s282 = sor.u32 256, 24
    %283 = vbcast.lane.b32.xlu0 %v269, %s282
    %v284 = vpop.permute.xlu0 %283
    %v285 = vlaneseq
    %v286 = vshrl.u32 %v285, 7
    %v287 = vsub.s32 4, %v286
    %v288 = vrot.slane %v55, %v287
    %290 = vbcast.lane.b32.xlu0 %v288, 256
    %v291 = vpop.permute.xlu0 %290
    %s293 = sor.u32 256, 8
    %294 = vbcast.lane.b32.xlu0 %v288, %s293
    %v295 = vpop.permute.xlu0 %294
    %s297 = sor.u32 256, 16
    %298 = vbcast.lane.b32.xlu0 %v288, %s297
    %v299 = vpop.permute.xlu0 %298
    %s301 = sor.u32 256, 24
    %302 = vbcast.lane.b32.xlu0 %v288, %s301
    %v303 = vpop.permute.xlu0 %302
    %v304 = vlaneseq
    %v305 = vshrl.u32 %v304, 7
    %v306 = vsub.s32 5, %v305
    %v307 = vrot.slane %v55, %v306
    %309 = vbcast.lane.b32.xlu0 %v307, 256
    %v310 = vpop.permute.xlu0 %309
    %s312 = sor.u32 256, 8
    %313 = vbcast.lane.b32.xlu0 %v307, %s312
    %v314 = vpop.permute.xlu0 %313
    %s316 = sor.u32 256, 16
    %317 = vbcast.lane.b32.xlu0 %v307, %s316
    %v318 = vpop.permute.xlu0 %317
    %s320 = sor.u32 256, 24
    %321 = vbcast.lane.b32.xlu0 %v307, %s320
    %v322 = vpop.permute.xlu0 %321
    %v323 = vlaneseq
    %v324 = vshrl.u32 %v323, 7
    %v325 = vsub.s32 6, %v324
    %v326 = vrot.slane %v55, %v325
    %328 = vbcast.lane.b32.xlu0 %v326, 256
    %v329 = vpop.permute.xlu0 %328
    %s331 = sor.u32 256, 8
    %332 = vbcast.lane.b32.xlu0 %v326, %s331
    %v333 = vpop.permute.xlu0 %332
    %s335 = sor.u32 256, 16
    %336 = vbcast.lane.b32.xlu0 %v326, %s335
    %v337 = vpop.permute.xlu0 %336
    %s339 = sor.u32 256, 24
    %340 = vbcast.lane.b32.xlu0 %v326, %s339
    %v341 = vpop.permute.xlu0 %340
    %v342 = vlaneseq
    %v343 = vshrl.u32 %v342, 7
    %v344 = vsub.s32 7, %v343
    %v345 = vrot.slane %v55, %v344
    %347 = vbcast.lane.b32.xlu0 %v345, 256
    %v348 = vpop.permute.xlu0 %347
    %s350 = sor.u32 256, 8
    %351 = vbcast.lane.b32.xlu0 %v345, %s350
    %v352 = vpop.permute.xlu0 %351
    %s354 = sor.u32 256, 16
    %355 = vbcast.lane.b32.xlu0 %v345, %s354
    %v356 = vpop.permute.xlu0 %355
    %s358 = sor.u32 256, 24
    %359 = vbcast.lane.b32.xlu0 %v345, %s358
    %v360 = vpop.permute.xlu0 %359
    %v361 = vlaneseq
    %v362 = vshrl.u32 %v361, 7
    %v363 = vsub.s32 0, %v362
    %v364 = vrot.slane %v54, %v363
    %366 = vbcast.lane.b32.xlu0 %v364, 256
    %v367 = vpop.permute.xlu0 %366
    %s369 = sor.u32 256, 8
    %370 = vbcast.lane.b32.xlu0 %v364, %s369
    %v371 = vpop.permute.xlu0 %370
    %s373 = sor.u32 256, 16
    %374 = vbcast.lane.b32.xlu0 %v364, %s373
    %v375 = vpop.permute.xlu0 %374
    %s377 = sor.u32 256, 24
    %378 = vbcast.lane.b32.xlu0 %v364, %s377
    %v379 = vpop.permute.xlu0 %378
    %v380 = vlaneseq
    %v381 = vshrl.u32 %v380, 7
    %v382 = vsub.s32 1, %v381
    %v383 = vrot.slane %v54, %v382
    %385 = vbcast.lane.b32.xlu0 %v383, 256
    %v386 = vpop.permute.xlu0 %385
    %s388 = sor.u32 256, 8
    %389 = vbcast.lane.b32.xlu0 %v383, %s388
    %v390 = vpop.permute.xlu0 %389
    %s392 = sor.u32 256, 16
    %393 = vbcast.lane.b32.xlu0 %v383, %s392
    %v394 = vpop.permute.xlu0 %393
    %s396 = sor.u32 256, 24
    %397 = vbcast.lane.b32.xlu0 %v383, %s396
    %v398 = vpop.permute.xlu0 %397
    %v399 = vlaneseq
    %v400 = vshrl.u32 %v399, 7
    %v401 = vsub.s32 2, %v400
    %v402 = vrot.slane %v54, %v401
    %404 = vbcast.lane.b32.xlu0 %v402, 256
    %v405 = vpop.permute.xlu0 %404
    %s407 = sor.u32 256, 8
    %408 = vbcast.lane.b32.xlu0 %v402, %s407
    %v409 = vpop.permute.xlu0 %408
    %s411 = sor.u32 256, 16
    %412 = vbcast.lane.b32.xlu0 %v402, %s411
    %v413 = vpop.permute.xlu0 %412
    %s415 = sor.u32 256, 24
    %416 = vbcast.lane.b32.xlu0 %v402, %s415
    %v417 = vpop.permute.xlu0 %416
    %v418 = vlaneseq
    %v419 = vshrl.u32 %v418, 7
    %v420 = vsub.s32 3, %v419
    %v421 = vrot.slane %v54, %v420
    %423 = vbcast.lane.b32.xlu0 %v421, 256
    %v424 = vpop.permute.xlu0 %423
    %s426 = sor.u32 256, 8
    %427 = vbcast.lane.b32.xlu0 %v421, %s426
    %v428 = vpop.permute.xlu0 %427
    %s430 = sor.u32 256, 16
    %431 = vbcast.lane.b32.xlu0 %v421, %s430
    %v432 = vpop.permute.xlu0 %431
    %s434 = sor.u32 256, 24
    %435 = vbcast.lane.b32.xlu0 %v421, %s434
    %v436 = vpop.permute.xlu0 %435
    %v437 = vlaneseq
    %v438 = vshrl.u32 %v437, 7
    %v439 = vsub.s32 4, %v438
    %v440 = vrot.slane %v54, %v439
    %442 = vbcast.lane.b32.xlu0 %v440, 256
    %v443 = vpop.permute.xlu0 %442
    %s445 = sor.u32 256, 8
    %446 = vbcast.lane.b32.xlu0 %v440, %s445
    %v447 = vpop.permute.xlu0 %446
    %s449 = sor.u32 256, 16
    %450 = vbcast.lane.b32.xlu0 %v440, %s449
    %v451 = vpop.permute.xlu0 %450
    %s453 = sor.u32 256, 24
    %454 = vbcast.lane.b32.xlu0 %v440, %s453
    %v455 = vpop.permute.xlu0 %454
    %v456 = vlaneseq
    %v457 = vshrl.u32 %v456, 7
    %v458 = vsub.s32 5, %v457
    %v459 = vrot.slane %v54, %v458
    %461 = vbcast.lane.b32.xlu0 %v459, 256
    %v462 = vpop.permute.xlu0 %461
    %s464 = sor.u32 256, 8
    %465 = vbcast.lane.b32.xlu0 %v459, %s464
    %v466 = vpop.permute.xlu0 %465
    %s468 = sor.u32 256, 16
    %469 = vbcast.lane.b32.xlu0 %v459, %s468
    %v470 = vpop.permute.xlu0 %469
    %s472 = sor.u32 256, 24
    %473 = vbcast.lane.b32.xlu0 %v459, %s472
    %v474 = vpop.permute.xlu0 %473
    %v475 = vlaneseq
    %v476 = vshrl.u32 %v475, 7
    %v477 = vsub.s32 6, %v476
    %v478 = vrot.slane %v54, %v477
    %480 = vbcast.lane.b32.xlu0 %v478, 256
    %v481 = vpop.permute.xlu0 %480
    %s483 = sor.u32 256, 8
    %484 = vbcast.lane.b32.xlu0 %v478, %s483
    %v485 = vpop.permute.xlu0 %484
    %s487 = sor.u32 256, 16
    %488 = vbcast.lane.b32.xlu0 %v478, %s487
    %v489 = vpop.permute.xlu0 %488
    %s491 = sor.u32 256, 24
    %492 = vbcast.lane.b32.xlu0 %v478, %s491
    %v493 = vpop.permute.xlu0 %492
    %v494 = vlaneseq
    %v495 = vshrl.u32 %v494, 7
    %v496 = vsub.s32 7, %v495
    %v497 = vrot.slane %v54, %v496
    %499 = vbcast.lane.b32.xlu0 %v497, 256
    %v500 = vpop.permute.xlu0 %499
    %s502 = sor.u32 256, 8
    %503 = vbcast.lane.b32.xlu0 %v497, %s502
    %v504 = vpop.permute.xlu0 %503
    %s506 = sor.u32 256, 16
    %507 = vbcast.lane.b32.xlu0 %v497, %s506
    %v508 = vpop.permute.xlu0 %507
    %s510 = sor.u32 256, 24
    %511 = vbcast.lane.b32.xlu0 %v497, %s510
    %v512 = vpop.permute.xlu0 %511
    %v513 = vlaneseq
    %v514 = vshrl.u32 %v513, 7
    %v515 = vsub.s32 0, %v514
    %v516 = vrot.slane %v56, %v515
    %518 = vbcast.lane.b32.xlu0 %v516, 256
    %v519 = vpop.permute.xlu0 %518
    %s521 = sor.u32 256, 8
    %522 = vbcast.lane.b32.xlu0 %v516, %s521
    %v523 = vpop.permute.xlu0 %522
    %s525 = sor.u32 256, 16
    %526 = vbcast.lane.b32.xlu0 %v516, %s525
    %v527 = vpop.permute.xlu0 %526
    %s529 = sor.u32 256, 24
    %530 = vbcast.lane.b32.xlu0 %v516, %s529
    %v531 = vpop.permute.xlu0 %530
    %v532 = vlaneseq
    %v533 = vshrl.u32 %v532, 7
    %v534 = vsub.s32 1, %v533
    %v535 = vrot.slane %v56, %v534
    %537 = vbcast.lane.b32.xlu0 %v535, 256
    %v538 = vpop.permute.xlu0 %537
    %s540 = sor.u32 256, 8
    %541 = vbcast.lane.b32.xlu0 %v535, %s540
    %v542 = vpop.permute.xlu0 %541
    %s544 = sor.u32 256, 16
    %545 = vbcast.lane.b32.xlu0 %v535, %s544
    %v546 = vpop.permute.xlu0 %545
    %s548 = sor.u32 256, 24
    %549 = vbcast.lane.b32.xlu0 %v535, %s548
    %v550 = vpop.permute.xlu0 %549
    %v551 = vlaneseq
    %v552 = vshrl.u32 %v551, 7
    %v553 = vsub.s32 2, %v552
    %v554 = vrot.slane %v56, %v553
    %556 = vbcast.lane.b32.xlu0 %v554, 256
    %v557 = vpop.permute.xlu0 %556
    %s559 = sor.u32 256, 8
    %560 = vbcast.lane.b32.xlu0 %v554, %s559
    %v561 = vpop.permute.xlu0 %560
    %s563 = sor.u32 256, 16
    %564 = vbcast.lane.b32.xlu0 %v554, %s563
    %v565 = vpop.permute.xlu0 %564
    %s567 = sor.u32 256, 24
    %568 = vbcast.lane.b32.xlu0 %v554, %s567
    %v569 = vpop.permute.xlu0 %568
    %v570 = vlaneseq
    %v571 = vshrl.u32 %v570, 7
    %v572 = vsub.s32 3, %v571
    %v573 = vrot.slane %v56, %v572
    %575 = vbcast.lane.b32.xlu0 %v573, 256
    %v576 = vpop.permute.xlu0 %575
    %s578 = sor.u32 256, 8
    %579 = vbcast.lane.b32.xlu0 %v573, %s578
    %v580 = vpop.permute.xlu0 %579
    %s582 = sor.u32 256, 16
    %583 = vbcast.lane.b32.xlu0 %v573, %s582
    %v584 = vpop.permute.xlu0 %583
    %s586 = sor.u32 256, 24
    %587 = vbcast.lane.b32.xlu0 %v573, %s586
    %v588 = vpop.permute.xlu0 %587
    %v589 = vlaneseq
    %v590 = vshrl.u32 %v589, 7
    %v591 = vsub.s32 4, %v590
    %v592 = vrot.slane %v56, %v591
    %594 = vbcast.lane.b32.xlu0 %v592, 256
    %v595 = vpop.permute.xlu0 %594
    %s597 = sor.u32 256, 8
    %598 = vbcast.lane.b32.xlu0 %v592, %s597
    %v599 = vpop.permute.xlu0 %598
    %s601 = sor.u32 256, 16
    %602 = vbcast.lane.b32.xlu0 %v592, %s601
    %v603 = vpop.permute.xlu0 %602
    %s605 = sor.u32 256, 24
    %606 = vbcast.lane.b32.xlu0 %v592, %s605
    %v607 = vpop.permute.xlu0 %606
    %v608 = vlaneseq
    %v609 = vshrl.u32 %v608, 7
    %v610 = vsub.s32 5, %v609
    %v611 = vrot.slane %v56, %v610
    %613 = vbcast.lane.b32.xlu0 %v611, 256
    %v614 = vpop.permute.xlu0 %613
    %s616 = sor.u32 256, 8
    %617 = vbcast.lane.b32.xlu0 %v611, %s616
    %v618 = vpop.permute.xlu0 %617
    %s620 = sor.u32 256, 16
    %621 = vbcast.lane.b32.xlu0 %v611, %s620
    %v622 = vpop.permute.xlu0 %621
    %s624 = sor.u32 256, 24
    %625 = vbcast.lane.b32.xlu0 %v611, %s624
    %v626 = vpop.permute.xlu0 %625
    %v627 = vlaneseq
    %v628 = vshrl.u32 %v627, 7
    %v629 = vsub.s32 6, %v628
    %v630 = vrot.slane %v56, %v629
    %632 = vbcast.lane.b32.xlu0 %v630, 256
    %v633 = vpop.permute.xlu0 %632
    %s635 = sor.u32 256, 8
    %636 = vbcast.lane.b32.xlu0 %v630, %s635
    %v637 = vpop.permute.xlu0 %636
    %s639 = sor.u32 256, 16
    %640 = vbcast.lane.b32.xlu0 %v630, %s639
    %v641 = vpop.permute.xlu0 %640
    %s643 = sor.u32 256, 24
    %644 = vbcast.lane.b32.xlu0 %v630, %s643
    %v645 = vpop.permute.xlu0 %644
    %v646 = vlaneseq
    %v647 = vshrl.u32 %v646, 7
    %v648 = vsub.s32 7, %v647
    %v649 = vrot.slane %v56, %v648
    %651 = vbcast.lane.b32.xlu0 %v649, 256
    %v652 = vpop.permute.xlu0 %651
    %s654 = sor.u32 256, 8
    %655 = vbcast.lane.b32.xlu0 %v649, %s654
    %v656 = vpop.permute.xlu0 %655
    %s658 = sor.u32 256, 16
    %659 = vbcast.lane.b32.xlu0 %v649, %s658
    %v660 = vpop.permute.xlu0 %659
    %s662 = sor.u32 256, 24
    %663 = vbcast.lane.b32.xlu0 %v649, %s662
    %v664 = vpop.permute.xlu0 %663
    %vm665 = vcmask 7168
    %v666 = vsel %vm665, %v63, %v215
    %v667 = vsel %vm665, %v67, %v219
    %v668 = vsel %vm665, %v71, %v223
    %v669 = vsel %vm665, %v75, %v227
    %v670 = vsel %vm665, %v82, %v234
    %v671 = vsel %vm665, %v86, %v238
    %v672 = vsel %vm665, %v90, %v242
    %v673 = vsel %vm665, %v94, %v246
    %v674 = vsel %vm665, %v101, %v253
    %v675 = vsel %vm665, %v105, %v257
    %v676 = vsel %vm665, %v109, %v261
    %v677 = vsel %vm665, %v113, %v265
    %v678 = vsel %vm665, %v120, %v272
    %v679 = vsel %vm665, %v124, %v276
    %v680 = vsel %vm665, %v128, %v280
    %v681 = vsel %vm665, %v132, %v284
    %v682 = vsel %vm665, %v139, %v291
    %v683 = vsel %vm665, %v143, %v295
    %v684 = vsel %vm665, %v147, %v299
    %v685 = vsel %vm665, %v151, %v303
    %v686 = vsel %vm665, %v158, %v310
    %v687 = vsel %vm665, %v162, %v314
    %v688 = vsel %vm665, %v166, %v318
    %v689 = vsel %vm665, %v170, %v322
    %v690 = vsel %vm665, %v177, %v329
    %v691 = vsel %vm665, %v181, %v333
    %v692 = vsel %vm665, %v185, %v337
    %v693 = vsel %vm665, %v189, %v341
    %v694 = vsel %vm665, %v196, %v348
    %v695 = vsel %vm665, %v200, %v352
    %v696 = vsel %vm665, %v204, %v356
    %v697 = vsel %vm665, %v208, %v360
    %vm698 = vcmask 15360
    %v699 = vsel %vm698, %v666, %v367
    %v700 = vsel %vm698, %v667, %v371
    %v701 = vsel %vm698, %v668, %v375
    %v702 = vsel %vm698, %v669, %v379
    %v703 = vsel %vm698, %v670, %v386
    %v704 = vsel %vm698, %v671, %v390
    %v705 = vsel %vm698, %v672, %v394
    %v706 = vsel %vm698, %v673, %v398
    %v707 = vsel %vm698, %v674, %v405
    %v708 = vsel %vm698, %v675, %v409
    %v709 = vsel %vm698, %v676, %v413
    %v710 = vsel %vm698, %v677, %v417
    %v711 = vsel %vm698, %v678, %v424
    %v712 = vsel %vm698, %v679, %v428
    %v713 = vsel %vm698, %v680, %v432
    %v714 = vsel %vm698, %v681, %v436
    %v715 = vsel %vm698, %v682, %v443
    %v716 = vsel %vm698, %v683, %v447
    %v717 = vsel %vm698, %v684, %v451
    %v718 = vsel %vm698, %v685, %v455
    %v719 = vsel %vm698, %v686, %v462
    %v720 = vsel %vm698, %v687, %v466
    %v721 = vsel %vm698, %v688, %v470
    %v722 = vsel %vm698, %v689, %v474
    %v723 = vsel %vm698, %v690, %v481
    %v724 = vsel %vm698, %v691, %v485
    %v725 = vsel %vm698, %v692, %v489
    %v726 = vsel %vm698, %v693, %v493
    %v727 = vsel %vm698, %v694, %v500
    %v728 = vsel %vm698, %v695, %v504
    %v729 = vsel %vm698, %v696, %v508
    %v730 = vsel %vm698, %v697, %v512
    %vm731 = vcmask 23552
    %v732 = vsel %vm731, %v699, %v519
    %v733 = vsel %vm731, %v700, %v523
    %v734 = vsel %vm731, %v701, %v527
    %v735 = vsel %vm731, %v702, %v531
    %v736 = vsel %vm731, %v703, %v538
    %v737 = vsel %vm731, %v704, %v542
    %v738 = vsel %vm731, %v705, %v546
    %v739 = vsel %vm731, %v706, %v550
    %v740 = vsel %vm731, %v707, %v557
    %v741 = vsel %vm731, %v708, %v561
    %v742 = vsel %vm731, %v709, %v565
    %v743 = vsel %vm731, %v710, %v569
    %v744 = vsel %vm731, %v711, %v576
    %v745 = vsel %vm731, %v712, %v580
    %v746 = vsel %vm731, %v713, %v584
    %v747 = vsel %vm731, %v714, %v588
    %v748 = vsel %vm731, %v715, %v595
    %v749 = vsel %vm731, %v716, %v599
    %v750 = vsel %vm731, %v717, %v603
    %v751 = vsel %vm731, %v718, %v607
    %v752 = vsel %vm731, %v719, %v614
    %v753 = vsel %vm731, %v720, %v618
    %v754 = vsel %vm731, %v721, %v622
    %v755 = vsel %vm731, %v722, %v626
    %v756 = vsel %vm731, %v723, %v633
    %v757 = vsel %vm731, %v724, %v637
    %v758 = vsel %vm731, %v725, %v641
    %v759 = vsel %vm731, %v726, %v645
    %v760 = vsel %vm731, %v727, %v652
    %v761 = vsel %vm731, %v728, %v656
    %v762 = vsel %vm731, %v729, %v660
    %v763 = vsel %vm731, %v730, %v664
    %v764 = vcombine.low %v732, %v740
    %v765 = vcombine.high %v732, %v740
    %v767 = vunpack.c.l.s4 1983009808
    %v768 = vunpack.c.0.s8 %v767
    %v769 = vlaneseq
    %v770 = vshrl.u32 %v769, 7
    %v771 = vsub.s32 %v768, %v770
    %v772 = vrot.slane %v764, %v771
    %v774 = vunpack.c.l.s4 1983009808
    %v775 = vunpack.c.0.s8 %v774
    %v776 = vlaneseq
    %v777 = vshrl.u32 %v776, 7
    %v778 = vsub.s32 %v775, %v777
    %v779 = vrot.slane %v765, %v778
    %v780 = vcombine.low %v736, %v744
    %v781 = vcombine.high %v736, %v744
    %v783 = vunpack.c.l.s4 1983009808
    %v784 = vunpack.c.0.s8 %v783
    %v785 = vlaneseq
    %v786 = vshrl.u32 %v785, 7
    %v787 = vsub.s32 %v784, %v786
    %v788 = vrot.slane %v780, %v787
    %v790 = vunpack.c.l.s4 1983009808
    %v791 = vunpack.c.0.s8 %v790
    %v792 = vlaneseq
    %v793 = vshrl.u32 %v792, 7
    %v794 = vsub.s32 %v791, %v793
    %v795 = vrot.slane %v781, %v794
    %v796 = vcombine.low %v748, %v756
    %v797 = vcombine.high %v748, %v756
    %v799 = vunpack.c.l.s4 1983009808
    %v800 = vunpack.c.0.s8 %v799
    %v801 = vlaneseq
    %v802 = vshrl.u32 %v801, 7
    %v803 = vsub.s32 %v800, %v802
    %v804 = vrot.slane %v796, %v803
    %v806 = vunpack.c.l.s4 1983009808
    %v807 = vunpack.c.0.s8 %v806
    %v808 = vlaneseq
    %v809 = vshrl.u32 %v808, 7
    %v810 = vsub.s32 %v807, %v809
    %v811 = vrot.slane %v797, %v810
    %v812 = vcombine.low %v752, %v760
    %v813 = vcombine.high %v752, %v760
    %v815 = vunpack.c.l.s4 1983009808
    %v816 = vunpack.c.0.s8 %v815
    %v817 = vlaneseq
    %v818 = vshrl.u32 %v817, 7
    %v819 = vsub.s32 %v816, %v818
    %v820 = vrot.slane %v812, %v819
    %v822 = vunpack.c.l.s4 1983009808
    %v823 = vunpack.c.0.s8 %v822
    %v824 = vlaneseq
    %v825 = vshrl.u32 %v824, 7
    %v826 = vsub.s32 %v823, %v825
    %v827 = vrot.slane %v813, %v826
    %v828 = vcombine.low %v772, %v788
    %v829 = vcombine.high %v772, %v788
    %v831 = vunpack.c.l.s4 1934713408
    %v832 = vunpack.c.0.s8 %v831
    %v833 = vlaneseq
    %v834 = vshrl.u32 %v833, 7
    %v835 = vsub.s32 %v832, %v834
    %v836 = vrot.slane %v828, %v835
    %v838 = vunpack.c.l.s4 1934713408
    %v839 = vunpack.c.0.s8 %v838
    %v840 = vlaneseq
    %v841 = vshrl.u32 %v840, 7
    %v842 = vsub.s32 %v839, %v841
    %v843 = vrot.slane %v829, %v842
    %v844 = vcombine.low %v779, %v795
    %v845 = vcombine.high %v779, %v795
    %v847 = vunpack.c.l.s4 1934713408
    %v848 = vunpack.c.0.s8 %v847
    %v849 = vlaneseq
    %v850 = vshrl.u32 %v849, 7
    %v851 = vsub.s32 %v848, %v850
    %v852 = vrot.slane %v844, %v851
    %v854 = vunpack.c.l.s4 1934713408
    %v855 = vunpack.c.0.s8 %v854
    %v856 = vlaneseq
    %v857 = vshrl.u32 %v856, 7
    %v858 = vsub.s32 %v855, %v857
    %v859 = vrot.slane %v845, %v858
    %v860 = vcombine.low %v804, %v820
    %v861 = vcombine.high %v804, %v820
    %v863 = vunpack.c.l.s4 1934713408
    %v864 = vunpack.c.0.s8 %v863
    %v865 = vlaneseq
    %v866 = vshrl.u32 %v865, 7
    %v867 = vsub.s32 %v864, %v866
    %v868 = vrot.slane %v860, %v867
    %v870 = vunpack.c.l.s4 1934713408
    %v871 = vunpack.c.0.s8 %v870
    %v872 = vlaneseq
    %v873 = vshrl.u32 %v872, 7
    %v874 = vsub.s32 %v871, %v873
    %v875 = vrot.slane %v861, %v874
    %v876 = vcombine.low %v811, %v827
    %v877 = vcombine.high %v811, %v827
    %v879 = vunpack.c.l.s4 1934713408
    %v880 = vunpack.c.0.s8 %v879
    %v881 = vlaneseq
    %v882 = vshrl.u32 %v881, 7
    %v883 = vsub.s32 %v880, %v882
    %v884 = vrot.slane %v876, %v883
    %v886 = vunpack.c.l.s4 1934713408
    %v887 = vunpack.c.0.s8 %v886
    %v888 = vlaneseq
    %v889 = vshrl.u32 %v888, 7
    %v890 = vsub.s32 %v887, %v889
    %v891 = vrot.slane %v877, %v890
    %v892 = vcombine.low %v836, %v868
    %v893 = vcombine.high %v836, %v868
    %v894 = vcombine.low %v843, %v875
    %v895 = vcombine.high %v843, %v875
    %v896 = vcombine.low %v852, %v884
    %v897 = vcombine.high %v852, %v884
    %v898 = vcombine.low %v859, %v891
    %v899 = vcombine.high %v859, %v891
    %v900 = vcombine.low %v733, %v741
    %v901 = vcombine.high %v733, %v741
    %v903 = vunpack.c.l.s4 1983009808
    %v904 = vunpack.c.0.s8 %v903
    %v905 = vlaneseq
    %v906 = vshrl.u32 %v905, 7
    %v907 = vsub.s32 %v904, %v906
    %v908 = vrot.slane %v900, %v907
    %v910 = vunpack.c.l.s4 1983009808
    %v911 = vunpack.c.0.s8 %v910
    %v912 = vlaneseq
    %v913 = vshrl.u32 %v912, 7
    %v914 = vsub.s32 %v911, %v913
    %v915 = vrot.slane %v901, %v914
    %v916 = vcombine.low %v737, %v745
    %v917 = vcombine.high %v737, %v745
    %v919 = vunpack.c.l.s4 1983009808
    %v920 = vunpack.c.0.s8 %v919
    %v921 = vlaneseq
    %v922 = vshrl.u32 %v921, 7
    %v923 = vsub.s32 %v920, %v922
    %v924 = vrot.slane %v916, %v923
    %v926 = vunpack.c.l.s4 1983009808
    %v927 = vunpack.c.0.s8 %v926
    %v928 = vlaneseq
    %v929 = vshrl.u32 %v928, 7
    %v930 = vsub.s32 %v927, %v929
    %v931 = vrot.slane %v917, %v930
    %v932 = vcombine.low %v749, %v757
    %v933 = vcombine.high %v749, %v757
    %v935 = vunpack.c.l.s4 1983009808
    %v936 = vunpack.c.0.s8 %v935
    %v937 = vlaneseq
    %v938 = vshrl.u32 %v937, 7
    %v939 = vsub.s32 %v936, %v938
    %v940 = vrot.slane %v932, %v939
    %v942 = vunpack.c.l.s4 1983009808
    %v943 = vunpack.c.0.s8 %v942
    %v944 = vlaneseq
    %v945 = vshrl.u32 %v944, 7
    %v946 = vsub.s32 %v943, %v945
    %v947 = vrot.slane %v933, %v946
    %v948 = vcombine.low %v753, %v761
    %v949 = vcombine.high %v753, %v761
    %v951 = vunpack.c.l.s4 1983009808
    %v952 = vunpack.c.0.s8 %v951
    %v953 = vlaneseq
    %v954 = vshrl.u32 %v953, 7
    %v955 = vsub.s32 %v952, %v954
    %v956 = vrot.slane %v948, %v955
    %v958 = vunpack.c.l.s4 1983009808
    %v959 = vunpack.c.0.s8 %v958
    %v960 = vlaneseq
    %v961 = vshrl.u32 %v960, 7
    %v962 = vsub.s32 %v959, %v961
    %v963 = vrot.slane %v949, %v962
    %v964 = vcombine.low %v908, %v924
    %v965 = vcombine.high %v908, %v924
    %v967 = vunpack.c.l.s4 1934713408
    %v968 = vunpack.c.0.s8 %v967
    %v969 = vlaneseq
    %v970 = vshrl.u32 %v969, 7
    %v971 = vsub.s32 %v968, %v970
    %v972 = vrot.slane %v964, %v971
    %v974 = vunpack.c.l.s4 1934713408
    %v975 = vunpack.c.0.s8 %v974
    %v976 = vlaneseq
    %v977 = vshrl.u32 %v976, 7
    %v978 = vsub.s32 %v975, %v977
    %v979 = vrot.slane %v965, %v978
    %v980 = vcombine.low %v915, %v931
    %v981 = vcombine.high %v915, %v931
    %v983 = vunpack.c.l.s4 1934713408
    %v984 = vunpack.c.0.s8 %v983
    %v985 = vlaneseq
    %v986 = vshrl.u32 %v985, 7
    %v987 = vsub.s32 %v984, %v986
    %v988 = vrot.slane %v980, %v987
    %v990 = vunpack.c.l.s4 1934713408
    %v991 = vunpack.c.0.s8 %v990
    %v992 = vlaneseq
    %v993 = vshrl.u32 %v992, 7
    %v994 = vsub.s32 %v991, %v993
    %v995 = vrot.slane %v981, %v994
    %v996 = vcombine.low %v940, %v956
    %v997 = vcombine.high %v940, %v956
    %v999 = vunpack.c.l.s4 1934713408
    %v1000 = vunpack.c.0.s8 %v999
    %v1001 = vlaneseq
    %v1002 = vshrl.u32 %v1001, 7
    %v1003 = vsub.s32 %v1000, %v1002
    %v1004 = vrot.slane %v996, %v1003
    %v1006 = vunpack.c.l.s4 1934713408
    %v1007 = vunpack.c.0.s8 %v1006
    %v1008 = vlaneseq
    %v1009 = vshrl.u32 %v1008, 7
    %v1010 = vsub.s32 %v1007, %v1009
    %v1011 = vrot.slane %v997, %v1010
    %v1012 = vcombine.low %v947, %v963
    %v1013 = vcombine.high %v947, %v963
    %v1015 = vunpack.c.l.s4 1934713408
    %v1016 = vunpack.c.0.s8 %v1015
    %v1017 = vlaneseq
    %v1018 = vshrl.u32 %v1017, 7
    %v1019 = vsub.s32 %v1016, %v1018
    %v1020 = vrot.slane %v1012, %v1019
    %v1022 = vunpack.c.l.s4 1934713408
    %v1023 = vunpack.c.0.s8 %v1022
    %v1024 = vlaneseq
    %v1025 = vshrl.u32 %v1024, 7
    %v1026 = vsub.s32 %v1023, %v1025
    %v1027 = vrot.slane %v1013, %v1026
    %v1028 = vcombine.low %v972, %v1004
    %v1029 = vcombine.high %v972, %v1004
    %v1030 = vcombine.low %v979, %v1011
    %v1031 = vcombine.high %v979, %v1011
    %v1032 = vcombine.low %v988, %v1020
    %v1033 = vcombine.high %v988, %v1020
    %v1034 = vcombine.low %v995, %v1027
    %v1035 = vcombine.high %v995, %v1027
    %v1036 = vcombine.low %v734, %v742
    %v1037 = vcombine.high %v734, %v742
    %v1039 = vunpack.c.l.s4 1983009808
    %v1040 = vunpack.c.0.s8 %v1039
    %v1041 = vlaneseq
    %v1042 = vshrl.u32 %v1041, 7
    %v1043 = vsub.s32 %v1040, %v1042
    %v1044 = vrot.slane %v1036, %v1043
    %v1046 = vunpack.c.l.s4 1983009808
    %v1047 = vunpack.c.0.s8 %v1046
    %v1048 = vlaneseq
    %v1049 = vshrl.u32 %v1048, 7
    %v1050 = vsub.s32 %v1047, %v1049
    %v1051 = vrot.slane %v1037, %v1050
    %v1052 = vcombine.low %v738, %v746
    %v1053 = vcombine.high %v738, %v746
    %v1055 = vunpack.c.l.s4 1983009808
    %v1056 = vunpack.c.0.s8 %v1055
    %v1057 = vlaneseq
    %v1058 = vshrl.u32 %v1057, 7
    %v1059 = vsub.s32 %v1056, %v1058
    %v1060 = vrot.slane %v1052, %v1059
    %v1062 = vunpack.c.l.s4 1983009808
    %v1063 = vunpack.c.0.s8 %v1062
    %v1064 = vlaneseq
    %v1065 = vshrl.u32 %v1064, 7
    %v1066 = vsub.s32 %v1063, %v1065
    %v1067 = vrot.slane %v1053, %v1066
    %v1068 = vcombine.low %v750, %v758
    %v1069 = vcombine.high %v750, %v758
    %v1071 = vunpack.c.l.s4 1983009808
    %v1072 = vunpack.c.0.s8 %v1071
    %v1073 = vlaneseq
    %v1074 = vshrl.u32 %v1073, 7
    %v1075 = vsub.s32 %v1072, %v1074
    %v1076 = vrot.slane %v1068, %v1075
    %v1078 = vunpack.c.l.s4 1983009808
    %v1079 = vunpack.c.0.s8 %v1078
    %v1080 = vlaneseq
    %v1081 = vshrl.u32 %v1080, 7
    %v1082 = vsub.s32 %v1079, %v1081
    %v1083 = vrot.slane %v1069, %v1082
    %v1084 = vcombine.low %v754, %v762
    %v1085 = vcombine.high %v754, %v762
    %v1087 = vunpack.c.l.s4 1983009808
    %v1088 = vunpack.c.0.s8 %v1087
    %v1089 = vlaneseq
    %v1090 = vshrl.u32 %v1089, 7
    %v1091 = vsub.s32 %v1088, %v1090
    %v1092 = vrot.slane %v1084, %v1091
    %v1094 = vunpack.c.l.s4 1983009808
    %v1095 = vunpack.c.0.s8 %v1094
    %v1096 = vlaneseq
    %v1097 = vshrl.u32 %v1096, 7
    %v1098 = vsub.s32 %v1095, %v1097
    %v1099 = vrot.slane %v1085, %v1098
    %v1100 = vcombine.low %v1044, %v1060
    %v1101 = vcombine.high %v1044, %v1060
    %v1103 = vunpack.c.l.s4 1934713408
    %v1104 = vunpack.c.0.s8 %v1103
    %v1105 = vlaneseq
    %v1106 = vshrl.u32 %v1105, 7
    %v1107 = vsub.s32 %v1104, %v1106
    %v1108 = vrot.slane %v1100, %v1107
    %v1110 = vunpack.c.l.s4 1934713408
    %v1111 = vunpack.c.0.s8 %v1110
    %v1112 = vlaneseq
    %v1113 = vshrl.u32 %v1112, 7
    %v1114 = vsub.s32 %v1111, %v1113
    %v1115 = vrot.slane %v1101, %v1114
    %v1116 = vcombine.low %v1051, %v1067
    %v1117 = vcombine.high %v1051, %v1067
    %v1119 = vunpack.c.l.s4 1934713408
    %v1120 = vunpack.c.0.s8 %v1119
    %v1121 = vlaneseq
    %v1122 = vshrl.u32 %v1121, 7
    %v1123 = vsub.s32 %v1120, %v1122
    %v1124 = vrot.slane %v1116, %v1123
    %v1126 = vunpack.c.l.s4 1934713408
    %v1127 = vunpack.c.0.s8 %v1126
    %v1128 = vlaneseq
    %v1129 = vshrl.u32 %v1128, 7
    %v1130 = vsub.s32 %v1127, %v1129
    %v1131 = vrot.slane %v1117, %v1130
    %v1132 = vcombine.low %v1076, %v1092
    %v1133 = vcombine.high %v1076, %v1092
    %v1135 = vunpack.c.l.s4 1934713408
    %v1136 = vunpack.c.0.s8 %v1135
    %v1137 = vlaneseq
    %v1138 = vshrl.u32 %v1137, 7
    %v1139 = vsub.s32 %v1136, %v1138
    %v1140 = vrot.slane %v1132, %v1139
    %v1142 = vunpack.c.l.s4 1934713408
    %v1143 = vunpack.c.0.s8 %v1142
    %v1144 = vlaneseq
    %v1145 = vshrl.u32 %v1144, 7
    %v1146 = vsub.s32 %v1143, %v1145
    %v1147 = vrot.slane %v1133, %v1146
    %v1148 = vcombine.low %v1083, %v1099
    %v1149 = vcombine.high %v1083, %v1099
    %v1151 = vunpack.c.l.s4 1934713408
    %v1152 = vunpack.c.0.s8 %v1151
    %v1153 = vlaneseq
    %v1154 = vshrl.u32 %v1153, 7
    %v1155 = vsub.s32 %v1152, %v1154
    %v1156 = vrot.slane %v1148, %v1155
    %v1158 = vunpack.c.l.s4 1934713408
    %v1159 = vunpack.c.0.s8 %v1158
    %v1160 = vlaneseq
    %v1161 = vshrl.u32 %v1160, 7
    %v1162 = vsub.s32 %v1159, %v1161
    %v1163 = vrot.slane %v1149, %v1162
    %v1164 = vcombine.low %v1108, %v1140
    %v1165 = vcombine.high %v1108, %v1140
    %v1166 = vcombine.low %v1115, %v1147
    %v1167 = vcombine.high %v1115, %v1147
    %v1168 = vcombine.low %v1124, %v1156
    %v1169 = vcombine.high %v1124, %v1156
    %v1170 = vcombine.low %v1131, %v1163
    %v1171 = vcombine.high %v1131, %v1163
    %v1172 = vcombine.low %v735, %v743
    %v1173 = vcombine.high %v735, %v743
    %v1175 = vunpack.c.l.s4 1983009808
    %v1176 = vunpack.c.0.s8 %v1175
    %v1177 = vlaneseq
    %v1178 = vshrl.u32 %v1177, 7
    %v1179 = vsub.s32 %v1176, %v1178
    %v1180 = vrot.slane %v1172, %v1179
    %v1182 = vunpack.c.l.s4 1983009808
    %v1183 = vunpack.c.0.s8 %v1182
    %v1184 = vlaneseq
    %v1185 = vshrl.u32 %v1184, 7
    %v1186 = vsub.s32 %v1183, %v1185
    %v1187 = vrot.slane %v1173, %v1186
    %v1188 = vcombine.low %v739, %v747
    %v1189 = vcombine.high %v739, %v747
    %v1191 = vunpack.c.l.s4 1983009808
    %v1192 = vunpack.c.0.s8 %v1191
    %v1193 = vlaneseq
    %v1194 = vshrl.u32 %v1193, 7
    %v1195 = vsub.s32 %v1192, %v1194
    %v1196 = vrot.slane %v1188, %v1195
    %v1198 = vunpack.c.l.s4 1983009808
    %v1199 = vunpack.c.0.s8 %v1198
    %v1200 = vlaneseq
    %v1201 = vshrl.u32 %v1200, 7
    %v1202 = vsub.s32 %v1199, %v1201
    %v1203 = vrot.slane %v1189, %v1202
    %v1204 = vcombine.low %v751, %v759
    %v1205 = vcombine.high %v751, %v759
    %v1207 = vunpack.c.l.s4 1983009808
    %v1208 = vunpack.c.0.s8 %v1207
    %v1209 = vlaneseq
    %v1210 = vshrl.u32 %v1209, 7
    %v1211 = vsub.s32 %v1208, %v1210
    %v1212 = vrot.slane %v1204, %v1211
    %v1214 = vunpack.c.l.s4 1983009808
    %v1215 = vunpack.c.0.s8 %v1214
    %v1216 = vlaneseq
    %v1217 = vshrl.u32 %v1216, 7
    %v1218 = vsub.s32 %v1215, %v1217
    %v1219 = vrot.slane %v1205, %v1218
    %v1220 = vcombine.low %v755, %v763
    %v1221 = vcombine.high %v755, %v763
    %v1223 = vunpack.c.l.s4 1983009808
    %v1224 = vunpack.c.0.s8 %v1223
    %v1225 = vlaneseq
    %v1226 = vshrl.u32 %v1225, 7
    %v1227 = vsub.s32 %v1224, %v1226
    %v1228 = vrot.slane %v1220, %v1227
    %v1230 = vunpack.c.l.s4 1983009808
    %v1231 = vunpack.c.0.s8 %v1230
    %v1232 = vlaneseq
    %v1233 = vshrl.u32 %v1232, 7
    %v1234 = vsub.s32 %v1231, %v1233
    %v1235 = vrot.slane %v1221, %v1234
    %v1236 = vcombine.low %v1180, %v1196
    %v1237 = vcombine.high %v1180, %v1196
    %v1239 = vunpack.c.l.s4 1934713408
    %v1240 = vunpack.c.0.s8 %v1239
    %v1241 = vlaneseq
    %v1242 = vshrl.u32 %v1241, 7
    %v1243 = vsub.s32 %v1240, %v1242
    %v1244 = vrot.slane %v1236, %v1243
    %v1246 = vunpack.c.l.s4 1934713408
    %v1247 = vunpack.c.0.s8 %v1246
    %v1248 = vlaneseq
    %v1249 = vshrl.u32 %v1248, 7
    %v1250 = vsub.s32 %v1247, %v1249
    %v1251 = vrot.slane %v1237, %v1250
    %v1252 = vcombine.low %v1187, %v1203
    %v1253 = vcombine.high %v1187, %v1203
    %v1255 = vunpack.c.l.s4 1934713408
    %v1256 = vunpack.c.0.s8 %v1255
    %v1257 = vlaneseq
    %v1258 = vshrl.u32 %v1257, 7
    %v1259 = vsub.s32 %v1256, %v1258
    %v1260 = vrot.slane %v1252, %v1259
    %v1262 = vunpack.c.l.s4 1934713408
    %v1263 = vunpack.c.0.s8 %v1262
    %v1264 = vlaneseq
    %v1265 = vshrl.u32 %v1264, 7
    %v1266 = vsub.s32 %v1263, %v1265
    %v1267 = vrot.slane %v1253, %v1266
    %v1268 = vcombine.low %v1212, %v1228
    %v1269 = vcombine.high %v1212, %v1228
    %v1271 = vunpack.c.l.s4 1934713408
    %v1272 = vunpack.c.0.s8 %v1271
    %v1273 = vlaneseq
    %v1274 = vshrl.u32 %v1273, 7
    %v1275 = vsub.s32 %v1272, %v1274
    %v1276 = vrot.slane %v1268, %v1275
    %v1278 = vunpack.c.l.s4 1934713408
    %v1279 = vunpack.c.0.s8 %v1278
    %v1280 = vlaneseq
    %v1281 = vshrl.u32 %v1280, 7
    %v1282 = vsub.s32 %v1279, %v1281
    %v1283 = vrot.slane %v1269, %v1282
    %v1284 = vcombine.low %v1219, %v1235
    %v1285 = vcombine.high %v1219, %v1235
    %v1287 = vunpack.c.l.s4 1934713408
    %v1288 = vunpack.c.0.s8 %v1287
    %v1289 = vlaneseq
    %v1290 = vshrl.u32 %v1289, 7
    %v1291 = vsub.s32 %v1288, %v1290
    %v1292 = vrot.slane %v1284, %v1291
    %v1294 = vunpack.c.l.s4 1934713408
    %v1295 = vunpack.c.0.s8 %v1294
    %v1296 = vlaneseq
    %v1297 = vshrl.u32 %v1296, 7
    %v1298 = vsub.s32 %v1295, %v1297
    %v1299 = vrot.slane %v1285, %v1298
    %v1300 = vcombine.low %v1244, %v1276
    %v1301 = vcombine.high %v1244, %v1276
    %v1302 = vcombine.low %v1251, %v1283
    %v1303 = vcombine.high %v1251, %v1283
    %v1304 = vcombine.low %v1260, %v1292
    %v1305 = vcombine.high %v1260, %v1292
    %v1306 = vcombine.low %v1267, %v1299
    %v1307 = vcombine.high %v1267, %v1299
    %1309 = vrot.lane.b32.xlu0 %v893, 4
    %v1310 = vpop.permute.xlu0 %1309
    %1313 = vrot.lane.b32.xlu0 %v894, 8
    %v1314 = vpop.permute.xlu0 %1313
    %1317 = vrot.lane.b32.xlu0 %v895, 12
    %v1318 = vpop.permute.xlu0 %1317
    %1321 = vrot.lane.b32.xlu0 %v896, 16
    %v1322 = vpop.permute.xlu0 %1321
    %1325 = vrot.lane.b32.xlu0 %v897, 20
    %v1326 = vpop.permute.xlu0 %1325
    %1329 = vrot.lane.b32.xlu0 %v898, 24
    %v1330 = vpop.permute.xlu0 %1329
    %1333 = vrot.lane.b32.xlu0 %v899, 28
    %v1334 = vpop.permute.xlu0 %1333
    %1337 = vrot.lane.b32.xlu0 %v1028, 32
    %v1338 = vpop.permute.xlu0 %1337
    %1341 = vrot.lane.b32.xlu0 %v1029, 36
    %v1342 = vpop.permute.xlu0 %1341
    %1345 = vrot.lane.b32.xlu0 %v1030, 40
    %v1346 = vpop.permute.xlu0 %1345
    %1349 = vrot.lane.b32.xlu0 %v1031, 44
    %v1350 = vpop.permute.xlu0 %1349
    %1353 = vrot.lane.b32.xlu0 %v1032, 48
    %v1354 = vpop.permute.xlu0 %1353
    %1357 = vrot.lane.b32.xlu0 %v1033, 52
    %v1358 = vpop.permute.xlu0 %1357
    %1361 = vrot.lane.b32.xlu0 %v1034, 56
    %v1362 = vpop.permute.xlu0 %1361
    %1365 = vrot.lane.b32.xlu0 %v1035, 60
    %v1366 = vpop.permute.xlu0 %1365
    %1369 = vrot.lane.b32.xlu0 %v1164, 64
    %v1370 = vpop.permute.xlu0 %1369
    %1373 = vrot.lane.b32.xlu0 %v1165, 68
    %v1374 = vpop.permute.xlu0 %1373
    %1377 = vrot.lane.b32.xlu0 %v1166, 72
    %v1378 = vpop.permute.xlu0 %1377
    %1381 = vrot.lane.b32.xlu0 %v1167, 76
    %v1382 = vpop.permute.xlu0 %1381
    %1385 = vrot.lane.b32.xlu0 %v1168, 80
    %v1386 = vpop.permute.xlu0 %1385
    %1389 = vrot.lane.b32.xlu0 %v1169, 84
    %v1390 = vpop.permute.xlu0 %1389
    %1393 = vrot.lane.b32.xlu0 %v1170, 88
    %v1394 = vpop.permute.xlu0 %1393
    %1397 = vrot.lane.b32.xlu0 %v1171, 92
    %v1398 = vpop.permute.xlu0 %1397
    %1401 = vrot.lane.b32.xlu0 %v1300, 96
    %v1402 = vpop.permute.xlu0 %1401
    %1405 = vrot.lane.b32.xlu0 %v1301, 100
    %v1406 = vpop.permute.xlu0 %1405
    %1409 = vrot.lane.b32.xlu0 %v1302, 104
    %v1410 = vpop.permute.xlu0 %1409
    %1413 = vrot.lane.b32.xlu0 %v1303, 108
    %v1414 = vpop.permute.xlu0 %1413
    %1417 = vrot.lane.b32.xlu0 %v1304, 112
    %v1418 = vpop.permute.xlu0 %1417
    %1421 = vrot.lane.b32.xlu0 %v1305, 116
    %v1422 = vpop.permute.xlu0 %1421
    %1425 = vrot.lane.b32.xlu0 %v1306, 120
    %v1426 = vpop.permute.xlu0 %1425
    %1429 = vrot.lane.b32.xlu0 %v1307, 124
    %v1430 = vpop.permute.xlu0 %1429
    %vm1432 = vcmask 31744
    %v1433 = vsel %vm1432, %v892, %v1310
    %vm1434 = vcmask 64512
    %v1435 = vsel %vm1434, %v1433, %v1314
    %vm1436 = vcmask 97280
    %v1437 = vsel %vm1436, %v1435, %v1318
    %vm1438 = vcmask 130048
    %v1439 = vsel %vm1438, %v1437, %v1322
    %vm1440 = vcmask 162816
    %v1441 = vsel %vm1440, %v1439, %v1326
    %vm1442 = vcmask 195584
    %v1443 = vsel %vm1442, %v1441, %v1330
    %vm1444 = vcmask 228352
    %v1445 = vsel %vm1444, %v1443, %v1334
    %vm1446 = vcmask 261120
    %v1447 = vsel %vm1446, %v1445, %v1338
    %vm1448 = vcmask 293888
    %v1449 = vsel %vm1448, %v1447, %v1342
    %vm1450 = vcmask 326656
    %v1451 = vsel %vm1450, %v1449, %v1346
    %vm1452 = vcmask 359424
    %v1453 = vsel %vm1452, %v1451, %v1350
    %vm1454 = vcmask 392192
    %v1455 = vsel %vm1454, %v1453, %v1354
    %vm1456 = vcmask 424960
    %v1457 = vsel %vm1456, %v1455, %v1358
    %vm1458 = vcmask 457728
    %v1459 = vsel %vm1458, %v1457, %v1362
    %vm1460 = vcmask 490496
    %v1461 = vsel %vm1460, %v1459, %v1366
    %vm1462 = vcmask 523264
    %v1463 = vsel %vm1462, %v1461, %v1370
    %vm1464 = vcmask 556032
    %v1465 = vsel %vm1464, %v1463, %v1374
    %vm1466 = vcmask 588800
    %v1467 = vsel %vm1466, %v1465, %v1378
    %vm1468 = vcmask 621568
    %v1469 = vsel %vm1468, %v1467, %v1382
    %vm1470 = vcmask 654336
    %v1471 = vsel %vm1470, %v1469, %v1386
    %vm1472 = vcmask 687104
    %v1473 = vsel %vm1472, %v1471, %v1390
    %vm1474 = vcmask 719872
    %v1475 = vsel %vm1474, %v1473, %v1394
    %vm1476 = vcmask 752640
    %v1477 = vsel %vm1476, %v1475, %v1398
    %vm1478 = vcmask 785408
    %v1479 = vsel %vm1478, %v1477, %v1402
    %vm1480 = vcmask 818176
    %v1481 = vsel %vm1480, %v1479, %v1406
    %vm1482 = vcmask 850944
    %v1483 = vsel %vm1482, %v1481, %v1410
    %vm1484 = vcmask 883712
    %v1485 = vsel %vm1484, %v1483, %v1414
    %vm1486 = vcmask 916480
    %v1487 = vsel %vm1486, %v1485, %v1418
    %vm1488 = vcmask 949248
    %v1489 = vsel %vm1488, %v1487, %v1422
    %vm1490 = vcmask 982016
    %v1491 = vsel %vm1490, %v1489, %v1426
    %vm1492 = vcmask 1014784
    %v1493 = vsel %vm1492, %v1491, %v1430
    %1494 = vst [vmem:[#allocation8] sm:$0xff] %v1493
    %v1495 = vld [vmem:[#allocation2] sm:$0xff]
    %v1496 = vld [vmem:[#allocation5] sm:$0xff]
    %v1497 = vld [vmem:[#allocation7] sm:$0xff]
    %v1498 = vld [vmem:[%s3] sm:$0xff]
    %v1499 = vlaneseq
    %v1500 = vshrl.u32 %v1499, 7
    %v1501 = vsub.s32 0, %v1500
    %v1502 = vrot.slane %v1495, %v1501
    %s1504 = sor.u32 256, 32
    %1505 = vbcast.lane.b32.xlu0 %v1502, %s1504
    %v1506 = vpop.permute.xlu0 %1505
    %s1508 = sor.u32 256, 40
    %1509 = vbcast.lane.b32.xlu0 %v1502, %s1508
    %v1510 = vpop.permute.xlu0 %1509
    %s1512 = sor.u32 256, 48
    %1513 = vbcast.lane.b32.xlu0 %v1502, %s1512
    %v1514 = vpop.permute.xlu0 %1513
    %s1516 = sor.u32 256, 56
    %1517 = vbcast.lane.b32.xlu0 %v1502, %s1516
    %v1518 = vpop.permute.xlu0 %1517
    %v1519 = vlaneseq
    %v1520 = vshrl.u32 %v1519, 7
    %v1521 = vsub.s32 1, %v1520
    %v1522 = vrot.slane %v1495, %v1521
    %s1524 = sor.u32 256, 32
    %1525 = vbcast.lane.b32.xlu0 %v1522, %s1524
    %v1526 = vpop.permute.xlu0 %1525
    %s1528 = sor.u32 256, 40
    %1529 = vbcast.lane.b32.xlu0 %v1522, %s1528
    %v1530 = vpop.permute.xlu0 %1529
    %s1532 = sor.u32 256, 48
    %1533 = vbcast.lane.b32.xlu0 %v1522, %s1532
    %v1534 = vpop.permute.xlu0 %1533
    %s1536 = sor.u32 256, 56
    %1537 = vbcast.lane.b32.xlu0 %v1522, %s1536
    %v1538 = vpop.permute.xlu0 %1537
    %v1539 = vlaneseq
    %v1540 = vshrl.u32 %v1539, 7
    %v1541 = vsub.s32 2, %v1540
    %v1542 = vrot.slane %v1495, %v1541
    %s1544 = sor.u32 256, 32
    %1545 = vbcast.lane.b32.xlu0 %v1542, %s1544
    %v1546 = vpop.permute.xlu0 %1545
    %s1548 = sor.u32 256, 40
    %1549 = vbcast.lane.b32.xlu0 %v1542, %s1548
    %v1550 = vpop.permute.xlu0 %1549
    %s1552 = sor.u32 256, 48
    %1553 = vbcast.lane.b32.xlu0 %v1542, %s1552
    %v1554 = vpop.permute.xlu0 %1553
    %s1556 = sor.u32 256, 56
    %1557 = vbcast.lane.b32.xlu0 %v1542, %s1556
    %v1558 = vpop.permute.xlu0 %1557
    %v1559 = vlaneseq
    %v1560 = vshrl.u32 %v1559, 7
    %v1561 = vsub.s32 3, %v1560
    %v1562 = vrot.slane %v1495, %v1561
    %s1564 = sor.u32 256, 32
    %1565 = vbcast.lane.b32.xlu0 %v1562, %s1564
    %v1566 = vpop.permute.xlu0 %1565
    %s1568 = sor.u32 256, 40
    %1569 = vbcast.lane.b32.xlu0 %v1562, %s1568
    %v1570 = vpop.permute.xlu0 %1569
    %s1572 = sor.u32 256, 48
    %1573 = vbcast.lane.b32.xlu0 %v1562, %s1572
    %v1574 = vpop.permute.xlu0 %1573
    %s1576 = sor.u32 256, 56
    %1577 = vbcast.lane.b32.xlu0 %v1562, %s1576
    %v1578 = vpop.permute.xlu0 %1577
    %v1579 = vlaneseq
    %v1580 = vshrl.u32 %v1579, 7
    %v1581 = vsub.s32 4, %v1580
    %v1582 = vrot.slane %v1495, %v1581
    %s1584 = sor.u32 256, 32
    %1585 = vbcast.lane.b32.xlu0 %v1582, %s1584
    %v1586 = vpop.permute.xlu0 %1585
    %s1588 = sor.u32 256, 40
    %1589 = vbcast.lane.b32.xlu0 %v1582, %s1588
    %v1590 = vpop.permute.xlu0 %1589
    %s1592 = sor.u32 256, 48
    %1593 = vbcast.lane.b32.xlu0 %v1582, %s1592
    %v1594 = vpop.permute.xlu0 %1593
    %s1596 = sor.u32 256, 56
    %1597 = vbcast.lane.b32.xlu0 %v1582, %s1596
    %v1598 = vpop.permute.xlu0 %1597
    %v1599 = vlaneseq
    %v1600 = vshrl.u32 %v1599, 7
    %v1601 = vsub.s32 5, %v1600
    %v1602 = vrot.slane %v1495, %v1601
    %s1604 = sor.u32 256, 32
    %1605 = vbcast.lane.b32.xlu0 %v1602, %s1604
    %v1606 = vpop.permute.xlu0 %1605
    %s1608 = sor.u32 256, 40
    %1609 = vbcast.lane.b32.xlu0 %v1602, %s1608
    %v1610 = vpop.permute.xlu0 %1609
    %s1612 = sor.u32 256, 48
    %1613 = vbcast.lane.b32.xlu0 %v1602, %s1612
    %v1614 = vpop.permute.xlu0 %1613
    %s1616 = sor.u32 256, 56
    %1617 = vbcast.lane.b32.xlu0 %v1602, %s1616
    %v1618 = vpop.permute.xlu0 %1617
    %v1619 = vlaneseq
    %v1620 = vshrl.u32 %v1619, 7
    %v1621 = vsub.s32 6, %v1620
    %v1622 = vrot.slane %v1495, %v1621
    %s1624 = sor.u32 256, 32
    %1625 = vbcast.lane.b32.xlu0 %v1622, %s1624
    %v1626 = vpop.permute.xlu0 %1625
    %s1628 = sor.u32 256, 40
    %1629 = vbcast.lane.b32.xlu0 %v1622, %s1628
    %v1630 = vpop.permute.xlu0 %1629
    %s1632 = sor.u32 256, 48
    %1633 = vbcast.lane.b32.xlu0 %v1622, %s1632
    %v1634 = vpop.permute.xlu0 %1633
    %s1636 = sor.u32 256, 56
    %1637 = vbcast.lane.b32.xlu0 %v1622, %s1636
    %v1638 = vpop.permute.xlu0 %1637
    %v1639 = vlaneseq
    %v1640 = vshrl.u32 %v1639, 7
    %v1641 = vsub.s32 7, %v1640
    %v1642 = vrot.slane %v1495, %v1641
    %s1644 = sor.u32 256, 32
    %1645 = vbcast.lane.b32.xlu0 %v1642, %s1644
    %v1646 = vpop.permute.xlu0 %1645
    %s1648 = sor.u32 256, 40
    %1649 = vbcast.lane.b32.xlu0 %v1642, %s1648
    %v1650 = vpop.permute.xlu0 %1649
    %s1652 = sor.u32 256, 48
    %1653 = vbcast.lane.b32.xlu0 %v1642, %s1652
    %v1654 = vpop.permute.xlu0 %1653
    %s1656 = sor.u32 256, 56
    %1657 = vbcast.lane.b32.xlu0 %v1642, %s1656
    %v1658 = vpop.permute.xlu0 %1657
    %v1659 = vlaneseq
    %v1660 = vshrl.u32 %v1659, 7
    %v1661 = vsub.s32 0, %v1660
    %v1662 = vrot.slane %v1497, %v1661
    %s1664 = sor.u32 256, 32
    %1665 = vbcast.lane.b32.xlu0 %v1662, %s1664
    %v1666 = vpop.permute.xlu0 %1665
    %s1668 = sor.u32 256, 40
    %1669 = vbcast.lane.b32.xlu0 %v1662, %s1668
    %v1670 = vpop.permute.xlu0 %1669
    %s1672 = sor.u32 256, 48
    %1673 = vbcast.lane.b32.xlu0 %v1662, %s1672
    %v1674 = vpop.permute.xlu0 %1673
    %s1676 = sor.u32 256, 56
    %1677 = vbcast.lane.b32.xlu0 %v1662, %s1676
    %v1678 = vpop.permute.xlu0 %1677
    %v1679 = vlaneseq
    %v1680 = vshrl.u32 %v1679, 7
    %v1681 = vsub.s32 1, %v1680
    %v1682 = vrot.slane %v1497, %v1681
    %s1684 = sor.u32 256, 32
    %1685 = vbcast.lane.b32.xlu0 %v1682, %s1684
    %v1686 = vpop.permute.xlu0 %1685
    %s1688 = sor.u32 256, 40
    %1689 = vbcast.lane.b32.xlu0 %v1682, %s1688
    %v1690 = vpop.permute.xlu0 %1689
    %s1692 = sor.u32 256, 48
    %1693 = vbcast.lane.b32.xlu0 %v1682, %s1692
    %v1694 = vpop.permute.xlu0 %1693
    %s1696 = sor.u32 256, 56
    %1697 = vbcast.lane.b32.xlu0 %v1682, %s1696
    %v1698 = vpop.permute.xlu0 %1697
    %v1699 = vlaneseq
    %v1700 = vshrl.u32 %v1699, 7
    %v1701 = vsub.s32 2, %v1700
    %v1702 = vrot.slane %v1497, %v1701
    %s1704 = sor.u32 256, 32
    %1705 = vbcast.lane.b32.xlu0 %v1702, %s1704
    %v1706 = vpop.permute.xlu0 %1705
    %s1708 = sor.u32 256, 40
    %1709 = vbcast.lane.b32.xlu0 %v1702, %s1708
    %v1710 = vpop.permute.xlu0 %1709
    %s1712 = sor.u32 256, 48
    %1713 = vbcast.lane.b32.xlu0 %v1702, %s1712
    %v1714 = vpop.permute.xlu0 %1713
    %s1716 = sor.u32 256, 56
    %1717 = vbcast.lane.b32.xlu0 %v1702, %s1716
    %v1718 = vpop.permute.xlu0 %1717
    %v1719 = vlaneseq
    %v1720 = vshrl.u32 %v1719, 7
    %v1721 = vsub.s32 3, %v1720
    %v1722 = vrot.slane %v1497, %v1721
    %s1724 = sor.u32 256, 32
    %1725 = vbcast.lane.b32.xlu0 %v1722, %s1724
    %v1726 = vpop.permute.xlu0 %1725
    %s1728 = sor.u32 256, 40
    %1729 = vbcast.lane.b32.xlu0 %v1722, %s1728
    %v1730 = vpop.permute.xlu0 %1729
    %s1732 = sor.u32 256, 48
    %1733 = vbcast.lane.b32.xlu0 %v1722, %s1732
    %v1734 = vpop.permute.xlu0 %1733
    %s1736 = sor.u32 256, 56
    %1737 = vbcast.lane.b32.xlu0 %v1722, %s1736
    %v1738 = vpop.permute.xlu0 %1737
    %v1739 = vlaneseq
    %v1740 = vshrl.u32 %v1739, 7
    %v1741 = vsub.s32 4, %v1740
    %v1742 = vrot.slane %v1497, %v1741
    %s1744 = sor.u32 256, 32
    %1745 = vbcast.lane.b32.xlu0 %v1742, %s1744
    %v1746 = vpop.permute.xlu0 %1745
    %s1748 = sor.u32 256, 40
    %1749 = vbcast.lane.b32.xlu0 %v1742, %s1748
    %v1750 = vpop.permute.xlu0 %1749
    %s1752 = sor.u32 256, 48
    %1753 = vbcast.lane.b32.xlu0 %v1742, %s1752
    %v1754 = vpop.permute.xlu0 %1753
    %s1756 = sor.u32 256, 56
    %1757 = vbcast.lane.b32.xlu0 %v1742, %s1756
    %v1758 = vpop.permute.xlu0 %1757
    %v1759 = vlaneseq
    %v1760 = vshrl.u32 %v1759, 7
    %v1761 = vsub.s32 5, %v1760
    %v1762 = vrot.slane %v1497, %v1761
    %s1764 = sor.u32 256, 32
    %1765 = vbcast.lane.b32.xlu0 %v1762, %s1764
    %v1766 = vpop.permute.xlu0 %1765
    %s1768 = sor.u32 256, 40
    %1769 = vbcast.lane.b32.xlu0 %v1762, %s1768
    %v1770 = vpop.permute.xlu0 %1769
    %s1772 = sor.u32 256, 48
    %1773 = vbcast.lane.b32.xlu0 %v1762, %s1772
    %v1774 = vpop.permute.xlu0 %1773
    %s1776 = sor.u32 256, 56
    %1777 = vbcast.lane.b32.xlu0 %v1762, %s1776
    %v1778 = vpop.permute.xlu0 %1777
    %v1779 = vlaneseq
    %v1780 = vshrl.u32 %v1779, 7
    %v1781 = vsub.s32 6, %v1780
    %v1782 = vrot.slane %v1497, %v1781
    %s1784 = sor.u32 256, 32
    %1785 = vbcast.lane.b32.xlu0 %v1782, %s1784
    %v1786 = vpop.permute.xlu0 %1785
    %s1788 = sor.u32 256, 40
    %1789 = vbcast.lane.b32.xlu0 %v1782, %s1788
    %v1790 = vpop.permute.xlu0 %1789
    %s1792 = sor.u32 256, 48
    %1793 = vbcast.lane.b32.xlu0 %v1782, %s1792
    %v1794 = vpop.permute.xlu0 %1793
    %s1796 = sor.u32 256, 56
    %1797 = vbcast.lane.b32.xlu0 %v1782, %s1796
    %v1798 = vpop.permute.xlu0 %1797
    %v1799 = vlaneseq
    %v1800 = vshrl.u32 %v1799, 7
    %v1801 = vsub.s32 7, %v1800
    %v1802 = vrot.slane %v1497, %v1801
    %s1804 = sor.u32 256, 32
    %1805 = vbcast.lane.b32.xlu0 %v1802, %s1804
    %v1806 = vpop.permute.xlu0 %1805
    %s1808 = sor.u32 256, 40
    %1809 = vbcast.lane.b32.xlu0 %v1802, %s1808
    %v1810 = vpop.permute.xlu0 %1809
    %s1812 = sor.u32 256, 48
    %1813 = vbcast.lane.b32.xlu0 %v1802, %s1812
    %v1814 = vpop.permute.xlu0 %1813
    %s1816 = sor.u32 256, 56
    %1817 = vbcast.lane.b32.xlu0 %v1802, %s1816
    %v1818 = vpop.permute.xlu0 %1817
    %v1819 = vlaneseq
    %v1820 = vshrl.u32 %v1819, 7
    %v1821 = vsub.s32 0, %v1820
    %v1822 = vrot.slane %v1496, %v1821
    %s1824 = sor.u32 256, 32
    %1825 = vbcast.lane.b32.xlu0 %v1822, %s1824
    %v1826 = vpop.permute.xlu0 %1825
    %s1828 = sor.u32 256, 40
    %1829 = vbcast.lane.b32.xlu0 %v1822, %s1828
    %v1830 = vpop.permute.xlu0 %1829
    %s1832 = sor.u32 256, 48
    %1833 = vbcast.lane.b32.xlu0 %v1822, %s1832
    %v1834 = vpop.permute.xlu0 %1833
    %s1836 = sor.u32 256, 56
    %1837 = vbcast.lane.b32.xlu0 %v1822, %s1836
    %v1838 = vpop.permute.xlu0 %1837
    %v1839 = vlaneseq
    %v1840 = vshrl.u32 %v1839, 7
    %v1841 = vsub.s32 1, %v1840
    %v1842 = vrot.slane %v1496, %v1841
    %s1844 = sor.u32 256, 32
    %1845 = vbcast.lane.b32.xlu0 %v1842, %s1844
    %v1846 = vpop.permute.xlu0 %1845
    %s1848 = sor.u32 256, 40
    %1849 = vbcast.lane.b32.xlu0 %v1842, %s1848
    %v1850 = vpop.permute.xlu0 %1849
    %s1852 = sor.u32 256, 48
    %1853 = vbcast.lane.b32.xlu0 %v1842, %s1852
    %v1854 = vpop.permute.xlu0 %1853
    %s1856 = sor.u32 256, 56
    %1857 = vbcast.lane.b32.xlu0 %v1842, %s1856
    %v1858 = vpop.permute.xlu0 %1857
    %v1859 = vlaneseq
    %v1860 = vshrl.u32 %v1859, 7
    %v1861 = vsub.s32 2, %v1860
    %v1862 = vrot.slane %v1496, %v1861
    %s1864 = sor.u32 256, 32
    %1865 = vbcast.lane.b32.xlu0 %v1862, %s1864
    %v1866 = vpop.permute.xlu0 %1865
    %s1868 = sor.u32 256, 40
    %1869 = vbcast.lane.b32.xlu0 %v1862, %s1868
    %v1870 = vpop.permute.xlu0 %1869
    %s1872 = sor.u32 256, 48
    %1873 = vbcast.lane.b32.xlu0 %v1862, %s1872
    %v1874 = vpop.permute.xlu0 %1873
    %s1876 = sor.u32 256, 56
    %1877 = vbcast.lane.b32.xlu0 %v1862, %s1876
    %v1878 = vpop.permute.xlu0 %1877
    %v1879 = vlaneseq
    %v1880 = vshrl.u32 %v1879, 7
    %v1881 = vsub.s32 3, %v1880
    %v1882 = vrot.slane %v1496, %v1881
    %s1884 = sor.u32 256, 32
    %1885 = vbcast.lane.b32.xlu0 %v1882, %s1884
    %v1886 = vpop.permute.xlu0 %1885
    %s1888 = sor.u32 256, 40
    %1889 = vbcast.lane.b32.xlu0 %v1882, %s1888
    %v1890 = vpop.permute.xlu0 %1889
    %s1892 = sor.u32 256, 48
    %1893 = vbcast.lane.b32.xlu0 %v1882, %s1892
    %v1894 = vpop.permute.xlu0 %1893
    %s1896 = sor.u32 256, 56
    %1897 = vbcast.lane.b32.xlu0 %v1882, %s1896
    %v1898 = vpop.permute.xlu0 %1897
    %v1899 = vlaneseq
    %v1900 = vshrl.u32 %v1899, 7
    %v1901 = vsub.s32 4, %v1900
    %v1902 = vrot.slane %v1496, %v1901
    %s1904 = sor.u32 256, 32
    %1905 = vbcast.lane.b32.xlu0 %v1902, %s1904
    %v1906 = vpop.permute.xlu0 %1905
    %s1908 = sor.u32 256, 40
    %1909 = vbcast.lane.b32.xlu0 %v1902, %s1908
    %v1910 = vpop.permute.xlu0 %1909
    %s1912 = sor.u32 256, 48
    %1913 = vbcast.lane.b32.xlu0 %v1902, %s1912
    %v1914 = vpop.permute.xlu0 %1913
    %s1916 = sor.u32 256, 56
    %1917 = vbcast.lane.b32.xlu0 %v1902, %s1916
    %v1918 = vpop.permute.xlu0 %1917
    %v1919 = vlaneseq
    %v1920 = vshrl.u32 %v1919, 7
    %v1921 = vsub.s32 5, %v1920
    %v1922 = vrot.slane %v1496, %v1921
    %s1924 = sor.u32 256, 32
    %1925 = vbcast.lane.b32.xlu0 %v1922, %s1924
    %v1926 = vpop.permute.xlu0 %1925
    %s1928 = sor.u32 256, 40
    %1929 = vbcast.lane.b32.xlu0 %v1922, %s1928
    %v1930 = vpop.permute.xlu0 %1929
    %s1932 = sor.u32 256, 48
    %1933 = vbcast.lane.b32.xlu0 %v1922, %s1932
    %v1934 = vpop.permute.xlu0 %1933
    %s1936 = sor.u32 256, 56
    %1937 = vbcast.lane.b32.xlu0 %v1922, %s1936
    %v1938 = vpop.permute.xlu0 %1937
    %v1939 = vlaneseq
    %v1940 = vshrl.u32 %v1939, 7
    %v1941 = vsub.s32 6, %v1940
    %v1942 = vrot.slane %v1496, %v1941
    %s1944 = sor.u32 256, 32
    %1945 = vbcast.lane.b32.xlu0 %v1942, %s1944
    %v1946 = vpop.permute.xlu0 %1945
    %s1948 = sor.u32 256, 40
    %1949 = vbcast.lane.b32.xlu0 %v1942, %s1948
    %v1950 = vpop.permute.xlu0 %1949
    %s1952 = sor.u32 256, 48
    %1953 = vbcast.lane.b32.xlu0 %v1942, %s1952
    %v1954 = vpop.permute.xlu0 %1953
    %s1956 = sor.u32 256, 56
    %1957 = vbcast.lane.b32.xlu0 %v1942, %s1956
    %v1958 = vpop.permute.xlu0 %1957
    %v1959 = vlaneseq
    %v1960 = vshrl.u32 %v1959, 7
    %v1961 = vsub.s32 7, %v1960
    %v1962 = vrot.slane %v1496, %v1961
    %s1964 = sor.u32 256, 32
    %1965 = vbcast.lane.b32.xlu0 %v1962, %s1964
    %v1966 = vpop.permute.xlu0 %1965
    %s1968 = sor.u32 256, 40
    %1969 = vbcast.lane.b32.xlu0 %v1962, %s1968
    %v1970 = vpop.permute.xlu0 %1969
    %s1972 = sor.u32 256, 48
    %1973 = vbcast.lane.b32.xlu0 %v1962, %s1972
    %v1974 = vpop.permute.xlu0 %1973
    %s1976 = sor.u32 256, 56
    %1977 = vbcast.lane.b32.xlu0 %v1962, %s1976
    %v1978 = vpop.permute.xlu0 %1977
    %v1979 = vlaneseq
    %v1980 = vshrl.u32 %v1979, 7
    %v1981 = vsub.s32 0, %v1980
    %v1982 = vrot.slane %v1498, %v1981
    %s1984 = sor.u32 256, 32
    %1985 = vbcast.lane.b32.xlu0 %v1982, %s1984
    %v1986 = vpop.permute.xlu0 %1985
    %s1988 = sor.u32 256, 40
    %1989 = vbcast.lane.b32.xlu0 %v1982, %s1988
    %v1990 = vpop.permute.xlu0 %1989
    %s1992 = sor.u32 256, 48
    %1993 = vbcast.lane.b32.xlu0 %v1982, %s1992
    %v1994 = vpop.permute.xlu0 %1993
    %s1996 = sor.u32 256, 56
    %1997 = vbcast.lane.b32.xlu0 %v1982, %s1996
    %v1998 = vpop.permute.xlu0 %1997
    %v1999 = vlaneseq
    %v2000 = vshrl.u32 %v1999, 7
    %v2001 = vsub.s32 1, %v2000
    %v2002 = vrot.slane %v1498, %v2001
    %s2004 = sor.u32 256, 32
    %2005 = vbcast.lane.b32.xlu0 %v2002, %s2004
    %v2006 = vpop.permute.xlu0 %2005
    %s2008 = sor.u32 256, 40
    %2009 = vbcast.lane.b32.xlu0 %v2002, %s2008
    %v2010 = vpop.permute.xlu0 %2009
    %s2012 = sor.u32 256, 48
    %2013 = vbcast.lane.b32.xlu0 %v2002, %s2012
    %v2014 = vpop.permute.xlu0 %2013
    %s2016 = sor.u32 256, 56
    %2017 = vbcast.lane.b32.xlu0 %v2002, %s2016
    %v2018 = vpop.permute.xlu0 %2017
    %v2019 = vlaneseq
    %v2020 = vshrl.u32 %v2019, 7
    %v2021 = vsub.s32 2, %v2020
    %v2022 = vrot.slane %v1498, %v2021
    %s2024 = sor.u32 256, 32
    %2025 = vbcast.lane.b32.xlu0 %v2022, %s2024
    %v2026 = vpop.permute.xlu0 %2025
    %s2028 = sor.u32 256, 40
    %2029 = vbcast.lane.b32.xlu0 %v2022, %s2028
    %v2030 = vpop.permute.xlu0 %2029
    %s2032 = sor.u32 256, 48
    %2033 = vbcast.lane.b32.xlu0 %v2022, %s2032
    %v2034 = vpop.permute.xlu0 %2033
    %s2036 = sor.u32 256, 56
    %2037 = vbcast.lane.b32.xlu0 %v2022, %s2036
    %v2038 = vpop.permute.xlu0 %2037
    %v2039 = vlaneseq
    %v2040 = vshrl.u32 %v2039, 7
    %v2041 = vsub.s32 3, %v2040
    %v2042 = vrot.slane %v1498, %v2041
    %s2044 = sor.u32 256, 32
    %2045 = vbcast.lane.b32.xlu0 %v2042, %s2044
    %v2046 = vpop.permute.xlu0 %2045
    %s2048 = sor.u32 256, 40
    %2049 = vbcast.lane.b32.xlu0 %v2042, %s2048
    %v2050 = vpop.permute.xlu0 %2049
    %s2052 = sor.u32 256, 48
    %2053 = vbcast.lane.b32.xlu0 %v2042, %s2052
    %v2054 = vpop.permute.xlu0 %2053
    %s2056 = sor.u32 256, 56
    %2057 = vbcast.lane.b32.xlu0 %v2042, %s2056
    %v2058 = vpop.permute.xlu0 %2057
    %v2059 = vlaneseq
    %v2060 = vshrl.u32 %v2059, 7
    %v2061 = vsub.s32 4, %v2060
    %v2062 = vrot.slane %v1498, %v2061
    %s2064 = sor.u32 256, 32
    %2065 = vbcast.lane.b32.xlu0 %v2062, %s2064
    %v2066 = vpop.permute.xlu0 %2065
    %s2068 = sor.u32 256, 40
    %2069 = vbcast.lane.b32.xlu0 %v2062, %s2068
    %v2070 = vpop.permute.xlu0 %2069
    %s2072 = sor.u32 256, 48
    %2073 = vbcast.lane.b32.xlu0 %v2062, %s2072
    %v2074 = vpop.permute.xlu0 %2073
    %s2076 = sor.u32 256, 56
    %2077 = vbcast.lane.b32.xlu0 %v2062, %s2076
    %v2078 = vpop.permute.xlu0 %2077
    %v2079 = vlaneseq
    %v2080 = vshrl.u32 %v2079, 7
    %v2081 = vsub.s32 5, %v2080
    %v2082 = vrot.slane %v1498, %v2081
    %s2084 = sor.u32 256, 32
    %2085 = vbcast.lane.b32.xlu0 %v2082, %s2084
    %v2086 = vpop.permute.xlu0 %2085
    %s2088 = sor.u32 256, 40
    %2089 = vbcast.lane.b32.xlu0 %v2082, %s2088
    %v2090 = vpop.permute.xlu0 %2089
    %s2092 = sor.u32 256, 48
    %2093 = vbcast.lane.b32.xlu0 %v2082, %s2092
    %v2094 = vpop.permute.xlu0 %2093
    %s2096 = sor.u32 256, 56
    %2097 = vbcast.lane.b32.xlu0 %v2082, %s2096
    %v2098 = vpop.permute.xlu0 %2097
    %v2099 = vlaneseq
    %v2100 = vshrl.u32 %v2099, 7
    %v2101 = vsub.s32 6, %v2100
    %v2102 = vrot.slane %v1498, %v2101
    %s2104 = sor.u32 256, 32
    %2105 = vbcast.lane.b32.xlu0 %v2102, %s2104
    %v2106 = vpop.permute.xlu0 %2105
    %s2108 = sor.u32 256, 40
    %2109 = vbcast.lane.b32.xlu0 %v2102, %s2108
    %v2110 = vpop.permute.xlu0 %2109
    %s2112 = sor.u32 256, 48
    %2113 = vbcast.lane.b32.xlu0 %v2102, %s2112
    %v2114 = vpop.permute.xlu0 %2113
    %s2116 = sor.u32 256, 56
    %2117 = vbcast.lane.b32.xlu0 %v2102, %s2116
    %v2118 = vpop.permute.xlu0 %2117
    %v2119 = vlaneseq
    %v2120 = vshrl.u32 %v2119, 7
    %v2121 = vsub.s32 7, %v2120
    %v2122 = vrot.slane %v1498, %v2121
    %s2124 = sor.u32 256, 32
    %2125 = vbcast.lane.b32.xlu0 %v2122, %s2124
    %v2126 = vpop.permute.xlu0 %2125
    %s2128 = sor.u32 256, 40
    %2129 = vbcast.lane.b32.xlu0 %v2122, %s2128
    %v2130 = vpop.permute.xlu0 %2129
    %s2132 = sor.u32 256, 48
    %2133 = vbcast.lane.b32.xlu0 %v2122, %s2132
    %v2134 = vpop.permute.xlu0 %2133
    %s2136 = sor.u32 256, 56
    %2137 = vbcast.lane.b32.xlu0 %v2122, %s2136
    %v2138 = vpop.permute.xlu0 %2137
    %v2139 = vsel %vm665, %v1506, %v1666
    %v2140 = vsel %vm665, %v1510, %v1670
    %v2141 = vsel %vm665, %v1514, %v1674
    %v2142 = vsel %vm665, %v1518, %v1678
    %v2143 = vsel %vm665, %v1526, %v1686
    %v2144 = vsel %vm665, %v1530, %v1690
    %v2145 = vsel %vm665, %v1534, %v1694
    %v2146 = vsel %vm665, %v1538, %v1698
    %v2147 = vsel %vm665, %v1546, %v1706
    %v2148 = vsel %vm665, %v1550, %v1710
    %v2149 = vsel %vm665, %v1554, %v1714
    %v2150 = vsel %vm665, %v1558, %v1718
    %v2151 = vsel %vm665, %v1566, %v1726
    %v2152 = vsel %vm665, %v1570, %v1730
    %v2153 = vsel %vm665, %v1574, %v1734
    %v2154 = vsel %vm665, %v1578, %v1738
    %v2155 = vsel %vm665, %v1586, %v1746
    %v2156 = vsel %vm665, %v1590, %v1750
    %v2157 = vsel %vm665, %v1594, %v1754
    %v2158 = vsel %vm665, %v1598, %v1758
    %v2159 = vsel %vm665, %v1606, %v1766
    %v2160 = vsel %vm665, %v1610, %v1770
    %v2161 = vsel %vm665, %v1614, %v1774
    %v2162 = vsel %vm665, %v1618, %v1778
    %v2163 = vsel %vm665, %v1626, %v1786
    %v2164 = vsel %vm665, %v1630, %v1790
    %v2165 = vsel %vm665, %v1634, %v1794
    %v2166 = vsel %vm665, %v1638, %v1798
    %v2167 = vsel %vm665, %v1646, %v1806
    %v2168 = vsel %vm665, %v1650, %v1810
    %v2169 = vsel %vm665, %v1654, %v1814
    %v2170 = vsel %vm665, %v1658, %v1818
    %v2171 = vsel %vm698, %v2139, %v1826
    %v2172 = vsel %vm698, %v2140, %v1830
    %v2173 = vsel %vm698, %v2141, %v1834
    %v2174 = vsel %vm698, %v2142, %v1838
    %v2175 = vsel %vm698, %v2143, %v1846
    %v2176 = vsel %vm698, %v2144, %v1850
    %v2177 = vsel %vm698, %v2145, %v1854
    %v2178 = vsel %vm698, %v2146, %v1858
    %v2179 = vsel %vm698, %v2147, %v1866
    %v2180 = vsel %vm698, %v2148, %v1870
    %v2181 = vsel %vm698, %v2149, %v1874
    %v2182 = vsel %vm698, %v2150, %v1878
    %v2183 = vsel %vm698, %v2151, %v1886
    %v2184 = vsel %vm698, %v2152, %v1890
    %v2185 = vsel %vm698, %v2153, %v1894
    %v2186 = vsel %vm698, %v2154, %v1898
    %v2187 = vsel %vm698, %v2155, %v1906
    %v2188 = vsel %vm698, %v2156, %v1910
    %v2189 = vsel %vm698, %v2157, %v1914
    %v2190 = vsel %vm698, %v2158, %v1918
    %v2191 = vsel %vm698, %v2159, %v1926
    %v2192 = vsel %vm698, %v2160, %v1930
    %v2193 = vsel %vm698, %v2161, %v1934
    %v2194 = vsel %vm698, %v2162, %v1938
    %v2195 = vsel %vm698, %v2163, %v1946
    %v2196 = vsel %vm698, %v2164, %v1950
    %v2197 = vsel %vm698, %v2165, %v1954
    %v2198 = vsel %vm698, %v2166, %v1958
    %v2199 = vsel %vm698, %v2167, %v1966
    %v2200 = vsel %vm698, %v2168, %v1970
    %v2201 = vsel %vm698, %v2169, %v1974
    %v2202 = vsel %vm698, %v2170, %v1978
    %v2203 = vsel %vm731, %v2171, %v1986
    %v2204 = vsel %vm731, %v2172, %v1990
    %v2205 = vsel %vm731, %v2173, %v1994
    %v2206 = vsel %vm731, %v2174, %v1998
    %v2207 = vsel %vm731, %v2175, %v2006
    %v2208 = vsel %vm731, %v2176, %v2010
    %v2209 = vsel %vm731, %v2177, %v2014
    %v2210 = vsel %vm731, %v2178, %v2018
    %v2211 = vsel %vm731, %v2179, %v2026
    %v2212 = vsel %vm731, %v2180, %v2030
    %v2213 = vsel %vm731, %v2181, %v2034
    %v2214 = vsel %vm731, %v2182, %v2038
    %v2215 = vsel %vm731, %v2183, %v2046
    %v2216 = vsel %vm731, %v2184, %v2050
    %v2217 = vsel %vm731, %v2185, %v2054
    %v2218 = vsel %vm731, %v2186, %v2058
    %v2219 = vsel %vm731, %v2187, %v2066
    %v2220 = vsel %vm731, %v2188, %v2070
    %v2221 = vsel %vm731, %v2189, %v2074
    %v2222 = vsel %vm731, %v2190, %v2078
    %v2223 = vsel %vm731, %v2191, %v2086
    %v2224 = vsel %vm731, %v2192, %v2090
    %v2225 = vsel %vm731, %v2193, %v2094
    %v2226 = vsel %vm731, %v2194, %v2098
    %v2227 = vsel %vm731, %v2195, %v2106
    %v2228 = vsel %vm731, %v2196, %v2110
    %v2229 = vsel %vm731, %v2197, %v2114
    %v2230 = vsel %vm731, %v2198, %v2118
    %v2231 = vsel %vm731, %v2199, %v2126
    %v2232 = vsel %vm731, %v2200, %v2130
    %v2233 = vsel %vm731, %v2201, %v2134
    %v2234 = vsel %vm731, %v2202, %v2138
    %v2235 = vcombine.low %v2203, %v2211
    %v2236 = vcombine.high %v2203, %v2211
    %v2238 = vunpack.c.l.s4 1983009808
    %v2239 = vunpack.c.0.s8 %v2238
    %v2240 = vlaneseq
    %v2241 = vshrl.u32 %v2240, 7
    %v2242 = vsub.s32 %v2239, %v2241
    %v2243 = vrot.slane %v2235, %v2242
    %v2245 = vunpack.c.l.s4 1983009808
    %v2246 = vunpack.c.0.s8 %v2245
    %v2247 = vlaneseq
    %v2248 = vshrl.u32 %v2247, 7
    %v2249 = vsub.s32 %v2246, %v2248
    %v2250 = vrot.slane %v2236, %v2249
    %v2251 = vcombine.low %v2207, %v2215
    %v2252 = vcombine.high %v2207, %v2215
    %v2254 = vunpack.c.l.s4 1983009808
    %v2255 = vunpack.c.0.s8 %v2254
    %v2256 = vlaneseq
    %v2257 = vshrl.u32 %v2256, 7
    %v2258 = vsub.s32 %v2255, %v2257
    %v2259 = vrot.slane %v2251, %v2258
    %v2261 = vunpack.c.l.s4 1983009808
    %v2262 = vunpack.c.0.s8 %v2261
    %v2263 = vlaneseq
    %v2264 = vshrl.u32 %v2263, 7
    %v2265 = vsub.s32 %v2262, %v2264
    %v2266 = vrot.slane %v2252, %v2265
    %v2267 = vcombine.low %v2219, %v2227
    %v2268 = vcombine.high %v2219, %v2227
    %v2270 = vunpack.c.l.s4 1983009808
    %v2271 = vunpack.c.0.s8 %v2270
    %v2272 = vlaneseq
    %v2273 = vshrl.u32 %v2272, 7
    %v2274 = vsub.s32 %v2271, %v2273
    %v2275 = vrot.slane %v2267, %v2274
    %v2277 = vunpack.c.l.s4 1983009808
    %v2278 = vunpack.c.0.s8 %v2277
    %v2279 = vlaneseq
    %v2280 = vshrl.u32 %v2279, 7
    %v2281 = vsub.s32 %v2278, %v2280
    %v2282 = vrot.slane %v2268, %v2281
    %v2283 = vcombine.low %v2223, %v2231
    %v2284 = vcombine.high %v2223, %v2231
    %v2286 = vunpack.c.l.s4 1983009808
    %v2287 = vunpack.c.0.s8 %v2286
    %v2288 = vlaneseq
    %v2289 = vshrl.u32 %v2288, 7
    %v2290 = vsub.s32 %v2287, %v2289
    %v2291 = vrot.slane %v2283, %v2290
    %v2293 = vunpack.c.l.s4 1983009808
    %v2294 = vunpack.c.0.s8 %v2293
    %v2295 = vlaneseq
    %v2296 = vshrl.u32 %v2295, 7
    %v2297 = vsub.s32 %v2294, %v2296
    %v2298 = vrot.slane %v2284, %v2297
    %v2299 = vcombine.low %v2243, %v2259
    %v2300 = vcombine.high %v2243, %v2259
    %v2302 = vunpack.c.l.s4 1934713408
    %v2303 = vunpack.c.0.s8 %v2302
    %v2304 = vlaneseq
    %v2305 = vshrl.u32 %v2304, 7
    %v2306 = vsub.s32 %v2303, %v2305
    %v2307 = vrot.slane %v2299, %v2306
    %v2309 = vunpack.c.l.s4 1934713408
    %v2310 = vunpack.c.0.s8 %v2309
    %v2311 = vlaneseq
    %v2312 = vshrl.u32 %v2311, 7
    %v2313 = vsub.s32 %v2310, %v2312
    %v2314 = vrot.slane %v2300, %v2313
    %v2315 = vcombine.low %v2250, %v2266
    %v2316 = vcombine.high %v2250, %v2266
    %v2318 = vunpack.c.l.s4 1934713408
    %v2319 = vunpack.c.0.s8 %v2318
    %v2320 = vlaneseq
    %v2321 = vshrl.u32 %v2320, 7
    %v2322 = vsub.s32 %v2319, %v2321
    %v2323 = vrot.slane %v2315, %v2322
    %v2325 = vunpack.c.l.s4 1934713408
    %v2326 = vunpack.c.0.s8 %v2325
    %v2327 = vlaneseq
    %v2328 = vshrl.u32 %v2327, 7
    %v2329 = vsub.s32 %v2326, %v2328
    %v2330 = vrot.slane %v2316, %v2329
    %v2331 = vcombine.low %v2275, %v2291
    %v2332 = vcombine.high %v2275, %v2291
    %v2334 = vunpack.c.l.s4 1934713408
    %v2335 = vunpack.c.0.s8 %v2334
    %v2336 = vlaneseq
    %v2337 = vshrl.u32 %v2336, 7
    %v2338 = vsub.s32 %v2335, %v2337
    %v2339 = vrot.slane %v2331, %v2338
    %v2341 = vunpack.c.l.s4 1934713408
    %v2342 = vunpack.c.0.s8 %v2341
    %v2343 = vlaneseq
    %v2344 = vshrl.u32 %v2343, 7
    %v2345 = vsub.s32 %v2342, %v2344
    %v2346 = vrot.slane %v2332, %v2345
    %v2347 = vcombine.low %v2282, %v2298
    %v2348 = vcombine.high %v2282, %v2298
    %v2350 = vunpack.c.l.s4 1934713408
    %v2351 = vunpack.c.0.s8 %v2350
    %v2352 = vlaneseq
    %v2353 = vshrl.u32 %v2352, 7
    %v2354 = vsub.s32 %v2351, %v2353
    %v2355 = vrot.slane %v2347, %v2354
    %v2357 = vunpack.c.l.s4 1934713408
    %v2358 = vunpack.c.0.s8 %v2357
    %v2359 = vlaneseq
    %v2360 = vshrl.u32 %v2359, 7
    %v2361 = vsub.s32 %v2358, %v2360
    %v2362 = vrot.slane %v2348, %v2361
    %v2363 = vcombine.low %v2307, %v2339
    %v2364 = vcombine.high %v2307, %v2339
    %v2365 = vcombine.low %v2314, %v2346
    %v2366 = vcombine.high %v2314, %v2346
    %v2367 = vcombine.low %v2323, %v2355
    %v2368 = vcombine.high %v2323, %v2355
    %v2369 = vcombine.low %v2330, %v2362
    %v2370 = vcombine.high %v2330, %v2362
    %v2371 = vcombine.low %v2204, %v2212
    %v2372 = vcombine.high %v2204, %v2212
    %v2374 = vunpack.c.l.s4 1983009808
    %v2375 = vunpack.c.0.s8 %v2374
    %v2376 = vlaneseq
    %v2377 = vshrl.u32 %v2376, 7
    %v2378 = vsub.s32 %v2375, %v2377
    %v2379 = vrot.slane %v2371, %v2378
    %v2381 = vunpack.c.l.s4 1983009808
    %v2382 = vunpack.c.0.s8 %v2381
    %v2383 = vlaneseq
    %v2384 = vshrl.u32 %v2383, 7
    %v2385 = vsub.s32 %v2382, %v2384
    %v2386 = vrot.slane %v2372, %v2385
    %v2387 = vcombine.low %v2208, %v2216
    %v2388 = vcombine.high %v2208, %v2216
    %v2390 = vunpack.c.l.s4 1983009808
    %v2391 = vunpack.c.0.s8 %v2390
    %v2392 = vlaneseq
    %v2393 = vshrl.u32 %v2392, 7
    %v2394 = vsub.s32 %v2391, %v2393
    %v2395 = vrot.slane %v2387, %v2394
    %v2397 = vunpack.c.l.s4 1983009808
    %v2398 = vunpack.c.0.s8 %v2397
    %v2399 = vlaneseq
    %v2400 = vshrl.u32 %v2399, 7
    %v2401 = vsub.s32 %v2398, %v2400
    %v2402 = vrot.slane %v2388, %v2401
    %v2403 = vcombine.low %v2220, %v2228
    %v2404 = vcombine.high %v2220, %v2228
    %v2406 = vunpack.c.l.s4 1983009808
    %v2407 = vunpack.c.0.s8 %v2406
    %v2408 = vlaneseq
    %v2409 = vshrl.u32 %v2408, 7
    %v2410 = vsub.s32 %v2407, %v2409
    %v2411 = vrot.slane %v2403, %v2410
    %v2413 = vunpack.c.l.s4 1983009808
    %v2414 = vunpack.c.0.s8 %v2413
    %v2415 = vlaneseq
    %v2416 = vshrl.u32 %v2415, 7
    %v2417 = vsub.s32 %v2414, %v2416
    %v2418 = vrot.slane %v2404, %v2417
    %v2419 = vcombine.low %v2224, %v2232
    %v2420 = vcombine.high %v2224, %v2232
    %v2422 = vunpack.c.l.s4 1983009808
    %v2423 = vunpack.c.0.s8 %v2422
    %v2424 = vlaneseq
    %v2425 = vshrl.u32 %v2424, 7
    %v2426 = vsub.s32 %v2423, %v2425
    %v2427 = vrot.slane %v2419, %v2426
    %v2429 = vunpack.c.l.s4 1983009808
    %v2430 = vunpack.c.0.s8 %v2429
    %v2431 = vlaneseq
    %v2432 = vshrl.u32 %v2431, 7
    %v2433 = vsub.s32 %v2430, %v2432
    %v2434 = vrot.slane %v2420, %v2433
    %v2435 = vcombine.low %v2379, %v2395
    %v2436 = vcombine.high %v2379, %v2395
    %v2438 = vunpack.c.l.s4 1934713408
    %v2439 = vunpack.c.0.s8 %v2438
    %v2440 = vlaneseq
    %v2441 = vshrl.u32 %v2440, 7
    %v2442 = vsub.s32 %v2439, %v2441
    %v2443 = vrot.slane %v2435, %v2442
    %v2445 = vunpack.c.l.s4 1934713408
    %v2446 = vunpack.c.0.s8 %v2445
    %v2447 = vlaneseq
    %v2448 = vshrl.u32 %v2447, 7
    %v2449 = vsub.s32 %v2446, %v2448
    %v2450 = vrot.slane %v2436, %v2449
    %v2451 = vcombine.low %v2386, %v2402
    %v2452 = vcombine.high %v2386, %v2402
    %v2454 = vunpack.c.l.s4 1934713408
    %v2455 = vunpack.c.0.s8 %v2454
    %v2456 = vlaneseq
    %v2457 = vshrl.u32 %v2456, 7
    %v2458 = vsub.s32 %v2455, %v2457
    %v2459 = vrot.slane %v2451, %v2458
    %v2461 = vunpack.c.l.s4 1934713408
    %v2462 = vunpack.c.0.s8 %v2461
    %v2463 = vlaneseq
    %v2464 = vshrl.u32 %v2463, 7
    %v2465 = vsub.s32 %v2462, %v2464
    %v2466 = vrot.slane %v2452, %v2465
    %v2467 = vcombine.low %v2411, %v2427
    %v2468 = vcombine.high %v2411, %v2427
    %v2470 = vunpack.c.l.s4 1934713408
    %v2471 = vunpack.c.0.s8 %v2470
    %v2472 = vlaneseq
    %v2473 = vshrl.u32 %v2472, 7
    %v2474 = vsub.s32 %v2471, %v2473
    %v2475 = vrot.slane %v2467, %v2474
    %v2477 = vunpack.c.l.s4 1934713408
    %v2478 = vunpack.c.0.s8 %v2477
    %v2479 = vlaneseq
    %v2480 = vshrl.u32 %v2479, 7
    %v2481 = vsub.s32 %v2478, %v2480
    %v2482 = vrot.slane %v2468, %v2481
    %v2483 = vcombine.low %v2418, %v2434
    %v2484 = vcombine.high %v2418, %v2434
    %v2486 = vunpack.c.l.s4 1934713408
    %v2487 = vunpack.c.0.s8 %v2486
    %v2488 = vlaneseq
    %v2489 = vshrl.u32 %v2488, 7
    %v2490 = vsub.s32 %v2487, %v2489
    %v2491 = vrot.slane %v2483, %v2490
    %v2493 = vunpack.c.l.s4 1934713408
    %v2494 = vunpack.c.0.s8 %v2493
    %v2495 = vlaneseq
    %v2496 = vshrl.u32 %v2495, 7
    %v2497 = vsub.s32 %v2494, %v2496
    %v2498 = vrot.slane %v2484, %v2497
    %v2499 = vcombine.low %v2443, %v2475
    %v2500 = vcombine.high %v2443, %v2475
    %v2501 = vcombine.low %v2450, %v2482
    %v2502 = vcombine.high %v2450, %v2482
    %v2503 = vcombine.low %v2459, %v2491
    %v2504 = vcombine.high %v2459, %v2491
    %v2505 = vcombine.low %v2466, %v2498
    %v2506 = vcombine.high %v2466, %v2498
    %v2507 = vcombine.low %v2205, %v2213
    %v2508 = vcombine.high %v2205, %v2213
    %v2510 = vunpack.c.l.s4 1983009808
    %v2511 = vunpack.c.0.s8 %v2510
    %v2512 = vlaneseq
    %v2513 = vshrl.u32 %v2512, 7
    %v2514 = vsub.s32 %v2511, %v2513
    %v2515 = vrot.slane %v2507, %v2514
    %v2517 = vunpack.c.l.s4 1983009808
    %v2518 = vunpack.c.0.s8 %v2517
    %v2519 = vlaneseq
    %v2520 = vshrl.u32 %v2519, 7
    %v2521 = vsub.s32 %v2518, %v2520
    %v2522 = vrot.slane %v2508, %v2521
    %v2523 = vcombine.low %v2209, %v2217
    %v2524 = vcombine.high %v2209, %v2217
    %v2526 = vunpack.c.l.s4 1983009808
    %v2527 = vunpack.c.0.s8 %v2526
    %v2528 = vlaneseq
    %v2529 = vshrl.u32 %v2528, 7
    %v2530 = vsub.s32 %v2527, %v2529
    %v2531 = vrot.slane %v2523, %v2530
    %v2533 = vunpack.c.l.s4 1983009808
    %v2534 = vunpack.c.0.s8 %v2533
    %v2535 = vlaneseq
    %v2536 = vshrl.u32 %v2535, 7
    %v2537 = vsub.s32 %v2534, %v2536
    %v2538 = vrot.slane %v2524, %v2537
    %v2539 = vcombine.low %v2221, %v2229
    %v2540 = vcombine.high %v2221, %v2229
    %v2542 = vunpack.c.l.s4 1983009808
    %v2543 = vunpack.c.0.s8 %v2542
    %v2544 = vlaneseq
    %v2545 = vshrl.u32 %v2544, 7
    %v2546 = vsub.s32 %v2543, %v2545
    %v2547 = vrot.slane %v2539, %v2546
    %v2549 = vunpack.c.l.s4 1983009808
    %v2550 = vunpack.c.0.s8 %v2549
    %v2551 = vlaneseq
    %v2552 = vshrl.u32 %v2551, 7
    %v2553 = vsub.s32 %v2550, %v2552
    %v2554 = vrot.slane %v2540, %v2553
    %v2555 = vcombine.low %v2225, %v2233
    %v2556 = vcombine.high %v2225, %v2233
    %v2558 = vunpack.c.l.s4 1983009808
    %v2559 = vunpack.c.0.s8 %v2558
    %v2560 = vlaneseq
    %v2561 = vshrl.u32 %v2560, 7
    %v2562 = vsub.s32 %v2559, %v2561
    %v2563 = vrot.slane %v2555, %v2562
    %v2565 = vunpack.c.l.s4 1983009808
    %v2566 = vunpack.c.0.s8 %v2565
    %v2567 = vlaneseq
    %v2568 = vshrl.u32 %v2567, 7
    %v2569 = vsub.s32 %v2566, %v2568
    %v2570 = vrot.slane %v2556, %v2569
    %v2571 = vcombine.low %v2515, %v2531
    %v2572 = vcombine.high %v2515, %v2531
    %v2574 = vunpack.c.l.s4 1934713408
    %v2575 = vunpack.c.0.s8 %v2574
    %v2576 = vlaneseq
    %v2577 = vshrl.u32 %v2576, 7
    %v2578 = vsub.s32 %v2575, %v2577
    %v2579 = vrot.slane %v2571, %v2578
    %v2581 = vunpack.c.l.s4 1934713408
    %v2582 = vunpack.c.0.s8 %v2581
    %v2583 = vlaneseq
    %v2584 = vshrl.u32 %v2583, 7
    %v2585 = vsub.s32 %v2582, %v2584
    %v2586 = vrot.slane %v2572, %v2585
    %v2587 = vcombine.low %v2522, %v2538
    %v2588 = vcombine.high %v2522, %v2538
    %v2590 = vunpack.c.l.s4 1934713408
    %v2591 = vunpack.c.0.s8 %v2590
    %v2592 = vlaneseq
    %v2593 = vshrl.u32 %v2592, 7
    %v2594 = vsub.s32 %v2591, %v2593
    %v2595 = vrot.slane %v2587, %v2594
    %v2597 = vunpack.c.l.s4 1934713408
    %v2598 = vunpack.c.0.s8 %v2597
    %v2599 = vlaneseq
    %v2600 = vshrl.u32 %v2599, 7
    %v2601 = vsub.s32 %v2598, %v2600
    %v2602 = vrot.slane %v2588, %v2601
    %v2603 = vcombine.low %v2547, %v2563
    %v2604 = vcombine.high %v2547, %v2563
    %v2606 = vunpack.c.l.s4 1934713408
    %v2607 = vunpack.c.0.s8 %v2606
    %v2608 = vlaneseq
    %v2609 = vshrl.u32 %v2608, 7
    %v2610 = vsub.s32 %v2607, %v2609
    %v2611 = vrot.slane %v2603, %v2610
    %v2613 = vunpack.c.l.s4 1934713408
    %v2614 = vunpack.c.0.s8 %v2613
    %v2615 = vlaneseq
    %v2616 = vshrl.u32 %v2615, 7
    %v2617 = vsub.s32 %v2614, %v2616
    %v2618 = vrot.slane %v2604, %v2617
    %v2619 = vcombine.low %v2554, %v2570
    %v2620 = vcombine.high %v2554, %v2570
    %v2622 = vunpack.c.l.s4 1934713408
    %v2623 = vunpack.c.0.s8 %v2622
    %v2624 = vlaneseq
    %v2625 = vshrl.u32 %v2624, 7
    %v2626 = vsub.s32 %v2623, %v2625
    %v2627 = vrot.slane %v2619, %v2626
    %v2629 = vunpack.c.l.s4 1934713408
    %v2630 = vunpack.c.0.s8 %v2629
    %v2631 = vlaneseq
    %v2632 = vshrl.u32 %v2631, 7
    %v2633 = vsub.s32 %v2630, %v2632
    %v2634 = vrot.slane %v2620, %v2633
    %v2635 = vcombine.low %v2579, %v2611
    %v2636 = vcombine.high %v2579, %v2611
    %v2637 = vcombine.low %v2586, %v2618
    %v2638 = vcombine.high %v2586, %v2618
    %v2639 = vcombine.low %v2595, %v2627
    %v2640 = vcombine.high %v2595, %v2627
    %v2641 = vcombine.low %v2602, %v2634
    %v2642 = vcombine.high %v2602, %v2634
    %v2643 = vcombine.low %v2206, %v2214
    %v2644 = vcombine.high %v2206, %v2214
    %v2646 = vunpack.c.l.s4 1983009808
    %v2647 = vunpack.c.0.s8 %v2646
    %v2648 = vlaneseq
    %v2649 = vshrl.u32 %v2648, 7
    %v2650 = vsub.s32 %v2647, %v2649
    %v2651 = vrot.slane %v2643, %v2650
    %v2653 = vunpack.c.l.s4 1983009808
    %v2654 = vunpack.c.0.s8 %v2653
    %v2655 = vlaneseq
    %v2656 = vshrl.u32 %v2655, 7
    %v2657 = vsub.s32 %v2654, %v2656
    %v2658 = vrot.slane %v2644, %v2657
    %v2659 = vcombine.low %v2210, %v2218
    %v2660 = vcombine.high %v2210, %v2218
    %v2662 = vunpack.c.l.s4 1983009808
    %v2663 = vunpack.c.0.s8 %v2662
    %v2664 = vlaneseq
    %v2665 = vshrl.u32 %v2664, 7
    %v2666 = vsub.s32 %v2663, %v2665
    %v2667 = vrot.slane %v2659, %v2666
    %v2669 = vunpack.c.l.s4 1983009808
    %v2670 = vunpack.c.0.s8 %v2669
    %v2671 = vlaneseq
    %v2672 = vshrl.u32 %v2671, 7
    %v2673 = vsub.s32 %v2670, %v2672
    %v2674 = vrot.slane %v2660, %v2673
    %v2675 = vcombine.low %v2222, %v2230
    %v2676 = vcombine.high %v2222, %v2230
    %v2678 = vunpack.c.l.s4 1983009808
    %v2679 = vunpack.c.0.s8 %v2678
    %v2680 = vlaneseq
    %v2681 = vshrl.u32 %v2680, 7
    %v2682 = vsub.s32 %v2679, %v2681
    %v2683 = vrot.slane %v2675, %v2682
    %v2685 = vunpack.c.l.s4 1983009808
    %v2686 = vunpack.c.0.s8 %v2685
    %v2687 = vlaneseq
    %v2688 = vshrl.u32 %v2687, 7
    %v2689 = vsub.s32 %v2686, %v2688
    %v2690 = vrot.slane %v2676, %v2689
    %v2691 = vcombine.low %v2226, %v2234
    %v2692 = vcombine.high %v2226, %v2234
    %v2694 = vunpack.c.l.s4 1983009808
    %v2695 = vunpack.c.0.s8 %v2694
    %v2696 = vlaneseq
    %v2697 = vshrl.u32 %v2696, 7
    %v2698 = vsub.s32 %v2695, %v2697
    %v2699 = vrot.slane %v2691, %v2698
    %v2701 = vunpack.c.l.s4 1983009808
    %v2702 = vunpack.c.0.s8 %v2701
    %v2703 = vlaneseq
    %v2704 = vshrl.u32 %v2703, 7
    %v2705 = vsub.s32 %v2702, %v2704
    %v2706 = vrot.slane %v2692, %v2705
    %v2707 = vcombine.low %v2651, %v2667
    %v2708 = vcombine.high %v2651, %v2667
    %v2710 = vunpack.c.l.s4 1934713408
    %v2711 = vunpack.c.0.s8 %v2710
    %v2712 = vlaneseq
    %v2713 = vshrl.u32 %v2712, 7
    %v2714 = vsub.s32 %v2711, %v2713
    %v2715 = vrot.slane %v2707, %v2714
    %v2717 = vunpack.c.l.s4 1934713408
    %v2718 = vunpack.c.0.s8 %v2717
    %v2719 = vlaneseq
    %v2720 = vshrl.u32 %v2719, 7
    %v2721 = vsub.s32 %v2718, %v2720
    %v2722 = vrot.slane %v2708, %v2721
    %v2723 = vcombine.low %v2658, %v2674
    %v2724 = vcombine.high %v2658, %v2674
    %v2726 = vunpack.c.l.s4 1934713408
    %v2727 = vunpack.c.0.s8 %v2726
    %v2728 = vlaneseq
    %v2729 = vshrl.u32 %v2728, 7
    %v2730 = vsub.s32 %v2727, %v2729
    %v2731 = vrot.slane %v2723, %v2730
    %v2733 = vunpack.c.l.s4 1934713408
    %v2734 = vunpack.c.0.s8 %v2733
    %v2735 = vlaneseq
    %v2736 = vshrl.u32 %v2735, 7
    %v2737 = vsub.s32 %v2734, %v2736
    %v2738 = vrot.slane %v2724, %v2737
    %v2739 = vcombine.low %v2683, %v2699
    %v2740 = vcombine.high %v2683, %v2699
    %v2742 = vunpack.c.l.s4 1934713408
    %v2743 = vunpack.c.0.s8 %v2742
    %v2744 = vlaneseq
    %v2745 = vshrl.u32 %v2744, 7
    %v2746 = vsub.s32 %v2743, %v2745
    %v2747 = vrot.slane %v2739, %v2746
    %v2749 = vunpack.c.l.s4 1934713408
    %v2750 = vunpack.c.0.s8 %v2749
    %v2751 = vlaneseq
    %v2752 = vshrl.u32 %v2751, 7
    %v2753 = vsub.s32 %v2750, %v2752
    %v2754 = vrot.slane %v2740, %v2753
    %v2755 = vcombine.low %v2690, %v2706
    %v2756 = vcombine.high %v2690, %v2706
    %v2758 = vunpack.c.l.s4 1934713408
    %v2759 = vunpack.c.0.s8 %v2758
    %v2760 = vlaneseq
    %v2761 = vshrl.u32 %v2760, 7
    %v2762 = vsub.s32 %v2759, %v2761
    %v2763 = vrot.slane %v2755, %v2762
    %v2765 = vunpack.c.l.s4 1934713408
    %v2766 = vunpack.c.0.s8 %v2765
    %v2767 = vlaneseq
    %v2768 = vshrl.u32 %v2767, 7
    %v2769 = vsub.s32 %v2766, %v2768
    %v2770 = vrot.slane %v2756, %v2769
    %v2771 = vcombine.low %v2715, %v2747
    %v2772 = vcombine.high %v2715, %v2747
    %v2773 = vcombine.low %v2722, %v2754
    %v2774 = vcombine.high %v2722, %v2754
    %v2775 = vcombine.low %v2731, %v2763
    %v2776 = vcombine.high %v2731, %v2763
    %v2777 = vcombine.low %v2738, %v2770
    %v2778 = vcombine.high %v2738, %v2770
    %2780 = vrot.lane.b32.xlu0 %v2364, 4
    %v2781 = vpop.permute.xlu0 %2780
    %2784 = vrot.lane.b32.xlu0 %v2365, 8
    %v2785 = vpop.permute.xlu0 %2784
    %2788 = vrot.lane.b32.xlu0 %v2366, 12
    %v2789 = vpop.permute.xlu0 %2788
    %2792 = vrot.lane.b32.xlu0 %v2367, 16
    %v2793 = vpop.permute.xlu0 %2792
    %2796 = vrot.lane.b32.xlu0 %v2368, 20
    %v2797 = vpop.permute.xlu0 %2796
    %2800 = vrot.lane.b32.xlu0 %v2369, 24
    %v2801 = vpop.permute.xlu0 %2800
    %2804 = vrot.lane.b32.xlu0 %v2370, 28
    %v2805 = vpop.permute.xlu0 %2804
    %2808 = vrot.lane.b32.xlu0 %v2499, 32
    %v2809 = vpop.permute.xlu0 %2808
    %2812 = vrot.lane.b32.xlu0 %v2500, 36
    %v2813 = vpop.permute.xlu0 %2812
    %2816 = vrot.lane.b32.xlu0 %v2501, 40
    %v2817 = vpop.permute.xlu0 %2816
    %2820 = vrot.lane.b32.xlu0 %v2502, 44
    %v2821 = vpop.permute.xlu0 %2820
    %2824 = vrot.lane.b32.xlu0 %v2503, 48
    %v2825 = vpop.permute.xlu0 %2824
    %2828 = vrot.lane.b32.xlu0 %v2504, 52
    %v2829 = vpop.permute.xlu0 %2828
    %2832 = vrot.lane.b32.xlu0 %v2505, 56
    %v2833 = vpop.permute.xlu0 %2832
    %2836 = vrot.lane.b32.xlu0 %v2506, 60
    %v2837 = vpop.permute.xlu0 %2836
    %2840 = vrot.lane.b32.xlu0 %v2635, 64
    %v2841 = vpop.permute.xlu0 %2840
    %2844 = vrot.lane.b32.xlu0 %v2636, 68
    %v2845 = vpop.permute.xlu0 %2844
    %2848 = vrot.lane.b32.xlu0 %v2637, 72
    %v2849 = vpop.permute.xlu0 %2848
    %2852 = vrot.lane.b32.xlu0 %v2638, 76
    %v2853 = vpop.permute.xlu0 %2852
    %2856 = vrot.lane.b32.xlu0 %v2639, 80
    %v2857 = vpop.permute.xlu0 %2856
    %2860 = vrot.lane.b32.xlu0 %v2640, 84
    %v2861 = vpop.permute.xlu0 %2860
    %2864 = vrot.lane.b32.xlu0 %v2641, 88
    %v2865 = vpop.permute.xlu0 %2864
    %2868 = vrot.lane.b32.xlu0 %v2642, 92
    %v2869 = vpop.permute.xlu0 %2868
    %2872 = vrot.lane.b32.xlu0 %v2771, 96
    %v2873 = vpop.permute.xlu0 %2872
    %2876 = vrot.lane.b32.xlu0 %v2772, 100
    %v2877 = vpop.permute.xlu0 %2876
    %2880 = vrot.lane.b32.xlu0 %v2773, 104
    %v2881 = vpop.permute.xlu0 %2880
    %2884 = vrot.lane.b32.xlu0 %v2774, 108
    %v2885 = vpop.permute.xlu0 %2884
    %2888 = vrot.lane.b32.xlu0 %v2775, 112
    %v2889 = vpop.permute.xlu0 %2888
    %2892 = vrot.lane.b32.xlu0 %v2776, 116
    %v2893 = vpop.permute.xlu0 %2892
    %2896 = vrot.lane.b32.xlu0 %v2777, 120
    %v2897 = vpop.permute.xlu0 %2896
    %2900 = vrot.lane.b32.xlu0 %v2778, 124
    %v2901 = vpop.permute.xlu0 %2900
    %v2903 = vsel %vm1432, %v2363, %v2781
    %v2904 = vsel %vm1434, %v2903, %v2785
    %v2905 = vsel %vm1436, %v2904, %v2789
    %v2906 = vsel %vm1438, %v2905, %v2793
    %v2907 = vsel %vm1440, %v2906, %v2797
    %v2908 = vsel %vm1442, %v2907, %v2801
    %v2909 = vsel %vm1444, %v2908, %v2805
    %v2910 = vsel %vm1446, %v2909, %v2809
    %v2911 = vsel %vm1448, %v2910, %v2813
    %v2912 = vsel %vm1450, %v2911, %v2817
    %v2913 = vsel %vm1452, %v2912, %v2821
    %v2914 = vsel %vm1454, %v2913, %v2825
    %v2915 = vsel %vm1456, %v2914, %v2829
    %v2916 = vsel %vm1458, %v2915, %v2833
    %v2917 = vsel %vm1460, %v2916, %v2837
    %v2918 = vsel %vm1462, %v2917, %v2841
    %v2919 = vsel %vm1464, %v2918, %v2845
    %v2920 = vsel %vm1466, %v2919, %v2849
    %v2921 = vsel %vm1468, %v2920, %v2853
    %v2922 = vsel %vm1470, %v2921, %v2857
    %v2923 = vsel %vm1472, %v2922, %v2861
    %v2924 = vsel %vm1474, %v2923, %v2865
    %v2925 = vsel %vm1476, %v2924, %v2869
    %v2926 = vsel %vm1478, %v2925, %v2873
    %v2927 = vsel %vm1480, %v2926, %v2877
    %v2928 = vsel %vm1482, %v2927, %v2881
    %v2929 = vsel %vm1484, %v2928, %v2885
    %v2930 = vsel %vm1486, %v2929, %v2889
    %v2931 = vsel %vm1488, %v2930, %v2893
    %v2932 = vsel %vm1490, %v2931, %v2897
    %v2933 = vsel %vm1492, %v2932, %v2901
    %2934 = vst [vmem:[#allocation8 + $0x8] sm:$0xff] %v2933
    %v2935 = vld [vmem:[#allocation2] sm:$0xff]
    %v2936 = vld [vmem:[#allocation5] sm:$0xff]
    %v2937 = vld [vmem:[#allocation7] sm:$0xff]
    %v2938 = vld [vmem:[%s3] sm:$0xff]
    %v2939 = vlaneseq
    %v2940 = vshrl.u32 %v2939, 7
    %v2941 = vsub.s32 0, %v2940
    %v2942 = vrot.slane %v2935, %v2941
    %s2944 = sor.u32 256, 64
    %2945 = vbcast.lane.b32.xlu0 %v2942, %s2944
    %v2946 = vpop.permute.xlu0 %2945
    %s2948 = sor.u32 256, 72
    %2949 = vbcast.lane.b32.xlu0 %v2942, %s2948
    %v2950 = vpop.permute.xlu0 %2949
    %s2952 = sor.u32 256, 80
    %2953 = vbcast.lane.b32.xlu0 %v2942, %s2952
    %v2954 = vpop.permute.xlu0 %2953
    %s2956 = sor.u32 256, 88
    %2957 = vbcast.lane.b32.xlu0 %v2942, %s2956
    %v2958 = vpop.permute.xlu0 %2957
    %v2959 = vlaneseq
    %v2960 = vshrl.u32 %v2959, 7
    %v2961 = vsub.s32 1, %v2960
    %v2962 = vrot.slane %v2935, %v2961
    %s2964 = sor.u32 256, 64
    %2965 = vbcast.lane.b32.xlu0 %v2962, %s2964
    %v2966 = vpop.permute.xlu0 %2965
    %s2968 = sor.u32 256, 72
    %2969 = vbcast.lane.b32.xlu0 %v2962, %s2968
    %v2970 = vpop.permute.xlu0 %2969
    %s2972 = sor.u32 256, 80
    %2973 = vbcast.lane.b32.xlu0 %v2962, %s2972
    %v2974 = vpop.permute.xlu0 %2973
    %s2976 = sor.u32 256, 88
    %2977 = vbcast.lane.b32.xlu0 %v2962, %s2976
    %v2978 = vpop.permute.xlu0 %2977
    %v2979 = vlaneseq
    %v2980 = vshrl.u32 %v2979, 7
    %v2981 = vsub.s32 2, %v2980
    %v2982 = vrot.slane %v2935, %v2981
    %s2984 = sor.u32 256, 64
    %2985 = vbcast.lane.b32.xlu0 %v2982, %s2984
    %v2986 = vpop.permute.xlu0 %2985
    %s2988 = sor.u32 256, 72
    %2989 = vbcast.lane.b32.xlu0 %v2982, %s2988
    %v2990 = vpop.permute.xlu0 %2989
    %s2992 = sor.u32 256, 80
    %2993 = vbcast.lane.b32.xlu0 %v2982, %s2992
    %v2994 = vpop.permute.xlu0 %2993
    %s2996 = sor.u32 256, 88
    %2997 = vbcast.lane.b32.xlu0 %v2982, %s2996
    %v2998 = vpop.permute.xlu0 %2997
    %v2999 = vlaneseq
    %v3000 = vshrl.u32 %v2999, 7
    %v3001 = vsub.s32 3, %v3000
    %v3002 = vrot.slane %v2935, %v3001
    %s3004 = sor.u32 256, 64
    %3005 = vbcast.lane.b32.xlu0 %v3002, %s3004
    %v3006 = vpop.permute.xlu0 %3005
    %s3008 = sor.u32 256, 72
    %3009 = vbcast.lane.b32.xlu0 %v3002, %s3008
    %v3010 = vpop.permute.xlu0 %3009
    %s3012 = sor.u32 256, 80
    %3013 = vbcast.lane.b32.xlu0 %v3002, %s3012
    %v3014 = vpop.permute.xlu0 %3013
    %s3016 = sor.u32 256, 88
    %3017 = vbcast.lane.b32.xlu0 %v3002, %s3016
    %v3018 = vpop.permute.xlu0 %3017
    %v3019 = vlaneseq
    %v3020 = vshrl.u32 %v3019, 7
    %v3021 = vsub.s32 4, %v3020
    %v3022 = vrot.slane %v2935, %v3021
    %s3024 = sor.u32 256, 64
    %3025 = vbcast.lane.b32.xlu0 %v3022, %s3024
    %v3026 = vpop.permute.xlu0 %3025
    %s3028 = sor.u32 256, 72
    %3029 = vbcast.lane.b32.xlu0 %v3022, %s3028
    %v3030 = vpop.permute.xlu0 %3029
    %s3032 = sor.u32 256, 80
    %3033 = vbcast.lane.b32.xlu0 %v3022, %s3032
    %v3034 = vpop.permute.xlu0 %3033
    %s3036 = sor.u32 256, 88
    %3037 = vbcast.lane.b32.xlu0 %v3022, %s3036
    %v3038 = vpop.permute.xlu0 %3037
    %v3039 = vlaneseq
    %v3040 = vshrl.u32 %v3039, 7
    %v3041 = vsub.s32 5, %v3040
    %v3042 = vrot.slane %v2935, %v3041
    %s3044 = sor.u32 256, 64
    %3045 = vbcast.lane.b32.xlu0 %v3042, %s3044
    %v3046 = vpop.permute.xlu0 %3045
    %s3048 = sor.u32 256, 72
    %3049 = vbcast.lane.b32.xlu0 %v3042, %s3048
    %v3050 = vpop.permute.xlu0 %3049
    %s3052 = sor.u32 256, 80
    %3053 = vbcast.lane.b32.xlu0 %v3042, %s3052
    %v3054 = vpop.permute.xlu0 %3053
    %s3056 = sor.u32 256, 88
    %3057 = vbcast.lane.b32.xlu0 %v3042, %s3056
    %v3058 = vpop.permute.xlu0 %3057
    %v3059 = vlaneseq
    %v3060 = vshrl.u32 %v3059, 7
    %v3061 = vsub.s32 6, %v3060
    %v3062 = vrot.slane %v2935, %v3061
    %s3064 = sor.u32 256, 64
    %3065 = vbcast.lane.b32.xlu0 %v3062, %s3064
    %v3066 = vpop.permute.xlu0 %3065
    %s3068 = sor.u32 256, 72
    %3069 = vbcast.lane.b32.xlu0 %v3062, %s3068
    %v3070 = vpop.permute.xlu0 %3069
    %s3072 = sor.u32 256, 80
    %3073 = vbcast.lane.b32.xlu0 %v3062, %s3072
    %v3074 = vpop.permute.xlu0 %3073
    %s3076 = sor.u32 256, 88
    %3077 = vbcast.lane.b32.xlu0 %v3062, %s3076
    %v3078 = vpop.permute.xlu0 %3077
    %v3079 = vlaneseq
    %v3080 = vshrl.u32 %v3079, 7
    %v3081 = vsub.s32 7, %v3080
    %v3082 = vrot.slane %v2935, %v3081
    %s3084 = sor.u32 256, 64
    %3085 = vbcast.lane.b32.xlu0 %v3082, %s3084
    %v3086 = vpop.permute.xlu0 %3085
    %s3088 = sor.u32 256, 72
    %3089 = vbcast.lane.b32.xlu0 %v3082, %s3088
    %v3090 = vpop.permute.xlu0 %3089
    %s3092 = sor.u32 256, 80
    %3093 = vbcast.lane.b32.xlu0 %v3082, %s3092
    %v3094 = vpop.permute.xlu0 %3093
    %s3096 = sor.u32 256, 88
    %3097 = vbcast.lane.b32.xlu0 %v3082, %s3096
    %v3098 = vpop.permute.xlu0 %3097
    %v3099 = vlaneseq
    %v3100 = vshrl.u32 %v3099, 7
    %v3101 = vsub.s32 0, %v3100
    %v3102 = vrot.slane %v2937, %v3101
    %s3104 = sor.u32 256, 64
    %3105 = vbcast.lane.b32.xlu0 %v3102, %s3104
    %v3106 = vpop.permute.xlu0 %3105
    %s3108 = sor.u32 256, 72
    %3109 = vbcast.lane.b32.xlu0 %v3102, %s3108
    %v3110 = vpop.permute.xlu0 %3109
    %s3112 = sor.u32 256, 80
    %3113 = vbcast.lane.b32.xlu0 %v3102, %s3112
    %v3114 = vpop.permute.xlu0 %3113
    %s3116 = sor.u32 256, 88
    %3117 = vbcast.lane.b32.xlu0 %v3102, %s3116
    %v3118 = vpop.permute.xlu0 %3117
    %v3119 = vlaneseq
    %v3120 = vshrl.u32 %v3119, 7
    %v3121 = vsub.s32 1, %v3120
    %v3122 = vrot.slane %v2937, %v3121
    %s3124 = sor.u32 256, 64
    %3125 = vbcast.lane.b32.xlu0 %v3122, %s3124
    %v3126 = vpop.permute.xlu0 %3125
    %s3128 = sor.u32 256, 72
    %3129 = vbcast.lane.b32.xlu0 %v3122, %s3128
    %v3130 = vpop.permute.xlu0 %3129
    %s3132 = sor.u32 256, 80
    %3133 = vbcast.lane.b32.xlu0 %v3122, %s3132
    %v3134 = vpop.permute.xlu0 %3133
    %s3136 = sor.u32 256, 88
    %3137 = vbcast.lane.b32.xlu0 %v3122, %s3136
    %v3138 = vpop.permute.xlu0 %3137
    %v3139 = vlaneseq
    %v3140 = vshrl.u32 %v3139, 7
    %v3141 = vsub.s32 2, %v3140
    %v3142 = vrot.slane %v2937, %v3141
    %s3144 = sor.u32 256, 64
    %3145 = vbcast.lane.b32.xlu0 %v3142, %s3144
    %v3146 = vpop.permute.xlu0 %3145
    %s3148 = sor.u32 256, 72
    %3149 = vbcast.lane.b32.xlu0 %v3142, %s3148
    %v3150 = vpop.permute.xlu0 %3149
    %s3152 = sor.u32 256, 80
    %3153 = vbcast.lane.b32.xlu0 %v3142, %s3152
    %v3154 = vpop.permute.xlu0 %3153
    %s3156 = sor.u32 256, 88
    %3157 = vbcast.lane.b32.xlu0 %v3142, %s3156
    %v3158 = vpop.permute.xlu0 %3157
    %v3159 = vlaneseq
    %v3160 = vshrl.u32 %v3159, 7
    %v3161 = vsub.s32 3, %v3160
    %v3162 = vrot.slane %v2937, %v3161
    %s3164 = sor.u32 256, 64
    %3165 = vbcast.lane.b32.xlu0 %v3162, %s3164
    %v3166 = vpop.permute.xlu0 %3165
    %s3168 = sor.u32 256, 72
    %3169 = vbcast.lane.b32.xlu0 %v3162, %s3168
    %v3170 = vpop.permute.xlu0 %3169
    %s3172 = sor.u32 256, 80
    %3173 = vbcast.lane.b32.xlu0 %v3162, %s3172
    %v3174 = vpop.permute.xlu0 %3173
    %s3176 = sor.u32 256, 88
    %3177 = vbcast.lane.b32.xlu0 %v3162, %s3176
    %v3178 = vpop.permute.xlu0 %3177
    %v3179 = vlaneseq
    %v3180 = vshrl.u32 %v3179, 7
    %v3181 = vsub.s32 4, %v3180
    %v3182 = vrot.slane %v2937, %v3181
    %s3184 = sor.u32 256, 64
    %3185 = vbcast.lane.b32.xlu0 %v3182, %s3184
    %v3186 = vpop.permute.xlu0 %3185
    %s3188 = sor.u32 256, 72
    %3189 = vbcast.lane.b32.xlu0 %v3182, %s3188
    %v3190 = vpop.permute.xlu0 %3189
    %s3192 = sor.u32 256, 80
    %3193 = vbcast.lane.b32.xlu0 %v3182, %s3192
    %v3194 = vpop.permute.xlu0 %3193
    %s3196 = sor.u32 256, 88
    %3197 = vbcast.lane.b32.xlu0 %v3182, %s3196
    %v3198 = vpop.permute.xlu0 %3197
    %v3199 = vlaneseq
    %v3200 = vshrl.u32 %v3199, 7
    %v3201 = vsub.s32 5, %v3200
    %v3202 = vrot.slane %v2937, %v3201
    %s3204 = sor.u32 256, 64
    %3205 = vbcast.lane.b32.xlu0 %v3202, %s3204
    %v3206 = vpop.permute.xlu0 %3205
    %s3208 = sor.u32 256, 72
    %3209 = vbcast.lane.b32.xlu0 %v3202, %s3208
    %v3210 = vpop.permute.xlu0 %3209
    %s3212 = sor.u32 256, 80
    %3213 = vbcast.lane.b32.xlu0 %v3202, %s3212
    %v3214 = vpop.permute.xlu0 %3213
    %s3216 = sor.u32 256, 88
    %3217 = vbcast.lane.b32.xlu0 %v3202, %s3216
    %v3218 = vpop.permute.xlu0 %3217
    %v3219 = vlaneseq
    %v3220 = vshrl.u32 %v3219, 7
    %v3221 = vsub.s32 6, %v3220
    %v3222 = vrot.slane %v2937, %v3221
    %s3224 = sor.u32 256, 64
    %3225 = vbcast.lane.b32.xlu0 %v3222, %s3224
    %v3226 = vpop.permute.xlu0 %3225
    %s3228 = sor.u32 256, 72
    %3229 = vbcast.lane.b32.xlu0 %v3222, %s3228
    %v3230 = vpop.permute.xlu0 %3229
    %s3232 = sor.u32 256, 80
    %3233 = vbcast.lane.b32.xlu0 %v3222, %s3232
    %v3234 = vpop.permute.xlu0 %3233
    %s3236 = sor.u32 256, 88
    %3237 = vbcast.lane.b32.xlu0 %v3222, %s3236
    %v3238 = vpop.permute.xlu0 %3237
    %v3239 = vlaneseq
    %v3240 = vshrl.u32 %v3239, 7
    %v3241 = vsub.s32 7, %v3240
    %v3242 = vrot.slane %v2937, %v3241
    %s3244 = sor.u32 256, 64
    %3245 = vbcast.lane.b32.xlu0 %v3242, %s3244
    %v3246 = vpop.permute.xlu0 %3245
    %s3248 = sor.u32 256, 72
    %3249 = vbcast.lane.b32.xlu0 %v3242, %s3248
    %v3250 = vpop.permute.xlu0 %3249
    %s3252 = sor.u32 256, 80
    %3253 = vbcast.lane.b32.xlu0 %v3242, %s3252
    %v3254 = vpop.permute.xlu0 %3253
    %s3256 = sor.u32 256, 88
    %3257 = vbcast.lane.b32.xlu0 %v3242, %s3256
    %v3258 = vpop.permute.xlu0 %3257
    %v3259 = vlaneseq
    %v3260 = vshrl.u32 %v3259, 7
    %v3261 = vsub.s32 0, %v3260
    %v3262 = vrot.slane %v2936, %v3261
    %s3264 = sor.u32 256, 64
    %3265 = vbcast.lane.b32.xlu0 %v3262, %s3264
    %v3266 = vpop.permute.xlu0 %3265
    %s3268 = sor.u32 256, 72
    %3269 = vbcast.lane.b32.xlu0 %v3262, %s3268
    %v3270 = vpop.permute.xlu0 %3269
    %s3272 = sor.u32 256, 80
    %3273 = vbcast.lane.b32.xlu0 %v3262, %s3272
    %v3274 = vpop.permute.xlu0 %3273
    %s3276 = sor.u32 256, 88
    %3277 = vbcast.lane.b32.xlu0 %v3262, %s3276
    %v3278 = vpop.permute.xlu0 %3277
    %v3279 = vlaneseq
    %v3280 = vshrl.u32 %v3279, 7
    %v3281 = vsub.s32 1, %v3280
    %v3282 = vrot.slane %v2936, %v3281
    %s3284 = sor.u32 256, 64
    %3285 = vbcast.lane.b32.xlu0 %v3282, %s3284
    %v3286 = vpop.permute.xlu0 %3285
    %s3288 = sor.u32 256, 72
    %3289 = vbcast.lane.b32.xlu0 %v3282, %s3288
    %v3290 = vpop.permute.xlu0 %3289
    %s3292 = sor.u32 256, 80
    %3293 = vbcast.lane.b32.xlu0 %v3282, %s3292
    %v3294 = vpop.permute.xlu0 %3293
    %s3296 = sor.u32 256, 88
    %3297 = vbcast.lane.b32.xlu0 %v3282, %s3296
    %v3298 = vpop.permute.xlu0 %3297
    %v3299 = vlaneseq
    %v3300 = vshrl.u32 %v3299, 7
    %v3301 = vsub.s32 2, %v3300
    %v3302 = vrot.slane %v2936, %v3301
    %s3304 = sor.u32 256, 64
    %3305 = vbcast.lane.b32.xlu0 %v3302, %s3304
    %v3306 = vpop.permute.xlu0 %3305
    %s3308 = sor.u32 256, 72
    %3309 = vbcast.lane.b32.xlu0 %v3302, %s3308
    %v3310 = vpop.permute.xlu0 %3309
    %s3312 = sor.u32 256, 80
    %3313 = vbcast.lane.b32.xlu0 %v3302, %s3312
    %v3314 = vpop.permute.xlu0 %3313
    %s3316 = sor.u32 256, 88
    %3317 = vbcast.lane.b32.xlu0 %v3302, %s3316
    %v3318 = vpop.permute.xlu0 %3317
    %v3319 = vlaneseq
    %v3320 = vshrl.u32 %v3319, 7
    %v3321 = vsub.s32 3, %v3320
    %v3322 = vrot.slane %v2936, %v3321
    %s3324 = sor.u32 256, 64
    %3325 = vbcast.lane.b32.xlu0 %v3322, %s3324
    %v3326 = vpop.permute.xlu0 %3325
    %s3328 = sor.u32 256, 72
    %3329 = vbcast.lane.b32.xlu0 %v3322, %s3328
    %v3330 = vpop.permute.xlu0 %3329
    %s3332 = sor.u32 256, 80
    %3333 = vbcast.lane.b32.xlu0 %v3322, %s3332
    %v3334 = vpop.permute.xlu0 %3333
    %s3336 = sor.u32 256, 88
    %3337 = vbcast.lane.b32.xlu0 %v3322, %s3336
    %v3338 = vpop.permute.xlu0 %3337
    %v3339 = vlaneseq
    %v3340 = vshrl.u32 %v3339, 7
    %v3341 = vsub.s32 4, %v3340
    %v3342 = vrot.slane %v2936, %v3341
    %s3344 = sor.u32 256, 64
    %3345 = vbcast.lane.b32.xlu0 %v3342, %s3344
    %v3346 = vpop.permute.xlu0 %3345
    %s3348 = sor.u32 256, 72
    %3349 = vbcast.lane.b32.xlu0 %v3342, %s3348
    %v3350 = vpop.permute.xlu0 %3349
    %s3352 = sor.u32 256, 80
    %3353 = vbcast.lane.b32.xlu0 %v3342, %s3352
    %v3354 = vpop.permute.xlu0 %3353
    %s3356 = sor.u32 256, 88
    %3357 = vbcast.lane.b32.xlu0 %v3342, %s3356
    %v3358 = vpop.permute.xlu0 %3357
    %v3359 = vlaneseq
    %v3360 = vshrl.u32 %v3359, 7
    %v3361 = vsub.s32 5, %v3360
    %v3362 = vrot.slane %v2936, %v3361
    %s3364 = sor.u32 256, 64
    %3365 = vbcast.lane.b32.xlu0 %v3362, %s3364
    %v3366 = vpop.permute.xlu0 %3365
    %s3368 = sor.u32 256, 72
    %3369 = vbcast.lane.b32.xlu0 %v3362, %s3368
    %v3370 = vpop.permute.xlu0 %3369
    %s3372 = sor.u32 256, 80
    %3373 = vbcast.lane.b32.xlu0 %v3362, %s3372
    %v3374 = vpop.permute.xlu0 %3373
    %s3376 = sor.u32 256, 88
    %3377 = vbcast.lane.b32.xlu0 %v3362, %s3376
    %v3378 = vpop.permute.xlu0 %3377
    %v3379 = vlaneseq
    %v3380 = vshrl.u32 %v3379, 7
    %v3381 = vsub.s32 6, %v3380
    %v3382 = vrot.slane %v2936, %v3381
    %s3384 = sor.u32 256, 64
    %3385 = vbcast.lane.b32.xlu0 %v3382, %s3384
    %v3386 = vpop.permute.xlu0 %3385
    %s3388 = sor.u32 256, 72
    %3389 = vbcast.lane.b32.xlu0 %v3382, %s3388
    %v3390 = vpop.permute.xlu0 %3389
    %s3392 = sor.u32 256, 80
    %3393 = vbcast.lane.b32.xlu0 %v3382, %s3392
    %v3394 = vpop.permute.xlu0 %3393
    %s3396 = sor.u32 256, 88
    %3397 = vbcast.lane.b32.xlu0 %v3382, %s3396
    %v3398 = vpop.permute.xlu0 %3397
    %v3399 = vlaneseq
    %v3400 = vshrl.u32 %v3399, 7
    %v3401 = vsub.s32 7, %v3400
    %v3402 = vrot.slane %v2936, %v3401
    %s3404 = sor.u32 256, 64
    %3405 = vbcast.lane.b32.xlu0 %v3402, %s3404
    %v3406 = vpop.permute.xlu0 %3405
    %s3408 = sor.u32 256, 72
    %3409 = vbcast.lane.b32.xlu0 %v3402, %s3408
    %v3410 = vpop.permute.xlu0 %3409
    %s3412 = sor.u32 256, 80
    %3413 = vbcast.lane.b32.xlu0 %v3402, %s3412
    %v3414 = vpop.permute.xlu0 %3413
    %s3416 = sor.u32 256, 88
    %3417 = vbcast.lane.b32.xlu0 %v3402, %s3416
    %v3418 = vpop.permute.xlu0 %3417
    %v3419 = vlaneseq
    %v3420 = vshrl.u32 %v3419, 7
    %v3421 = vsub.s32 0, %v3420
    %v3422 = vrot.slane %v2938, %v3421
    %s3424 = sor.u32 256, 64
    %3425 = vbcast.lane.b32.xlu0 %v3422, %s3424
    %v3426 = vpop.permute.xlu0 %3425
    %s3428 = sor.u32 256, 72
    %3429 = vbcast.lane.b32.xlu0 %v3422, %s3428
    %v3430 = vpop.permute.xlu0 %3429
    %s3432 = sor.u32 256, 80
    %3433 = vbcast.lane.b32.xlu0 %v3422, %s3432
    %v3434 = vpop.permute.xlu0 %3433
    %s3436 = sor.u32 256, 88
    %3437 = vbcast.lane.b32.xlu0 %v3422, %s3436
    %v3438 = vpop.permute.xlu0 %3437
    %v3439 = vlaneseq
    %v3440 = vshrl.u32 %v3439, 7
    %v3441 = vsub.s32 1, %v3440
    %v3442 = vrot.slane %v2938, %v3441
    %s3444 = sor.u32 256, 64
    %3445 = vbcast.lane.b32.xlu0 %v3442, %s3444
    %v3446 = vpop.permute.xlu0 %3445
    %s3448 = sor.u32 256, 72
    %3449 = vbcast.lane.b32.xlu0 %v3442, %s3448
    %v3450 = vpop.permute.xlu0 %3449
    %s3452 = sor.u32 256, 80
    %3453 = vbcast.lane.b32.xlu0 %v3442, %s3452
    %v3454 = vpop.permute.xlu0 %3453
    %s3456 = sor.u32 256, 88
    %3457 = vbcast.lane.b32.xlu0 %v3442, %s3456
    %v3458 = vpop.permute.xlu0 %3457
    %v3459 = vlaneseq
    %v3460 = vshrl.u32 %v3459, 7
    %v3461 = vsub.s32 2, %v3460
    %v3462 = vrot.slane %v2938, %v3461
    %s3464 = sor.u32 256, 64
    %3465 = vbcast.lane.b32.xlu0 %v3462, %s3464
    %v3466 = vpop.permute.xlu0 %3465
    %s3468 = sor.u32 256, 72
    %3469 = vbcast.lane.b32.xlu0 %v3462, %s3468
    %v3470 = vpop.permute.xlu0 %3469
    %s3472 = sor.u32 256, 80
    %3473 = vbcast.lane.b32.xlu0 %v3462, %s3472
    %v3474 = vpop.permute.xlu0 %3473
    %s3476 = sor.u32 256, 88
    %3477 = vbcast.lane.b32.xlu0 %v3462, %s3476
    %v3478 = vpop.permute.xlu0 %3477
    %v3479 = vlaneseq
    %v3480 = vshrl.u32 %v3479, 7
    %v3481 = vsub.s32 3, %v3480
    %v3482 = vrot.slane %v2938, %v3481
    %s3484 = sor.u32 256, 64
    %3485 = vbcast.lane.b32.xlu0 %v3482, %s3484
    %v3486 = vpop.permute.xlu0 %3485
    %s3488 = sor.u32 256, 72
    %3489 = vbcast.lane.b32.xlu0 %v3482, %s3488
    %v3490 = vpop.permute.xlu0 %3489
    %s3492 = sor.u32 256, 80
    %3493 = vbcast.lane.b32.xlu0 %v3482, %s3492
    %v3494 = vpop.permute.xlu0 %3493
    %s3496 = sor.u32 256, 88
    %3497 = vbcast.lane.b32.xlu0 %v3482, %s3496
    %v3498 = vpop.permute.xlu0 %3497
    %v3499 = vlaneseq
    %v3500 = vshrl.u32 %v3499, 7
    %v3501 = vsub.s32 4, %v3500
    %v3502 = vrot.slane %v2938, %v3501
    %s3504 = sor.u32 256, 64
    %3505 = vbcast.lane.b32.xlu0 %v3502, %s3504
    %v3506 = vpop.permute.xlu0 %3505
    %s3508 = sor.u32 256, 72
    %3509 = vbcast.lane.b32.xlu0 %v3502, %s3508
    %v3510 = vpop.permute.xlu0 %3509
    %s3512 = sor.u32 256, 80
    %3513 = vbcast.lane.b32.xlu0 %v3502, %s3512
    %v3514 = vpop.permute.xlu0 %3513
    %s3516 = sor.u32 256, 88
    %3517 = vbcast.lane.b32.xlu0 %v3502, %s3516
    %v3518 = vpop.permute.xlu0 %3517
    %v3519 = vlaneseq
    %v3520 = vshrl.u32 %v3519, 7
    %v3521 = vsub.s32 5, %v3520
    %v3522 = vrot.slane %v2938, %v3521
    %s3524 = sor.u32 256, 64
    %3525 = vbcast.lane.b32.xlu0 %v3522, %s3524
    %v3526 = vpop.permute.xlu0 %3525
    %s3528 = sor.u32 256, 72
    %3529 = vbcast.lane.b32.xlu0 %v3522, %s3528
    %v3530 = vpop.permute.xlu0 %3529
    %s3532 = sor.u32 256, 80
    %3533 = vbcast.lane.b32.xlu0 %v3522, %s3532
    %v3534 = vpop.permute.xlu0 %3533
    %s3536 = sor.u32 256, 88
    %3537 = vbcast.lane.b32.xlu0 %v3522, %s3536
    %v3538 = vpop.permute.xlu0 %3537
    %v3539 = vlaneseq
    %v3540 = vshrl.u32 %v3539, 7
    %v3541 = vsub.s32 6, %v3540
    %v3542 = vrot.slane %v2938, %v3541
    %s3544 = sor.u32 256, 64
    %3545 = vbcast.lane.b32.xlu0 %v3542, %s3544
    %v3546 = vpop.permute.xlu0 %3545
    %s3548 = sor.u32 256, 72
    %3549 = vbcast.lane.b32.xlu0 %v3542, %s3548
    %v3550 = vpop.permute.xlu0 %3549
    %s3552 = sor.u32 256, 80
    %3553 = vbcast.lane.b32.xlu0 %v3542, %s3552
    %v3554 = vpop.permute.xlu0 %3553
    %s3556 = sor.u32 256, 88
    %3557 = vbcast.lane.b32.xlu0 %v3542, %s3556
    %v3558 = vpop.permute.xlu0 %3557
    %v3559 = vlaneseq
    %v3560 = vshrl.u32 %v3559, 7
    %v3561 = vsub.s32 7, %v3560
    %v3562 = vrot.slane %v2938, %v3561
    %s3564 = sor.u32 256, 64
    %3565 = vbcast.lane.b32.xlu0 %v3562, %s3564
    %v3566 = vpop.permute.xlu0 %3565
    %s3568 = sor.u32 256, 72
    %3569 = vbcast.lane.b32.xlu0 %v3562, %s3568
    %v3570 = vpop.permute.xlu0 %3569
    %s3572 = sor.u32 256, 80
    %3573 = vbcast.lane.b32.xlu0 %v3562, %s3572
    %v3574 = vpop.permute.xlu0 %3573
    %s3576 = sor.u32 256, 88
    %3577 = vbcast.lane.b32.xlu0 %v3562, %s3576
    %v3578 = vpop.permute.xlu0 %3577
    %v3579 = vsel %vm665, %v2946, %v3106
    %v3580 = vsel %vm665, %v2950, %v3110
    %v3581 = vsel %vm665, %v2954, %v3114
    %v3582 = vsel %vm665, %v2958, %v3118
    %v3583 = vsel %vm665, %v2966, %v3126
    %v3584 = vsel %vm665, %v2970, %v3130
    %v3585 = vsel %vm665, %v2974, %v3134
    %v3586 = vsel %vm665, %v2978, %v3138
    %v3587 = vsel %vm665, %v2986, %v3146
    %v3588 = vsel %vm665, %v2990, %v3150
    %v3589 = vsel %vm665, %v2994, %v3154
    %v3590 = vsel %vm665, %v2998, %v3158
    %v3591 = vsel %vm665, %v3006, %v3166
    %v3592 = vsel %vm665, %v3010, %v3170
    %v3593 = vsel %vm665, %v3014, %v3174
    %v3594 = vsel %vm665, %v3018, %v3178
    %v3595 = vsel %vm665, %v3026, %v3186
    %v3596 = vsel %vm665, %v3030, %v3190
    %v3597 = vsel %vm665, %v3034, %v3194
    %v3598 = vsel %vm665, %v3038, %v3198
    %v3599 = vsel %vm665, %v3046, %v3206
    %v3600 = vsel %vm665, %v3050, %v3210
    %v3601 = vsel %vm665, %v3054, %v3214
    %v3602 = vsel %vm665, %v3058, %v3218
    %v3603 = vsel %vm665, %v3066, %v3226
    %v3604 = vsel %vm665, %v3070, %v3230
    %v3605 = vsel %vm665, %v3074, %v3234
    %v3606 = vsel %vm665, %v3078, %v3238
    %v3607 = vsel %vm665, %v3086, %v3246
    %v3608 = vsel %vm665, %v3090, %v3250
    %v3609 = vsel %vm665, %v3094, %v3254
    %v3610 = vsel %vm665, %v3098, %v3258
    %v3611 = vsel %vm698, %v3579, %v3266
    %v3612 = vsel %vm698, %v3580, %v3270
    %v3613 = vsel %vm698, %v3581, %v3274
    %v3614 = vsel %vm698, %v3582, %v3278
    %v3615 = vsel %vm698, %v3583, %v3286
    %v3616 = vsel %vm698, %v3584, %v3290
    %v3617 = vsel %vm698, %v3585, %v3294
    %v3618 = vsel %vm698, %v3586, %v3298
    %v3619 = vsel %vm698, %v3587, %v3306
    %v3620 = vsel %vm698, %v3588, %v3310
    %v3621 = vsel %vm698, %v3589, %v3314
    %v3622 = vsel %vm698, %v3590, %v3318
    %v3623 = vsel %vm698, %v3591, %v3326
    %v3624 = vsel %vm698, %v3592, %v3330
    %v3625 = vsel %vm698, %v3593, %v3334
    %v3626 = vsel %vm698, %v3594, %v3338
    %v3627 = vsel %vm698, %v3595, %v3346
    %v3628 = vsel %vm698, %v3596, %v3350
    %v3629 = vsel %vm698, %v3597, %v3354
    %v3630 = vsel %vm698, %v3598, %v3358
    %v3631 = vsel %vm698, %v3599, %v3366
    %v3632 = vsel %vm698, %v3600, %v3370
    %v3633 = vsel %vm698, %v3601, %v3374
    %v3634 = vsel %vm698, %v3602, %v3378
    %v3635 = vsel %vm698, %v3603, %v3386
    %v3636 = vsel %vm698, %v3604, %v3390
    %v3637 = vsel %vm698, %v3605, %v3394
    %v3638 = vsel %vm698, %v3606, %v3398
    %v3639 = vsel %vm698, %v3607, %v3406
    %v3640 = vsel %vm698, %v3608, %v3410
    %v3641 = vsel %vm698, %v3609, %v3414
    %v3642 = vsel %vm698, %v3610, %v3418
    %v3643 = vsel %vm731, %v3611, %v3426
    %v3644 = vsel %vm731, %v3612, %v3430
    %v3645 = vsel %vm731, %v3613, %v3434
    %v3646 = vsel %vm731, %v3614, %v3438
    %v3647 = vsel %vm731, %v3615, %v3446
    %v3648 = vsel %vm731, %v3616, %v3450
    %v3649 = vsel %vm731, %v3617, %v3454
    %v3650 = vsel %vm731, %v3618, %v3458
    %v3651 = vsel %vm731, %v3619, %v3466
    %v3652 = vsel %vm731, %v3620, %v3470
    %v3653 = vsel %vm731, %v3621, %v3474
    %v3654 = vsel %vm731, %v3622, %v3478
    %v3655 = vsel %vm731, %v3623, %v3486
    %v3656 = vsel %vm731, %v3624, %v3490
    %v3657 = vsel %vm731, %v3625, %v3494
    %v3658 = vsel %vm731, %v3626, %v3498
    %v3659 = vsel %vm731, %v3627, %v3506
    %v3660 = vsel %vm731, %v3628, %v3510
    %v3661 = vsel %vm731, %v3629, %v3514
    %v3662 = vsel %vm731, %v3630, %v3518
    %v3663 = vsel %vm731, %v3631, %v3526
    %v3664 = vsel %vm731, %v3632, %v3530
    %v3665 = vsel %vm731, %v3633, %v3534
    %v3666 = vsel %vm731, %v3634, %v3538
    %v3667 = vsel %vm731, %v3635, %v3546
    %v3668 = vsel %vm731, %v3636, %v3550
    %v3669 = vsel %vm731, %v3637, %v3554
    %v3670 = vsel %vm731, %v3638, %v3558
    %v3671 = vsel %vm731, %v3639, %v3566
    %v3672 = vsel %vm731, %v3640, %v3570
    %v3673 = vsel %vm731, %v3641, %v3574
    %v3674 = vsel %vm731, %v3642, %v3578
    %v3675 = vcombine.low %v3643, %v3651
    %v3676 = vcombine.high %v3643, %v3651
    %v3678 = vunpack.c.l.s4 1983009808
    %v3679 = vunpack.c.0.s8 %v3678
    %v3680 = vlaneseq
    %v3681 = vshrl.u32 %v3680, 7
    %v3682 = vsub.s32 %v3679, %v3681
    %v3683 = vrot.slane %v3675, %v3682
    %v3685 = vunpack.c.l.s4 1983009808
    %v3686 = vunpack.c.0.s8 %v3685
    %v3687 = vlaneseq
    %v3688 = vshrl.u32 %v3687, 7
    %v3689 = vsub.s32 %v3686, %v3688
    %v3690 = vrot.slane %v3676, %v3689
    %v3691 = vcombine.low %v3647, %v3655
    %v3692 = vcombine.high %v3647, %v3655
    %v3694 = vunpack.c.l.s4 1983009808
    %v3695 = vunpack.c.0.s8 %v3694
    %v3696 = vlaneseq
    %v3697 = vshrl.u32 %v3696, 7
    %v3698 = vsub.s32 %v3695, %v3697
    %v3699 = vrot.slane %v3691, %v3698
    %v3701 = vunpack.c.l.s4 1983009808
    %v3702 = vunpack.c.0.s8 %v3701
    %v3703 = vlaneseq
    %v3704 = vshrl.u32 %v3703, 7
    %v3705 = vsub.s32 %v3702, %v3704
    %v3706 = vrot.slane %v3692, %v3705
    %v3707 = vcombine.low %v3659, %v3667
    %v3708 = vcombine.high %v3659, %v3667
    %v3710 = vunpack.c.l.s4 1983009808
    %v3711 = vunpack.c.0.s8 %v3710
    %v3712 = vlaneseq
    %v3713 = vshrl.u32 %v3712, 7
    %v3714 = vsub.s32 %v3711, %v3713
    %v3715 = vrot.slane %v3707, %v3714
    %v3717 = vunpack.c.l.s4 1983009808
    %v3718 = vunpack.c.0.s8 %v3717
    %v3719 = vlaneseq
    %v3720 = vshrl.u32 %v3719, 7
    %v3721 = vsub.s32 %v3718, %v3720
    %v3722 = vrot.slane %v3708, %v3721
    %v3723 = vcombine.low %v3663, %v3671
    %v3724 = vcombine.high %v3663, %v3671
    %v3726 = vunpack.c.l.s4 1983009808
    %v3727 = vunpack.c.0.s8 %v3726
    %v3728 = vlaneseq
    %v3729 = vshrl.u32 %v3728, 7
    %v3730 = vsub.s32 %v3727, %v3729
    %v3731 = vrot.slane %v3723, %v3730
    %v3733 = vunpack.c.l.s4 1983009808
    %v3734 = vunpack.c.0.s8 %v3733
    %v3735 = vlaneseq
    %v3736 = vshrl.u32 %v3735, 7
    %v3737 = vsub.s32 %v3734, %v3736
    %v3738 = vrot.slane %v3724, %v3737
    %v3739 = vcombine.low %v3683, %v3699
    %v3740 = vcombine.high %v3683, %v3699
    %v3742 = vunpack.c.l.s4 1934713408
    %v3743 = vunpack.c.0.s8 %v3742
    %v3744 = vlaneseq
    %v3745 = vshrl.u32 %v3744, 7
    %v3746 = vsub.s32 %v3743, %v3745
    %v3747 = vrot.slane %v3739, %v3746
    %v3749 = vunpack.c.l.s4 1934713408
    %v3750 = vunpack.c.0.s8 %v3749
    %v3751 = vlaneseq
    %v3752 = vshrl.u32 %v3751, 7
    %v3753 = vsub.s32 %v3750, %v3752
    %v3754 = vrot.slane %v3740, %v3753
    %v3755 = vcombine.low %v3690, %v3706
    %v3756 = vcombine.high %v3690, %v3706
    %v3758 = vunpack.c.l.s4 1934713408
    %v3759 = vunpack.c.0.s8 %v3758
    %v3760 = vlaneseq
    %v3761 = vshrl.u32 %v3760, 7
    %v3762 = vsub.s32 %v3759, %v3761
    %v3763 = vrot.slane %v3755, %v3762
    %v3765 = vunpack.c.l.s4 1934713408
    %v3766 = vunpack.c.0.s8 %v3765
    %v3767 = vlaneseq
    %v3768 = vshrl.u32 %v3767, 7
    %v3769 = vsub.s32 %v3766, %v3768
    %v3770 = vrot.slane %v3756, %v3769
    %v3771 = vcombine.low %v3715, %v3731
    %v3772 = vcombine.high %v3715, %v3731
    %v3774 = vunpack.c.l.s4 1934713408
    %v3775 = vunpack.c.0.s8 %v3774
    %v3776 = vlaneseq
    %v3777 = vshrl.u32 %v3776, 7
    %v3778 = vsub.s32 %v3775, %v3777
    %v3779 = vrot.slane %v3771, %v3778
    %v3781 = vunpack.c.l.s4 1934713408
    %v3782 = vunpack.c.0.s8 %v3781
    %v3783 = vlaneseq
    %v3784 = vshrl.u32 %v3783, 7
    %v3785 = vsub.s32 %v3782, %v3784
    %v3786 = vrot.slane %v3772, %v3785
    %v3787 = vcombine.low %v3722, %v3738
    %v3788 = vcombine.high %v3722, %v3738
    %v3790 = vunpack.c.l.s4 1934713408
    %v3791 = vunpack.c.0.s8 %v3790
    %v3792 = vlaneseq
    %v3793 = vshrl.u32 %v3792, 7
    %v3794 = vsub.s32 %v3791, %v3793
    %v3795 = vrot.slane %v3787, %v3794
    %v3797 = vunpack.c.l.s4 1934713408
    %v3798 = vunpack.c.0.s8 %v3797
    %v3799 = vlaneseq
    %v3800 = vshrl.u32 %v3799, 7
    %v3801 = vsub.s32 %v3798, %v3800
    %v3802 = vrot.slane %v3788, %v3801
    %v3803 = vcombine.low %v3747, %v3779
    %v3804 = vcombine.high %v3747, %v3779
    %v3805 = vcombine.low %v3754, %v3786
    %v3806 = vcombine.high %v3754, %v3786
    %v3807 = vcombine.low %v3763, %v3795
    %v3808 = vcombine.high %v3763, %v3795
    %v3809 = vcombine.low %v3770, %v3802
    %v3810 = vcombine.high %v3770, %v3802
    %v3811 = vcombine.low %v3644, %v3652
    %v3812 = vcombine.high %v3644, %v3652
    %v3814 = vunpack.c.l.s4 1983009808
    %v3815 = vunpack.c.0.s8 %v3814
    %v3816 = vlaneseq
    %v3817 = vshrl.u32 %v3816, 7
    %v3818 = vsub.s32 %v3815, %v3817
    %v3819 = vrot.slane %v3811, %v3818
    %v3821 = vunpack.c.l.s4 1983009808
    %v3822 = vunpack.c.0.s8 %v3821
    %v3823 = vlaneseq
    %v3824 = vshrl.u32 %v3823, 7
    %v3825 = vsub.s32 %v3822, %v3824
    %v3826 = vrot.slane %v3812, %v3825
    %v3827 = vcombine.low %v3648, %v3656
    %v3828 = vcombine.high %v3648, %v3656
    %v3830 = vunpack.c.l.s4 1983009808
    %v3831 = vunpack.c.0.s8 %v3830
    %v3832 = vlaneseq
    %v3833 = vshrl.u32 %v3832, 7
    %v3834 = vsub.s32 %v3831, %v3833
    %v3835 = vrot.slane %v3827, %v3834
    %v3837 = vunpack.c.l.s4 1983009808
    %v3838 = vunpack.c.0.s8 %v3837
    %v3839 = vlaneseq
    %v3840 = vshrl.u32 %v3839, 7
    %v3841 = vsub.s32 %v3838, %v3840
    %v3842 = vrot.slane %v3828, %v3841
    %v3843 = vcombine.low %v3660, %v3668
    %v3844 = vcombine.high %v3660, %v3668
    %v3846 = vunpack.c.l.s4 1983009808
    %v3847 = vunpack.c.0.s8 %v3846
    %v3848 = vlaneseq
    %v3849 = vshrl.u32 %v3848, 7
    %v3850 = vsub.s32 %v3847, %v3849
    %v3851 = vrot.slane %v3843, %v3850
    %v3853 = vunpack.c.l.s4 1983009808
    %v3854 = vunpack.c.0.s8 %v3853
    %v3855 = vlaneseq
    %v3856 = vshrl.u32 %v3855, 7
    %v3857 = vsub.s32 %v3854, %v3856
    %v3858 = vrot.slane %v3844, %v3857
    %v3859 = vcombine.low %v3664, %v3672
    %v3860 = vcombine.high %v3664, %v3672
    %v3862 = vunpack.c.l.s4 1983009808
    %v3863 = vunpack.c.0.s8 %v3862
    %v3864 = vlaneseq
    %v3865 = vshrl.u32 %v3864, 7
    %v3866 = vsub.s32 %v3863, %v3865
    %v3867 = vrot.slane %v3859, %v3866
    %v3869 = vunpack.c.l.s4 1983009808
    %v3870 = vunpack.c.0.s8 %v3869
    %v3871 = vlaneseq
    %v3872 = vshrl.u32 %v3871, 7
    %v3873 = vsub.s32 %v3870, %v3872
    %v3874 = vrot.slane %v3860, %v3873
    %v3875 = vcombine.low %v3819, %v3835
    %v3876 = vcombine.high %v3819, %v3835
    %v3878 = vunpack.c.l.s4 1934713408
    %v3879 = vunpack.c.0.s8 %v3878
    %v3880 = vlaneseq
    %v3881 = vshrl.u32 %v3880, 7
    %v3882 = vsub.s32 %v3879, %v3881
    %v3883 = vrot.slane %v3875, %v3882
    %v3885 = vunpack.c.l.s4 1934713408
    %v3886 = vunpack.c.0.s8 %v3885
    %v3887 = vlaneseq
    %v3888 = vshrl.u32 %v3887, 7
    %v3889 = vsub.s32 %v3886, %v3888
    %v3890 = vrot.slane %v3876, %v3889
    %v3891 = vcombine.low %v3826, %v3842
    %v3892 = vcombine.high %v3826, %v3842
    %v3894 = vunpack.c.l.s4 1934713408
    %v3895 = vunpack.c.0.s8 %v3894
    %v3896 = vlaneseq
    %v3897 = vshrl.u32 %v3896, 7
    %v3898 = vsub.s32 %v3895, %v3897
    %v3899 = vrot.slane %v3891, %v3898
    %v3901 = vunpack.c.l.s4 1934713408
    %v3902 = vunpack.c.0.s8 %v3901
    %v3903 = vlaneseq
    %v3904 = vshrl.u32 %v3903, 7
    %v3905 = vsub.s32 %v3902, %v3904
    %v3906 = vrot.slane %v3892, %v3905
    %v3907 = vcombine.low %v3851, %v3867
    %v3908 = vcombine.high %v3851, %v3867
    %v3910 = vunpack.c.l.s4 1934713408
    %v3911 = vunpack.c.0.s8 %v3910
    %v3912 = vlaneseq
    %v3913 = vshrl.u32 %v3912, 7
    %v3914 = vsub.s32 %v3911, %v3913
    %v3915 = vrot.slane %v3907, %v3914
    %v3917 = vunpack.c.l.s4 1934713408
    %v3918 = vunpack.c.0.s8 %v3917
    %v3919 = vlaneseq
    %v3920 = vshrl.u32 %v3919, 7
    %v3921 = vsub.s32 %v3918, %v3920
    %v3922 = vrot.slane %v3908, %v3921
    %v3923 = vcombine.low %v3858, %v3874
    %v3924 = vcombine.high %v3858, %v3874
    %v3926 = vunpack.c.l.s4 1934713408
    %v3927 = vunpack.c.0.s8 %v3926
    %v3928 = vlaneseq
    %v3929 = vshrl.u32 %v3928, 7
    %v3930 = vsub.s32 %v3927, %v3929
    %v3931 = vrot.slane %v3923, %v3930
    %v3933 = vunpack.c.l.s4 1934713408
    %v3934 = vunpack.c.0.s8 %v3933
    %v3935 = vlaneseq
    %v3936 = vshrl.u32 %v3935, 7
    %v3937 = vsub.s32 %v3934, %v3936
    %v3938 = vrot.slane %v3924, %v3937
    %v3939 = vcombine.low %v3883, %v3915
    %v3940 = vcombine.high %v3883, %v3915
    %v3941 = vcombine.low %v3890, %v3922
    %v3942 = vcombine.high %v3890, %v3922
    %v3943 = vcombine.low %v3899, %v3931
    %v3944 = vcombine.high %v3899, %v3931
    %v3945 = vcombine.low %v3906, %v3938
    %v3946 = vcombine.high %v3906, %v3938
    %v3947 = vcombine.low %v3645, %v3653
    %v3948 = vcombine.high %v3645, %v3653
    %v3950 = vunpack.c.l.s4 1983009808
    %v3951 = vunpack.c.0.s8 %v3950
    %v3952 = vlaneseq
    %v3953 = vshrl.u32 %v3952, 7
    %v3954 = vsub.s32 %v3951, %v3953
    %v3955 = vrot.slane %v3947, %v3954
    %v3957 = vunpack.c.l.s4 1983009808
    %v3958 = vunpack.c.0.s8 %v3957
    %v3959 = vlaneseq
    %v3960 = vshrl.u32 %v3959, 7
    %v3961 = vsub.s32 %v3958, %v3960
    %v3962 = vrot.slane %v3948, %v3961
    %v3963 = vcombine.low %v3649, %v3657
    %v3964 = vcombine.high %v3649, %v3657
    %v3966 = vunpack.c.l.s4 1983009808
    %v3967 = vunpack.c.0.s8 %v3966
    %v3968 = vlaneseq
    %v3969 = vshrl.u32 %v3968, 7
    %v3970 = vsub.s32 %v3967, %v3969
    %v3971 = vrot.slane %v3963, %v3970
    %v3973 = vunpack.c.l.s4 1983009808
    %v3974 = vunpack.c.0.s8 %v3973
    %v3975 = vlaneseq
    %v3976 = vshrl.u32 %v3975, 7
    %v3977 = vsub.s32 %v3974, %v3976
    %v3978 = vrot.slane %v3964, %v3977
    %v3979 = vcombine.low %v3661, %v3669
    %v3980 = vcombine.high %v3661, %v3669
    %v3982 = vunpack.c.l.s4 1983009808
    %v3983 = vunpack.c.0.s8 %v3982
    %v3984 = vlaneseq
    %v3985 = vshrl.u32 %v3984, 7
    %v3986 = vsub.s32 %v3983, %v3985
    %v3987 = vrot.slane %v3979, %v3986
    %v3989 = vunpack.c.l.s4 1983009808
    %v3990 = vunpack.c.0.s8 %v3989
    %v3991 = vlaneseq
    %v3992 = vshrl.u32 %v3991, 7
    %v3993 = vsub.s32 %v3990, %v3992
    %v3994 = vrot.slane %v3980, %v3993
    %v3995 = vcombine.low %v3665, %v3673
    %v3996 = vcombine.high %v3665, %v3673
    %v3998 = vunpack.c.l.s4 1983009808
    %v3999 = vunpack.c.0.s8 %v3998
    %v4000 = vlaneseq
    %v4001 = vshrl.u32 %v4000, 7
    %v4002 = vsub.s32 %v3999, %v4001
    %v4003 = vrot.slane %v3995, %v4002
    %v4005 = vunpack.c.l.s4 1983009808
    %v4006 = vunpack.c.0.s8 %v4005
    %v4007 = vlaneseq
    %v4008 = vshrl.u32 %v4007, 7
    %v4009 = vsub.s32 %v4006, %v4008
    %v4010 = vrot.slane %v3996, %v4009
    %v4011 = vcombine.low %v3955, %v3971
    %v4012 = vcombine.high %v3955, %v3971
    %v4014 = vunpack.c.l.s4 1934713408
    %v4015 = vunpack.c.0.s8 %v4014
    %v4016 = vlaneseq
    %v4017 = vshrl.u32 %v4016, 7
    %v4018 = vsub.s32 %v4015, %v4017
    %v4019 = vrot.slane %v4011, %v4018
    %v4021 = vunpack.c.l.s4 1934713408
    %v4022 = vunpack.c.0.s8 %v4021
    %v4023 = vlaneseq
    %v4024 = vshrl.u32 %v4023, 7
    %v4025 = vsub.s32 %v4022, %v4024
    %v4026 = vrot.slane %v4012, %v4025
    %v4027 = vcombine.low %v3962, %v3978
    %v4028 = vcombine.high %v3962, %v3978
    %v4030 = vunpack.c.l.s4 1934713408
    %v4031 = vunpack.c.0.s8 %v4030
    %v4032 = vlaneseq
    %v4033 = vshrl.u32 %v4032, 7
    %v4034 = vsub.s32 %v4031, %v4033
    %v4035 = vrot.slane %v4027, %v4034
    %v4037 = vunpack.c.l.s4 1934713408
    %v4038 = vunpack.c.0.s8 %v4037
    %v4039 = vlaneseq
    %v4040 = vshrl.u32 %v4039, 7
    %v4041 = vsub.s32 %v4038, %v4040
    %v4042 = vrot.slane %v4028, %v4041
    %v4043 = vcombine.low %v3987, %v4003
    %v4044 = vcombine.high %v3987, %v4003
    %v4046 = vunpack.c.l.s4 1934713408
    %v4047 = vunpack.c.0.s8 %v4046
    %v4048 = vlaneseq
    %v4049 = vshrl.u32 %v4048, 7
    %v4050 = vsub.s32 %v4047, %v4049
    %v4051 = vrot.slane %v4043, %v4050
    %v4053 = vunpack.c.l.s4 1934713408
    %v4054 = vunpack.c.0.s8 %v4053
    %v4055 = vlaneseq
    %v4056 = vshrl.u32 %v4055, 7
    %v4057 = vsub.s32 %v4054, %v4056
    %v4058 = vrot.slane %v4044, %v4057
    %v4059 = vcombine.low %v3994, %v4010
    %v4060 = vcombine.high %v3994, %v4010
    %v4062 = vunpack.c.l.s4 1934713408
    %v4063 = vunpack.c.0.s8 %v4062
    %v4064 = vlaneseq
    %v4065 = vshrl.u32 %v4064, 7
    %v4066 = vsub.s32 %v4063, %v4065
    %v4067 = vrot.slane %v4059, %v4066
    %v4069 = vunpack.c.l.s4 1934713408
    %v4070 = vunpack.c.0.s8 %v4069
    %v4071 = vlaneseq
    %v4072 = vshrl.u32 %v4071, 7
    %v4073 = vsub.s32 %v4070, %v4072
    %v4074 = vrot.slane %v4060, %v4073
    %v4075 = vcombine.low %v4019, %v4051
    %v4076 = vcombine.high %v4019, %v4051
    %v4077 = vcombine.low %v4026, %v4058
    %v4078 = vcombine.high %v4026, %v4058
    %v4079 = vcombine.low %v4035, %v4067
    %v4080 = vcombine.high %v4035, %v4067
    %v4081 = vcombine.low %v4042, %v4074
    %v4082 = vcombine.high %v4042, %v4074
    %v4083 = vcombine.low %v3646, %v3654
    %v4084 = vcombine.high %v3646, %v3654
    %v4086 = vunpack.c.l.s4 1983009808
    %v4087 = vunpack.c.0.s8 %v4086
    %v4088 = vlaneseq
    %v4089 = vshrl.u32 %v4088, 7
    %v4090 = vsub.s32 %v4087, %v4089
    %v4091 = vrot.slane %v4083, %v4090
    %v4093 = vunpack.c.l.s4 1983009808
    %v4094 = vunpack.c.0.s8 %v4093
    %v4095 = vlaneseq
    %v4096 = vshrl.u32 %v4095, 7
    %v4097 = vsub.s32 %v4094, %v4096
    %v4098 = vrot.slane %v4084, %v4097
    %v4099 = vcombine.low %v3650, %v3658
    %v4100 = vcombine.high %v3650, %v3658
    %v4102 = vunpack.c.l.s4 1983009808
    %v4103 = vunpack.c.0.s8 %v4102
    %v4104 = vlaneseq
    %v4105 = vshrl.u32 %v4104, 7
    %v4106 = vsub.s32 %v4103, %v4105
    %v4107 = vrot.slane %v4099, %v4106
    %v4109 = vunpack.c.l.s4 1983009808
    %v4110 = vunpack.c.0.s8 %v4109
    %v4111 = vlaneseq
    %v4112 = vshrl.u32 %v4111, 7
    %v4113 = vsub.s32 %v4110, %v4112
    %v4114 = vrot.slane %v4100, %v4113
    %v4115 = vcombine.low %v3662, %v3670
    %v4116 = vcombine.high %v3662, %v3670
    %v4118 = vunpack.c.l.s4 1983009808
    %v4119 = vunpack.c.0.s8 %v4118
    %v4120 = vlaneseq
    %v4121 = vshrl.u32 %v4120, 7
    %v4122 = vsub.s32 %v4119, %v4121
    %v4123 = vrot.slane %v4115, %v4122
    %v4125 = vunpack.c.l.s4 1983009808
    %v4126 = vunpack.c.0.s8 %v4125
    %v4127 = vlaneseq
    %v4128 = vshrl.u32 %v4127, 7
    %v4129 = vsub.s32 %v4126, %v4128
    %v4130 = vrot.slane %v4116, %v4129
    %v4131 = vcombine.low %v3666, %v3674
    %v4132 = vcombine.high %v3666, %v3674
    %v4134 = vunpack.c.l.s4 1983009808
    %v4135 = vunpack.c.0.s8 %v4134
    %v4136 = vlaneseq
    %v4137 = vshrl.u32 %v4136, 7
    %v4138 = vsub.s32 %v4135, %v4137
    %v4139 = vrot.slane %v4131, %v4138
    %v4141 = vunpack.c.l.s4 1983009808
    %v4142 = vunpack.c.0.s8 %v4141
    %v4143 = vlaneseq
    %v4144 = vshrl.u32 %v4143, 7
    %v4145 = vsub.s32 %v4142, %v4144
    %v4146 = vrot.slane %v4132, %v4145
    %v4147 = vcombine.low %v4091, %v4107
    %v4148 = vcombine.high %v4091, %v4107
    %v4150 = vunpack.c.l.s4 1934713408
    %v4151 = vunpack.c.0.s8 %v4150
    %v4152 = vlaneseq
    %v4153 = vshrl.u32 %v4152, 7
    %v4154 = vsub.s32 %v4151, %v4153
    %v4155 = vrot.slane %v4147, %v4154
    %v4157 = vunpack.c.l.s4 1934713408
    %v4158 = vunpack.c.0.s8 %v4157
    %v4159 = vlaneseq
    %v4160 = vshrl.u32 %v4159, 7
    %v4161 = vsub.s32 %v4158, %v4160
    %v4162 = vrot.slane %v4148, %v4161
    %v4163 = vcombine.low %v4098, %v4114
    %v4164 = vcombine.high %v4098, %v4114
    %v4166 = vunpack.c.l.s4 1934713408
    %v4167 = vunpack.c.0.s8 %v4166
    %v4168 = vlaneseq
    %v4169 = vshrl.u32 %v4168, 7
    %v4170 = vsub.s32 %v4167, %v4169
    %v4171 = vrot.slane %v4163, %v4170
    %v4173 = vunpack.c.l.s4 1934713408
    %v4174 = vunpack.c.0.s8 %v4173
    %v4175 = vlaneseq
    %v4176 = vshrl.u32 %v4175, 7
    %v4177 = vsub.s32 %v4174, %v4176
    %v4178 = vrot.slane %v4164, %v4177
    %v4179 = vcombine.low %v4123, %v4139
    %v4180 = vcombine.high %v4123, %v4139
    %v4182 = vunpack.c.l.s4 1934713408
    %v4183 = vunpack.c.0.s8 %v4182
    %v4184 = vlaneseq
    %v4185 = vshrl.u32 %v4184, 7
    %v4186 = vsub.s32 %v4183, %v4185
    %v4187 = vrot.slane %v4179, %v4186
    %v4189 = vunpack.c.l.s4 1934713408
    %v4190 = vunpack.c.0.s8 %v4189
    %v4191 = vlaneseq
    %v4192 = vshrl.u32 %v4191, 7
    %v4193 = vsub.s32 %v4190, %v4192
    %v4194 = vrot.slane %v4180, %v4193
    %v4195 = vcombine.low %v4130, %v4146
    %v4196 = vcombine.high %v4130, %v4146
    %v4198 = vunpack.c.l.s4 1934713408
    %v4199 = vunpack.c.0.s8 %v4198
    %v4200 = vlaneseq
    %v4201 = vshrl.u32 %v4200, 7
    %v4202 = vsub.s32 %v4199, %v4201
    %v4203 = vrot.slane %v4195, %v4202
    %v4205 = vunpack.c.l.s4 1934713408
    %v4206 = vunpack.c.0.s8 %v4205
    %v4207 = vlaneseq
    %v4208 = vshrl.u32 %v4207, 7
    %v4209 = vsub.s32 %v4206, %v4208
    %v4210 = vrot.slane %v4196, %v4209
    %v4211 = vcombine.low %v4155, %v4187
    %v4212 = vcombine.high %v4155, %v4187
    %v4213 = vcombine.low %v4162, %v4194
    %v4214 = vcombine.high %v4162, %v4194
    %v4215 = vcombine.low %v4171, %v4203
    %v4216 = vcombine.high %v4171, %v4203
    %v4217 = vcombine.low %v4178, %v4210
    %v4218 = vcombine.high %v4178, %v4210
    %4220 = vrot.lane.b32.xlu0 %v3804, 4
    %v4221 = vpop.permute.xlu0 %4220
    %4224 = vrot.lane.b32.xlu0 %v3805, 8
    %v4225 = vpop.permute.xlu0 %4224
    %4228 = vrot.lane.b32.xlu0 %v3806, 12
    %v4229 = vpop.permute.xlu0 %4228
    %4232 = vrot.lane.b32.xlu0 %v3807, 16
    %v4233 = vpop.permute.xlu0 %4232
    %4236 = vrot.lane.b32.xlu0 %v3808, 20
    %v4237 = vpop.permute.xlu0 %4236
    %4240 = vrot.lane.b32.xlu0 %v3809, 24
    %v4241 = vpop.permute.xlu0 %4240
    %4244 = vrot.lane.b32.xlu0 %v3810, 28
    %v4245 = vpop.permute.xlu0 %4244
    %4248 = vrot.lane.b32.xlu0 %v3939, 32
    %v4249 = vpop.permute.xlu0 %4248
    %4252 = vrot.lane.b32.xlu0 %v3940, 36
    %v4253 = vpop.permute.xlu0 %4252
    %4256 = vrot.lane.b32.xlu0 %v3941, 40
    %v4257 = vpop.permute.xlu0 %4256
    %4260 = vrot.lane.b32.xlu0 %v3942, 44
    %v4261 = vpop.permute.xlu0 %4260
    %4264 = vrot.lane.b32.xlu0 %v3943, 48
    %v4265 = vpop.permute.xlu0 %4264
    %4268 = vrot.lane.b32.xlu0 %v3944, 52
    %v4269 = vpop.permute.xlu0 %4268
    %4272 = vrot.lane.b32.xlu0 %v3945, 56
    %v4273 = vpop.permute.xlu0 %4272
    %4276 = vrot.lane.b32.xlu0 %v3946, 60
    %v4277 = vpop.permute.xlu0 %4276
    %4280 = vrot.lane.b32.xlu0 %v4075, 64
    %v4281 = vpop.permute.xlu0 %4280
    %4284 = vrot.lane.b32.xlu0 %v4076, 68
    %v4285 = vpop.permute.xlu0 %4284
    %4288 = vrot.lane.b32.xlu0 %v4077, 72
    %v4289 = vpop.permute.xlu0 %4288
    %4292 = vrot.lane.b32.xlu0 %v4078, 76
    %v4293 = vpop.permute.xlu0 %4292
    %4296 = vrot.lane.b32.xlu0 %v4079, 80
    %v4297 = vpop.permute.xlu0 %4296
    %4300 = vrot.lane.b32.xlu0 %v4080, 84
    %v4301 = vpop.permute.xlu0 %4300
    %4304 = vrot.lane.b32.xlu0 %v4081, 88
    %v4305 = vpop.permute.xlu0 %4304
    %4308 = vrot.lane.b32.xlu0 %v4082, 92
    %v4309 = vpop.permute.xlu0 %4308
    %4312 = vrot.lane.b32.xlu0 %v4211, 96
    %v4313 = vpop.permute.xlu0 %4312
    %4316 = vrot.lane.b32.xlu0 %v4212, 100
    %v4317 = vpop.permute.xlu0 %4316
    %4320 = vrot.lane.b32.xlu0 %v4213, 104
    %v4321 = vpop.permute.xlu0 %4320
    %4324 = vrot.lane.b32.xlu0 %v4214, 108
    %v4325 = vpop.permute.xlu0 %4324
    %4328 = vrot.lane.b32.xlu0 %v4215, 112
    %v4329 = vpop.permute.xlu0 %4328
    %4332 = vrot.lane.b32.xlu0 %v4216, 116
    %v4333 = vpop.permute.xlu0 %4332
    %4336 = vrot.lane.b32.xlu0 %v4217, 120
    %v4337 = vpop.permute.xlu0 %4336
    %4340 = vrot.lane.b32.xlu0 %v4218, 124
    %v4341 = vpop.permute.xlu0 %4340
    %v4343 = vsel %vm1432, %v3803, %v4221
    %v4344 = vsel %vm1434, %v4343, %v4225
    %v4345 = vsel %vm1436, %v4344, %v4229
    %v4346 = vsel %vm1438, %v4345, %v4233
    %v4347 = vsel %vm1440, %v4346, %v4237
    %v4348 = vsel %vm1442, %v4347, %v4241
    %v4349 = vsel %vm1444, %v4348, %v4245
    %v4350 = vsel %vm1446, %v4349, %v4249
    %v4351 = vsel %vm1448, %v4350, %v4253
    %v4352 = vsel %vm1450, %v4351, %v4257
    %v4353 = vsel %vm1452, %v4352, %v4261
    %v4354 = vsel %vm1454, %v4353, %v4265
    %v4355 = vsel %vm1456, %v4354, %v4269
    %v4356 = vsel %vm1458, %v4355, %v4273
    %v4357 = vsel %vm1460, %v4356, %v4277
    %v4358 = vsel %vm1462, %v4357, %v4281
    %v4359 = vsel %vm1464, %v4358, %v4285
    %v4360 = vsel %vm1466, %v4359, %v4289
    %v4361 = vsel %vm1468, %v4360, %v4293
    %v4362 = vsel %vm1470, %v4361, %v4297
    %v4363 = vsel %vm1472, %v4362, %v4301
    %v4364 = vsel %vm1474, %v4363, %v4305
    %v4365 = vsel %vm1476, %v4364, %v4309
    %v4366 = vsel %vm1478, %v4365, %v4313
    %v4367 = vsel %vm1480, %v4366, %v4317
    %v4368 = vsel %vm1482, %v4367, %v4321
    %v4369 = vsel %vm1484, %v4368, %v4325
    %v4370 = vsel %vm1486, %v4369, %v4329
    %v4371 = vsel %vm1488, %v4370, %v4333
    %v4372 = vsel %vm1490, %v4371, %v4337
    %v4373 = vsel %vm1492, %v4372, %v4341
    %4374 = vst [vmem:[#allocation8 + $0x10] sm:$0xff] %v4373
    %v4375 = vld [vmem:[#allocation2] sm:$0xff]
    %v4376 = vld [vmem:[#allocation5] sm:$0xff]
    %v4377 = vld [vmem:[#allocation7] sm:$0xff]
    %v4378 = vld [vmem:[%s3] sm:$0xff]
    %v4379 = vlaneseq
    %v4380 = vshrl.u32 %v4379, 7
    %v4381 = vsub.s32 0, %v4380
    %v4382 = vrot.slane %v4375, %v4381
    %s4384 = sor.u32 256, 96
    %4385 = vbcast.lane.b32.xlu0 %v4382, %s4384
    %v4386 = vpop.permute.xlu0 %4385
    %s4388 = sor.u32 256, 104
    %4389 = vbcast.lane.b32.xlu0 %v4382, %s4388
    %v4390 = vpop.permute.xlu0 %4389
    %s4392 = sor.u32 256, 112
    %4393 = vbcast.lane.b32.xlu0 %v4382, %s4392
    %v4394 = vpop.permute.xlu0 %4393
    %s4396 = sor.u32 256, 120
    %4397 = vbcast.lane.b32.xlu0 %v4382, %s4396
    %v4398 = vpop.permute.xlu0 %4397
    %v4399 = vlaneseq
    %v4400 = vshrl.u32 %v4399, 7
    %v4401 = vsub.s32 1, %v4400
    %v4402 = vrot.slane %v4375, %v4401
    %s4404 = sor.u32 256, 96
    %4405 = vbcast.lane.b32.xlu0 %v4402, %s4404
    %v4406 = vpop.permute.xlu0 %4405
    %s4408 = sor.u32 256, 104
    %4409 = vbcast.lane.b32.xlu0 %v4402, %s4408
    %v4410 = vpop.permute.xlu0 %4409
    %s4412 = sor.u32 256, 112
    %4413 = vbcast.lane.b32.xlu0 %v4402, %s4412
    %v4414 = vpop.permute.xlu0 %4413
    %s4416 = sor.u32 256, 120
    %4417 = vbcast.lane.b32.xlu0 %v4402, %s4416
    %v4418 = vpop.permute.xlu0 %4417
    %v4419 = vlaneseq
    %v4420 = vshrl.u32 %v4419, 7
    %v4421 = vsub.s32 2, %v4420
    %v4422 = vrot.slane %v4375, %v4421
    %s4424 = sor.u32 256, 96
    %4425 = vbcast.lane.b32.xlu0 %v4422, %s4424
    %v4426 = vpop.permute.xlu0 %4425
    %s4428 = sor.u32 256, 104
    %4429 = vbcast.lane.b32.xlu0 %v4422, %s4428
    %v4430 = vpop.permute.xlu0 %4429
    %s4432 = sor.u32 256, 112
    %4433 = vbcast.lane.b32.xlu0 %v4422, %s4432
    %v4434 = vpop.permute.xlu0 %4433
    %s4436 = sor.u32 256, 120
    %4437 = vbcast.lane.b32.xlu0 %v4422, %s4436
    %v4438 = vpop.permute.xlu0 %4437
    %v4439 = vlaneseq
    %v4440 = vshrl.u32 %v4439, 7
    %v4441 = vsub.s32 3, %v4440
    %v4442 = vrot.slane %v4375, %v4441
    %s4444 = sor.u32 256, 96
    %4445 = vbcast.lane.b32.xlu0 %v4442, %s4444
    %v4446 = vpop.permute.xlu0 %4445
    %s4448 = sor.u32 256, 104
    %4449 = vbcast.lane.b32.xlu0 %v4442, %s4448
    %v4450 = vpop.permute.xlu0 %4449
    %s4452 = sor.u32 256, 112
    %4453 = vbcast.lane.b32.xlu0 %v4442, %s4452
    %v4454 = vpop.permute.xlu0 %4453
    %s4456 = sor.u32 256, 120
    %4457 = vbcast.lane.b32.xlu0 %v4442, %s4456
    %v4458 = vpop.permute.xlu0 %4457
    %v4459 = vlaneseq
    %v4460 = vshrl.u32 %v4459, 7
    %v4461 = vsub.s32 4, %v4460
    %v4462 = vrot.slane %v4375, %v4461
    %s4464 = sor.u32 256, 96
    %4465 = vbcast.lane.b32.xlu0 %v4462, %s4464
    %v4466 = vpop.permute.xlu0 %4465
    %s4468 = sor.u32 256, 104
    %4469 = vbcast.lane.b32.xlu0 %v4462, %s4468
    %v4470 = vpop.permute.xlu0 %4469
    %s4472 = sor.u32 256, 112
    %4473 = vbcast.lane.b32.xlu0 %v4462, %s4472
    %v4474 = vpop.permute.xlu0 %4473
    %s4476 = sor.u32 256, 120
    %4477 = vbcast.lane.b32.xlu0 %v4462, %s4476
    %v4478 = vpop.permute.xlu0 %4477
    %v4479 = vlaneseq
    %v4480 = vshrl.u32 %v4479, 7
    %v4481 = vsub.s32 5, %v4480
    %v4482 = vrot.slane %v4375, %v4481
    %s4484 = sor.u32 256, 96
    %4485 = vbcast.lane.b32.xlu0 %v4482, %s4484
    %v4486 = vpop.permute.xlu0 %4485
    %s4488 = sor.u32 256, 104
    %4489 = vbcast.lane.b32.xlu0 %v4482, %s4488
    %v4490 = vpop.permute.xlu0 %4489
    %s4492 = sor.u32 256, 112
    %4493 = vbcast.lane.b32.xlu0 %v4482, %s4492
    %v4494 = vpop.permute.xlu0 %4493
    %s4496 = sor.u32 256, 120
    %4497 = vbcast.lane.b32.xlu0 %v4482, %s4496
    %v4498 = vpop.permute.xlu0 %4497
    %v4499 = vlaneseq
    %v4500 = vshrl.u32 %v4499, 7
    %v4501 = vsub.s32 6, %v4500
    %v4502 = vrot.slane %v4375, %v4501
    %s4504 = sor.u32 256, 96
    %4505 = vbcast.lane.b32.xlu0 %v4502, %s4504
    %v4506 = vpop.permute.xlu0 %4505
    %s4508 = sor.u32 256, 104
    %4509 = vbcast.lane.b32.xlu0 %v4502, %s4508
    %v4510 = vpop.permute.xlu0 %4509
    %s4512 = sor.u32 256, 112
    %4513 = vbcast.lane.b32.xlu0 %v4502, %s4512
    %v4514 = vpop.permute.xlu0 %4513
    %s4516 = sor.u32 256, 120
    %4517 = vbcast.lane.b32.xlu0 %v4502, %s4516
    %v4518 = vpop.permute.xlu0 %4517
    %v4519 = vlaneseq
    %v4520 = vshrl.u32 %v4519, 7
    %v4521 = vsub.s32 7, %v4520
    %v4522 = vrot.slane %v4375, %v4521
    %s4524 = sor.u32 256, 96
    %4525 = vbcast.lane.b32.xlu0 %v4522, %s4524
    %v4526 = vpop.permute.xlu0 %4525
    %s4528 = sor.u32 256, 104
    %4529 = vbcast.lane.b32.xlu0 %v4522, %s4528
    %v4530 = vpop.permute.xlu0 %4529
    %s4532 = sor.u32 256, 112
    %4533 = vbcast.lane.b32.xlu0 %v4522, %s4532
    %v4534 = vpop.permute.xlu0 %4533
    %s4536 = sor.u32 256, 120
    %4537 = vbcast.lane.b32.xlu0 %v4522, %s4536
    %v4538 = vpop.permute.xlu0 %4537
    %v4539 = vlaneseq
    %v4540 = vshrl.u32 %v4539, 7
    %v4541 = vsub.s32 0, %v4540
    %v4542 = vrot.slane %v4377, %v4541
    %s4544 = sor.u32 256, 96
    %4545 = vbcast.lane.b32.xlu0 %v4542, %s4544
    %v4546 = vpop.permute.xlu0 %4545
    %s4548 = sor.u32 256, 104
    %4549 = vbcast.lane.b32.xlu0 %v4542, %s4548
    %v4550 = vpop.permute.xlu0 %4549
    %s4552 = sor.u32 256, 112
    %4553 = vbcast.lane.b32.xlu0 %v4542, %s4552
    %v4554 = vpop.permute.xlu0 %4553
    %s4556 = sor.u32 256, 120
    %4557 = vbcast.lane.b32.xlu0 %v4542, %s4556
    %v4558 = vpop.permute.xlu0 %4557
    %v4559 = vlaneseq
    %v4560 = vshrl.u32 %v4559, 7
    %v4561 = vsub.s32 1, %v4560
    %v4562 = vrot.slane %v4377, %v4561
    %s4564 = sor.u32 256, 96
    %4565 = vbcast.lane.b32.xlu0 %v4562, %s4564
    %v4566 = vpop.permute.xlu0 %4565
    %s4568 = sor.u32 256, 104
    %4569 = vbcast.lane.b32.xlu0 %v4562, %s4568
    %v4570 = vpop.permute.xlu0 %4569
    %s4572 = sor.u32 256, 112
    %4573 = vbcast.lane.b32.xlu0 %v4562, %s4572
    %v4574 = vpop.permute.xlu0 %4573
    %s4576 = sor.u32 256, 120
    %4577 = vbcast.lane.b32.xlu0 %v4562, %s4576
    %v4578 = vpop.permute.xlu0 %4577
    %v4579 = vlaneseq
    %v4580 = vshrl.u32 %v4579, 7
    %v4581 = vsub.s32 2, %v4580
    %v4582 = vrot.slane %v4377, %v4581
    %s4584 = sor.u32 256, 96
    %4585 = vbcast.lane.b32.xlu0 %v4582, %s4584
    %v4586 = vpop.permute.xlu0 %4585
    %s4588 = sor.u32 256, 104
    %4589 = vbcast.lane.b32.xlu0 %v4582, %s4588
    %v4590 = vpop.permute.xlu0 %4589
    %s4592 = sor.u32 256, 112
    %4593 = vbcast.lane.b32.xlu0 %v4582, %s4592
    %v4594 = vpop.permute.xlu0 %4593
    %s4596 = sor.u32 256, 120
    %4597 = vbcast.lane.b32.xlu0 %v4582, %s4596
    %v4598 = vpop.permute.xlu0 %4597
    %v4599 = vlaneseq
    %v4600 = vshrl.u32 %v4599, 7
    %v4601 = vsub.s32 3, %v4600
    %v4602 = vrot.slane %v4377, %v4601
    %s4604 = sor.u32 256, 96
    %4605 = vbcast.lane.b32.xlu0 %v4602, %s4604
    %v4606 = vpop.permute.xlu0 %4605
    %s4608 = sor.u32 256, 104
    %4609 = vbcast.lane.b32.xlu0 %v4602, %s4608
    %v4610 = vpop.permute.xlu0 %4609
    %s4612 = sor.u32 256, 112
    %4613 = vbcast.lane.b32.xlu0 %v4602, %s4612
    %v4614 = vpop.permute.xlu0 %4613
    %s4616 = sor.u32 256, 120
    %4617 = vbcast.lane.b32.xlu0 %v4602, %s4616
    %v4618 = vpop.permute.xlu0 %4617
    %v4619 = vlaneseq
    %v4620 = vshrl.u32 %v4619, 7
    %v4621 = vsub.s32 4, %v4620
    %v4622 = vrot.slane %v4377, %v4621
    %s4624 = sor.u32 256, 96
    %4625 = vbcast.lane.b32.xlu0 %v4622, %s4624
    %v4626 = vpop.permute.xlu0 %4625
    %s4628 = sor.u32 256, 104
    %4629 = vbcast.lane.b32.xlu0 %v4622, %s4628
    %v4630 = vpop.permute.xlu0 %4629
    %s4632 = sor.u32 256, 112
    %4633 = vbcast.lane.b32.xlu0 %v4622, %s4632
    %v4634 = vpop.permute.xlu0 %4633
    %s4636 = sor.u32 256, 120
    %4637 = vbcast.lane.b32.xlu0 %v4622, %s4636
    %v4638 = vpop.permute.xlu0 %4637
    %v4639 = vlaneseq
    %v4640 = vshrl.u32 %v4639, 7
    %v4641 = vsub.s32 5, %v4640
    %v4642 = vrot.slane %v4377, %v4641
    %s4644 = sor.u32 256, 96
    %4645 = vbcast.lane.b32.xlu0 %v4642, %s4644
    %v4646 = vpop.permute.xlu0 %4645
    %s4648 = sor.u32 256, 104
    %4649 = vbcast.lane.b32.xlu0 %v4642, %s4648
    %v4650 = vpop.permute.xlu0 %4649
    %s4652 = sor.u32 256, 112
    %4653 = vbcast.lane.b32.xlu0 %v4642, %s4652
    %v4654 = vpop.permute.xlu0 %4653
    %s4656 = sor.u32 256, 120
    %4657 = vbcast.lane.b32.xlu0 %v4642, %s4656
    %v4658 = vpop.permute.xlu0 %4657
    %v4659 = vlaneseq
    %v4660 = vshrl.u32 %v4659, 7
    %v4661 = vsub.s32 6, %v4660
    %v4662 = vrot.slane %v4377, %v4661
    %s4664 = sor.u32 256, 96
    %4665 = vbcast.lane.b32.xlu0 %v4662, %s4664
    %v4666 = vpop.permute.xlu0 %4665
    %s4668 = sor.u32 256, 104
    %4669 = vbcast.lane.b32.xlu0 %v4662, %s4668
    %v4670 = vpop.permute.xlu0 %4669
    %s4672 = sor.u32 256, 112
    %4673 = vbcast.lane.b32.xlu0 %v4662, %s4672
    %v4674 = vpop.permute.xlu0 %4673
    %s4676 = sor.u32 256, 120
    %4677 = vbcast.lane.b32.xlu0 %v4662, %s4676
    %v4678 = vpop.permute.xlu0 %4677
    %v4679 = vlaneseq
    %v4680 = vshrl.u32 %v4679, 7
    %v4681 = vsub.s32 7, %v4680
    %v4682 = vrot.slane %v4377, %v4681
    %s4684 = sor.u32 256, 96
    %4685 = vbcast.lane.b32.xlu0 %v4682, %s4684
    %v4686 = vpop.permute.xlu0 %4685
    %s4688 = sor.u32 256, 104
    %4689 = vbcast.lane.b32.xlu0 %v4682, %s4688
    %v4690 = vpop.permute.xlu0 %4689
    %s4692 = sor.u32 256, 112
    %4693 = vbcast.lane.b32.xlu0 %v4682, %s4692
    %v4694 = vpop.permute.xlu0 %4693
    %s4696 = sor.u32 256, 120
    %4697 = vbcast.lane.b32.xlu0 %v4682, %s4696
    %v4698 = vpop.permute.xlu0 %4697
    %v4699 = vlaneseq
    %v4700 = vshrl.u32 %v4699, 7
    %v4701 = vsub.s32 0, %v4700
    %v4702 = vrot.slane %v4376, %v4701
    %s4704 = sor.u32 256, 96
    %4705 = vbcast.lane.b32.xlu0 %v4702, %s4704
    %v4706 = vpop.permute.xlu0 %4705
    %s4708 = sor.u32 256, 104
    %4709 = vbcast.lane.b32.xlu0 %v4702, %s4708
    %v4710 = vpop.permute.xlu0 %4709
    %s4712 = sor.u32 256, 112
    %4713 = vbcast.lane.b32.xlu0 %v4702, %s4712
    %v4714 = vpop.permute.xlu0 %4713
    %s4716 = sor.u32 256, 120
    %4717 = vbcast.lane.b32.xlu0 %v4702, %s4716
    %v4718 = vpop.permute.xlu0 %4717
    %v4719 = vlaneseq
    %v4720 = vshrl.u32 %v4719, 7
    %v4721 = vsub.s32 1, %v4720
    %v4722 = vrot.slane %v4376, %v4721
    %s4724 = sor.u32 256, 96
    %4725 = vbcast.lane.b32.xlu0 %v4722, %s4724
    %v4726 = vpop.permute.xlu0 %4725
    %s4728 = sor.u32 256, 104
    %4729 = vbcast.lane.b32.xlu0 %v4722, %s4728
    %v4730 = vpop.permute.xlu0 %4729
    %s4732 = sor.u32 256, 112
    %4733 = vbcast.lane.b32.xlu0 %v4722, %s4732
    %v4734 = vpop.permute.xlu0 %4733
    %s4736 = sor.u32 256, 120
    %4737 = vbcast.lane.b32.xlu0 %v4722, %s4736
    %v4738 = vpop.permute.xlu0 %4737
    %v4739 = vlaneseq
    %v4740 = vshrl.u32 %v4739, 7
    %v4741 = vsub.s32 2, %v4740
    %v4742 = vrot.slane %v4376, %v4741
    %s4744 = sor.u32 256, 96
    %4745 = vbcast.lane.b32.xlu0 %v4742, %s4744
    %v4746 = vpop.permute.xlu0 %4745
    %s4748 = sor.u32 256, 104
    %4749 = vbcast.lane.b32.xlu0 %v4742, %s4748
    %v4750 = vpop.permute.xlu0 %4749
    %s4752 = sor.u32 256, 112
    %4753 = vbcast.lane.b32.xlu0 %v4742, %s4752
    %v4754 = vpop.permute.xlu0 %4753
    %s4756 = sor.u32 256, 120
    %4757 = vbcast.lane.b32.xlu0 %v4742, %s4756
    %v4758 = vpop.permute.xlu0 %4757
    %v4759 = vlaneseq
    %v4760 = vshrl.u32 %v4759, 7
    %v4761 = vsub.s32 3, %v4760
    %v4762 = vrot.slane %v4376, %v4761
    %s4764 = sor.u32 256, 96
    %4765 = vbcast.lane.b32.xlu0 %v4762, %s4764
    %v4766 = vpop.permute.xlu0 %4765
    %s4768 = sor.u32 256, 104
    %4769 = vbcast.lane.b32.xlu0 %v4762, %s4768
    %v4770 = vpop.permute.xlu0 %4769
    %s4772 = sor.u32 256, 112
    %4773 = vbcast.lane.b32.xlu0 %v4762, %s4772
    %v4774 = vpop.permute.xlu0 %4773
    %s4776 = sor.u32 256, 120
    %4777 = vbcast.lane.b32.xlu0 %v4762, %s4776
    %v4778 = vpop.permute.xlu0 %4777
    %v4779 = vlaneseq
    %v4780 = vshrl.u32 %v4779, 7
    %v4781 = vsub.s32 4, %v4780
    %v4782 = vrot.slane %v4376, %v4781
    %s4784 = sor.u32 256, 96
    %4785 = vbcast.lane.b32.xlu0 %v4782, %s4784
    %v4786 = vpop.permute.xlu0 %4785
    %s4788 = sor.u32 256, 104
    %4789 = vbcast.lane.b32.xlu0 %v4782, %s4788
    %v4790 = vpop.permute.xlu0 %4789
    %s4792 = sor.u32 256, 112
    %4793 = vbcast.lane.b32.xlu0 %v4782, %s4792
    %v4794 = vpop.permute.xlu0 %4793
    %s4796 = sor.u32 256, 120
    %4797 = vbcast.lane.b32.xlu0 %v4782, %s4796
    %v4798 = vpop.permute.xlu0 %4797
    %v4799 = vlaneseq
    %v4800 = vshrl.u32 %v4799, 7
    %v4801 = vsub.s32 5, %v4800
    %v4802 = vrot.slane %v4376, %v4801
    %s4804 = sor.u32 256, 96
    %4805 = vbcast.lane.b32.xlu0 %v4802, %s4804
    %v4806 = vpop.permute.xlu0 %4805
    %s4808 = sor.u32 256, 104
    %4809 = vbcast.lane.b32.xlu0 %v4802, %s4808
    %v4810 = vpop.permute.xlu0 %4809
    %s4812 = sor.u32 256, 112
    %4813 = vbcast.lane.b32.xlu0 %v4802, %s4812
    %v4814 = vpop.permute.xlu0 %4813
    %s4816 = sor.u32 256, 120
    %4817 = vbcast.lane.b32.xlu0 %v4802, %s4816
    %v4818 = vpop.permute.xlu0 %4817
    %v4819 = vlaneseq
    %v4820 = vshrl.u32 %v4819, 7
    %v4821 = vsub.s32 6, %v4820
    %v4822 = vrot.slane %v4376, %v4821
    %s4824 = sor.u32 256, 96
    %4825 = vbcast.lane.b32.xlu0 %v4822, %s4824
    %v4826 = vpop.permute.xlu0 %4825
    %s4828 = sor.u32 256, 104
    %4829 = vbcast.lane.b32.xlu0 %v4822, %s4828
    %v4830 = vpop.permute.xlu0 %4829
    %s4832 = sor.u32 256, 112
    %4833 = vbcast.lane.b32.xlu0 %v4822, %s4832
    %v4834 = vpop.permute.xlu0 %4833
    %s4836 = sor.u32 256, 120
    %4837 = vbcast.lane.b32.xlu0 %v4822, %s4836
    %v4838 = vpop.permute.xlu0 %4837
    %v4839 = vlaneseq
    %v4840 = vshrl.u32 %v4839, 7
    %v4841 = vsub.s32 7, %v4840
    %v4842 = vrot.slane %v4376, %v4841
    %s4844 = sor.u32 256, 96
    %4845 = vbcast.lane.b32.xlu0 %v4842, %s4844
    %v4846 = vpop.permute.xlu0 %4845
    %s4848 = sor.u32 256, 104
    %4849 = vbcast.lane.b32.xlu0 %v4842, %s4848
    %v4850 = vpop.permute.xlu0 %4849
    %s4852 = sor.u32 256, 112
    %4853 = vbcast.lane.b32.xlu0 %v4842, %s4852
    %v4854 = vpop.permute.xlu0 %4853
    %s4856 = sor.u32 256, 120
    %4857 = vbcast.lane.b32.xlu0 %v4842, %s4856
    %v4858 = vpop.permute.xlu0 %4857
    %v4859 = vlaneseq
    %v4860 = vshrl.u32 %v4859, 7
    %v4861 = vsub.s32 0, %v4860
    %v4862 = vrot.slane %v4378, %v4861
    %s4864 = sor.u32 256, 96
    %4865 = vbcast.lane.b32.xlu0 %v4862, %s4864
    %v4866 = vpop.permute.xlu0 %4865
    %s4868 = sor.u32 256, 104
    %4869 = vbcast.lane.b32.xlu0 %v4862, %s4868
    %v4870 = vpop.permute.xlu0 %4869
    %s4872 = sor.u32 256, 112
    %4873 = vbcast.lane.b32.xlu0 %v4862, %s4872
    %v4874 = vpop.permute.xlu0 %4873
    %s4876 = sor.u32 256, 120
    %4877 = vbcast.lane.b32.xlu0 %v4862, %s4876
    %v4878 = vpop.permute.xlu0 %4877
    %v4879 = vlaneseq
    %v4880 = vshrl.u32 %v4879, 7
    %v4881 = vsub.s32 1, %v4880
    %v4882 = vrot.slane %v4378, %v4881
    %s4884 = sor.u32 256, 96
    %4885 = vbcast.lane.b32.xlu0 %v4882, %s4884
    %v4886 = vpop.permute.xlu0 %4885
    %s4888 = sor.u32 256, 104
    %4889 = vbcast.lane.b32.xlu0 %v4882, %s4888
    %v4890 = vpop.permute.xlu0 %4889
    %s4892 = sor.u32 256, 112
    %4893 = vbcast.lane.b32.xlu0 %v4882, %s4892
    %v4894 = vpop.permute.xlu0 %4893
    %s4896 = sor.u32 256, 120
    %4897 = vbcast.lane.b32.xlu0 %v4882, %s4896
    %v4898 = vpop.permute.xlu0 %4897
    %v4899 = vlaneseq
    %v4900 = vshrl.u32 %v4899, 7
    %v4901 = vsub.s32 2, %v4900
    %v4902 = vrot.slane %v4378, %v4901
    %s4904 = sor.u32 256, 96
    %4905 = vbcast.lane.b32.xlu0 %v4902, %s4904
    %v4906 = vpop.permute.xlu0 %4905
    %s4908 = sor.u32 256, 104
    %4909 = vbcast.lane.b32.xlu0 %v4902, %s4908
    %v4910 = vpop.permute.xlu0 %4909
    %s4912 = sor.u32 256, 112
    %4913 = vbcast.lane.b32.xlu0 %v4902, %s4912
    %v4914 = vpop.permute.xlu0 %4913
    %s4916 = sor.u32 256, 120
    %4917 = vbcast.lane.b32.xlu0 %v4902, %s4916
    %v4918 = vpop.permute.xlu0 %4917
    %v4919 = vlaneseq
    %v4920 = vshrl.u32 %v4919, 7
    %v4921 = vsub.s32 3, %v4920
    %v4922 = vrot.slane %v4378, %v4921
    %s4924 = sor.u32 256, 96
    %4925 = vbcast.lane.b32.xlu0 %v4922, %s4924
    %v4926 = vpop.permute.xlu0 %4925
    %s4928 = sor.u32 256, 104
    %4929 = vbcast.lane.b32.xlu0 %v4922, %s4928
    %v4930 = vpop.permute.xlu0 %4929
    %s4932 = sor.u32 256, 112
    %4933 = vbcast.lane.b32.xlu0 %v4922, %s4932
    %v4934 = vpop.permute.xlu0 %4933
    %s4936 = sor.u32 256, 120
    %4937 = vbcast.lane.b32.xlu0 %v4922, %s4936
    %v4938 = vpop.permute.xlu0 %4937
    %v4939 = vlaneseq
    %v4940 = vshrl.u32 %v4939, 7
    %v4941 = vsub.s32 4, %v4940
    %v4942 = vrot.slane %v4378, %v4941
    %s4944 = sor.u32 256, 96
    %4945 = vbcast.lane.b32.xlu0 %v4942, %s4944
    %v4946 = vpop.permute.xlu0 %4945
    %s4948 = sor.u32 256, 104
    %4949 = vbcast.lane.b32.xlu0 %v4942, %s4948
    %v4950 = vpop.permute.xlu0 %4949
    %s4952 = sor.u32 256, 112
    %4953 = vbcast.lane.b32.xlu0 %v4942, %s4952
    %v4954 = vpop.permute.xlu0 %4953
    %s4956 = sor.u32 256, 120
    %4957 = vbcast.lane.b32.xlu0 %v4942, %s4956
    %v4958 = vpop.permute.xlu0 %4957
    %v4959 = vlaneseq
    %v4960 = vshrl.u32 %v4959, 7
    %v4961 = vsub.s32 5, %v4960
    %v4962 = vrot.slane %v4378, %v4961
    %s4964 = sor.u32 256, 96
    %4965 = vbcast.lane.b32.xlu0 %v4962, %s4964
    %v4966 = vpop.permute.xlu0 %4965
    %s4968 = sor.u32 256, 104
    %4969 = vbcast.lane.b32.xlu0 %v4962, %s4968
    %v4970 = vpop.permute.xlu0 %4969
    %s4972 = sor.u32 256, 112
    %4973 = vbcast.lane.b32.xlu0 %v4962, %s4972
    %v4974 = vpop.permute.xlu0 %4973
    %s4976 = sor.u32 256, 120
    %4977 = vbcast.lane.b32.xlu0 %v4962, %s4976
    %v4978 = vpop.permute.xlu0 %4977
    %v4979 = vlaneseq
    %v4980 = vshrl.u32 %v4979, 7
    %v4981 = vsub.s32 6, %v4980
    %v4982 = vrot.slane %v4378, %v4981
    %s4984 = sor.u32 256, 96
    %4985 = vbcast.lane.b32.xlu0 %v4982, %s4984
    %v4986 = vpop.permute.xlu0 %4985
    %s4988 = sor.u32 256, 104
    %4989 = vbcast.lane.b32.xlu0 %v4982, %s4988
    %v4990 = vpop.permute.xlu0 %4989
    %s4992 = sor.u32 256, 112
    %4993 = vbcast.lane.b32.xlu0 %v4982, %s4992
    %v4994 = vpop.permute.xlu0 %4993
    %s4996 = sor.u32 256, 120
    %4997 = vbcast.lane.b32.xlu0 %v4982, %s4996
    %v4998 = vpop.permute.xlu0 %4997
    %v4999 = vlaneseq
    %v5000 = vshrl.u32 %v4999, 7
    %v5001 = vsub.s32 7, %v5000
    %v5002 = vrot.slane %v4378, %v5001
    %s5004 = sor.u32 256, 96
    %5005 = vbcast.lane.b32.xlu0 %v5002, %s5004
    %v5006 = vpop.permute.xlu0 %5005
    %s5008 = sor.u32 256, 104
    %5009 = vbcast.lane.b32.xlu0 %v5002, %s5008
    %v5010 = vpop.permute.xlu0 %5009
    %s5012 = sor.u32 256, 112
    %5013 = vbcast.lane.b32.xlu0 %v5002, %s5012
    %v5014 = vpop.permute.xlu0 %5013
    %s5016 = sor.u32 256, 120
    %5017 = vbcast.lane.b32.xlu0 %v5002, %s5016
    %v5018 = vpop.permute.xlu0 %5017
    %v5019 = vsel %vm665, %v4386, %v4546
    %v5020 = vsel %vm665, %v4390, %v4550
    %v5021 = vsel %vm665, %v4394, %v4554
    %v5022 = vsel %vm665, %v4398, %v4558
    %v5023 = vsel %vm665, %v4406, %v4566
    %v5024 = vsel %vm665, %v4410, %v4570
    %v5025 = vsel %vm665, %v4414, %v4574
    %v5026 = vsel %vm665, %v4418, %v4578
    %v5027 = vsel %vm665, %v4426, %v4586
    %v5028 = vsel %vm665, %v4430, %v4590
    %v5029 = vsel %vm665, %v4434, %v4594
    %v5030 = vsel %vm665, %v4438, %v4598
    %v5031 = vsel %vm665, %v4446, %v4606
    %v5032 = vsel %vm665, %v4450, %v4610
    %v5033 = vsel %vm665, %v4454, %v4614
    %v5034 = vsel %vm665, %v4458, %v4618
    %v5035 = vsel %vm665, %v4466, %v4626
    %v5036 = vsel %vm665, %v4470, %v4630
    %v5037 = vsel %vm665, %v4474, %v4634
    %v5038 = vsel %vm665, %v4478, %v4638
    %v5039 = vsel %vm665, %v4486, %v4646
    %v5040 = vsel %vm665, %v4490, %v4650
    %v5041 = vsel %vm665, %v4494, %v4654
    %v5042 = vsel %vm665, %v4498, %v4658
    %v5043 = vsel %vm665, %v4506, %v4666
    %v5044 = vsel %vm665, %v4510, %v4670
    %v5045 = vsel %vm665, %v4514, %v4674
    %v5046 = vsel %vm665, %v4518, %v4678
    %v5047 = vsel %vm665, %v4526, %v4686
    %v5048 = vsel %vm665, %v4530, %v4690
    %v5049 = vsel %vm665, %v4534, %v4694
    %v5050 = vsel %vm665, %v4538, %v4698
    %v5051 = vsel %vm698, %v5019, %v4706
    %v5052 = vsel %vm698, %v5020, %v4710
    %v5053 = vsel %vm698, %v5021, %v4714
    %v5054 = vsel %vm698, %v5022, %v4718
    %v5055 = vsel %vm698, %v5023, %v4726
    %v5056 = vsel %vm698, %v5024, %v4730
    %v5057 = vsel %vm698, %v5025, %v4734
    %v5058 = vsel %vm698, %v5026, %v4738
    %v5059 = vsel %vm698, %v5027, %v4746
    %v5060 = vsel %vm698, %v5028, %v4750
    %v5061 = vsel %vm698, %v5029, %v4754
    %v5062 = vsel %vm698, %v5030, %v4758
    %v5063 = vsel %vm698, %v5031, %v4766
    %v5064 = vsel %vm698, %v5032, %v4770
    %v5065 = vsel %vm698, %v5033, %v4774
    %v5066 = vsel %vm698, %v5034, %v4778
    %v5067 = vsel %vm698, %v5035, %v4786
    %v5068 = vsel %vm698, %v5036, %v4790
    %v5069 = vsel %vm698, %v5037, %v4794
    %v5070 = vsel %vm698, %v5038, %v4798
    %v5071 = vsel %vm698, %v5039, %v4806
    %v5072 = vsel %vm698, %v5040, %v4810
    %v5073 = vsel %vm698, %v5041, %v4814
    %v5074 = vsel %vm698, %v5042, %v4818
    %v5075 = vsel %vm698, %v5043, %v4826
    %v5076 = vsel %vm698, %v5044, %v4830
    %v5077 = vsel %vm698, %v5045, %v4834
    %v5078 = vsel %vm698, %v5046, %v4838
    %v5079 = vsel %vm698, %v5047, %v4846
    %v5080 = vsel %vm698, %v5048, %v4850
    %v5081 = vsel %vm698, %v5049, %v4854
    %v5082 = vsel %vm698, %v5050, %v4858
    %v5083 = vsel %vm731, %v5051, %v4866
    %v5084 = vsel %vm731, %v5052, %v4870
    %v5085 = vsel %vm731, %v5053, %v4874
    %v5086 = vsel %vm731, %v5054, %v4878
    %v5087 = vsel %vm731, %v5055, %v4886
    %v5088 = vsel %vm731, %v5056, %v4890
    %v5089 = vsel %vm731, %v5057, %v4894
    %v5090 = vsel %vm731, %v5058, %v4898
    %v5091 = vsel %vm731, %v5059, %v4906
    %v5092 = vsel %vm731, %v5060, %v4910
    %v5093 = vsel %vm731, %v5061, %v4914
    %v5094 = vsel %vm731, %v5062, %v4918
    %v5095 = vsel %vm731, %v5063, %v4926
    %v5096 = vsel %vm731, %v5064, %v4930
    %v5097 = vsel %vm731, %v5065, %v4934
    %v5098 = vsel %vm731, %v5066, %v4938
    %v5099 = vsel %vm731, %v5067, %v4946
    %v5100 = vsel %vm731, %v5068, %v4950
    %v5101 = vsel %vm731, %v5069, %v4954
    %v5102 = vsel %vm731, %v5070, %v4958
    %v5103 = vsel %vm731, %v5071, %v4966
    %v5104 = vsel %vm731, %v5072, %v4970
    %v5105 = vsel %vm731, %v5073, %v4974
    %v5106 = vsel %vm731, %v5074, %v4978
    %v5107 = vsel %vm731, %v5075, %v4986
    %v5108 = vsel %vm731, %v5076, %v4990
    %v5109 = vsel %vm731, %v5077, %v4994
    %v5110 = vsel %vm731, %v5078, %v4998
    %v5111 = vsel %vm731, %v5079, %v5006
    %v5112 = vsel %vm731, %v5080, %v5010
    %v5113 = vsel %vm731, %v5081, %v5014
    %v5114 = vsel %vm731, %v5082, %v5018
    %v5115 = vcombine.low %v5083, %v5091
    %v5116 = vcombine.high %v5083, %v5091
    %v5118 = vunpack.c.l.s4 1983009808
    %v5119 = vunpack.c.0.s8 %v5118
    %v5120 = vlaneseq
    %v5121 = vshrl.u32 %v5120, 7
    %v5122 = vsub.s32 %v5119, %v5121
    %v5123 = vrot.slane %v5115, %v5122
    %v5125 = vunpack.c.l.s4 1983009808
    %v5126 = vunpack.c.0.s8 %v5125
    %v5127 = vlaneseq
    %v5128 = vshrl.u32 %v5127, 7
    %v5129 = vsub.s32 %v5126, %v5128
    %v5130 = vrot.slane %v5116, %v5129
    %v5131 = vcombine.low %v5087, %v5095
    %v5132 = vcombine.high %v5087, %v5095
    %v5134 = vunpack.c.l.s4 1983009808
    %v5135 = vunpack.c.0.s8 %v5134
    %v5136 = vlaneseq
    %v5137 = vshrl.u32 %v5136, 7
    %v5138 = vsub.s32 %v5135, %v5137
    %v5139 = vrot.slane %v5131, %v5138
    %v5141 = vunpack.c.l.s4 1983009808
    %v5142 = vunpack.c.0.s8 %v5141
    %v5143 = vlaneseq
    %v5144 = vshrl.u32 %v5143, 7
    %v5145 = vsub.s32 %v5142, %v5144
    %v5146 = vrot.slane %v5132, %v5145
    %v5147 = vcombine.low %v5099, %v5107
    %v5148 = vcombine.high %v5099, %v5107
    %v5150 = vunpack.c.l.s4 1983009808
    %v5151 = vunpack.c.0.s8 %v5150
    %v5152 = vlaneseq
    %v5153 = vshrl.u32 %v5152, 7
    %v5154 = vsub.s32 %v5151, %v5153
    %v5155 = vrot.slane %v5147, %v5154
    %v5157 = vunpack.c.l.s4 1983009808
    %v5158 = vunpack.c.0.s8 %v5157
    %v5159 = vlaneseq
    %v5160 = vshrl.u32 %v5159, 7
    %v5161 = vsub.s32 %v5158, %v5160
    %v5162 = vrot.slane %v5148, %v5161
    %v5163 = vcombine.low %v5103, %v5111
    %v5164 = vcombine.high %v5103, %v5111
    %v5166 = vunpack.c.l.s4 1983009808
    %v5167 = vunpack.c.0.s8 %v5166
    %v5168 = vlaneseq
    %v5169 = vshrl.u32 %v5168, 7
    %v5170 = vsub.s32 %v5167, %v5169
    %v5171 = vrot.slane %v5163, %v5170
    %v5173 = vunpack.c.l.s4 1983009808
    %v5174 = vunpack.c.0.s8 %v5173
    %v5175 = vlaneseq
    %v5176 = vshrl.u32 %v5175, 7
    %v5177 = vsub.s32 %v5174, %v5176
    %v5178 = vrot.slane %v5164, %v5177
    %v5179 = vcombine.low %v5123, %v5139
    %v5180 = vcombine.high %v5123, %v5139
    %v5182 = vunpack.c.l.s4 1934713408
    %v5183 = vunpack.c.0.s8 %v5182
    %v5184 = vlaneseq
    %v5185 = vshrl.u32 %v5184, 7
    %v5186 = vsub.s32 %v5183, %v5185
    %v5187 = vrot.slane %v5179, %v5186
    %v5189 = vunpack.c.l.s4 1934713408
    %v5190 = vunpack.c.0.s8 %v5189
    %v5191 = vlaneseq
    %v5192 = vshrl.u32 %v5191, 7
    %v5193 = vsub.s32 %v5190, %v5192
    %v5194 = vrot.slane %v5180, %v5193
    %v5195 = vcombine.low %v5130, %v5146
    %v5196 = vcombine.high %v5130, %v5146
    %v5198 = vunpack.c.l.s4 1934713408
    %v5199 = vunpack.c.0.s8 %v5198
    %v5200 = vlaneseq
    %v5201 = vshrl.u32 %v5200, 7
    %v5202 = vsub.s32 %v5199, %v5201
    %v5203 = vrot.slane %v5195, %v5202
    %v5205 = vunpack.c.l.s4 1934713408
    %v5206 = vunpack.c.0.s8 %v5205
    %v5207 = vlaneseq
    %v5208 = vshrl.u32 %v5207, 7
    %v5209 = vsub.s32 %v5206, %v5208
    %v5210 = vrot.slane %v5196, %v5209
    %v5211 = vcombine.low %v5155, %v5171
    %v5212 = vcombine.high %v5155, %v5171
    %v5214 = vunpack.c.l.s4 1934713408
    %v5215 = vunpack.c.0.s8 %v5214
    %v5216 = vlaneseq
    %v5217 = vshrl.u32 %v5216, 7
    %v5218 = vsub.s32 %v5215, %v5217
    %v5219 = vrot.slane %v5211, %v5218
    %v5221 = vunpack.c.l.s4 1934713408
    %v5222 = vunpack.c.0.s8 %v5221
    %v5223 = vlaneseq
    %v5224 = vshrl.u32 %v5223, 7
    %v5225 = vsub.s32 %v5222, %v5224
    %v5226 = vrot.slane %v5212, %v5225
    %v5227 = vcombine.low %v5162, %v5178
    %v5228 = vcombine.high %v5162, %v5178
    %v5230 = vunpack.c.l.s4 1934713408
    %v5231 = vunpack.c.0.s8 %v5230
    %v5232 = vlaneseq
    %v5233 = vshrl.u32 %v5232, 7
    %v5234 = vsub.s32 %v5231, %v5233
    %v5235 = vrot.slane %v5227, %v5234
    %v5237 = vunpack.c.l.s4 1934713408
    %v5238 = vunpack.c.0.s8 %v5237
    %v5239 = vlaneseq
    %v5240 = vshrl.u32 %v5239, 7
    %v5241 = vsub.s32 %v5238, %v5240
    %v5242 = vrot.slane %v5228, %v5241
    %v5243 = vcombine.low %v5187, %v5219
    %v5244 = vcombine.high %v5187, %v5219
    %v5245 = vcombine.low %v5194, %v5226
    %v5246 = vcombine.high %v5194, %v5226
    %v5247 = vcombine.low %v5203, %v5235
    %v5248 = vcombine.high %v5203, %v5235
    %v5249 = vcombine.low %v5210, %v5242
    %v5250 = vcombine.high %v5210, %v5242
    %v5251 = vcombine.low %v5084, %v5092
    %v5252 = vcombine.high %v5084, %v5092
    %v5254 = vunpack.c.l.s4 1983009808
    %v5255 = vunpack.c.0.s8 %v5254
    %v5256 = vlaneseq
    %v5257 = vshrl.u32 %v5256, 7
    %v5258 = vsub.s32 %v5255, %v5257
    %v5259 = vrot.slane %v5251, %v5258
    %v5261 = vunpack.c.l.s4 1983009808
    %v5262 = vunpack.c.0.s8 %v5261
    %v5263 = vlaneseq
    %v5264 = vshrl.u32 %v5263, 7
    %v5265 = vsub.s32 %v5262, %v5264
    %v5266 = vrot.slane %v5252, %v5265
    %v5267 = vcombine.low %v5088, %v5096
    %v5268 = vcombine.high %v5088, %v5096
    %v5270 = vunpack.c.l.s4 1983009808
    %v5271 = vunpack.c.0.s8 %v5270
    %v5272 = vlaneseq
    %v5273 = vshrl.u32 %v5272, 7
    %v5274 = vsub.s32 %v5271, %v5273
    %v5275 = vrot.slane %v5267, %v5274
    %v5277 = vunpack.c.l.s4 1983009808
    %v5278 = vunpack.c.0.s8 %v5277
    %v5279 = vlaneseq
    %v5280 = vshrl.u32 %v5279, 7
    %v5281 = vsub.s32 %v5278, %v5280
    %v5282 = vrot.slane %v5268, %v5281
    %v5283 = vcombine.low %v5100, %v5108
    %v5284 = vcombine.high %v5100, %v5108
    %v5286 = vunpack.c.l.s4 1983009808
    %v5287 = vunpack.c.0.s8 %v5286
    %v5288 = vlaneseq
    %v5289 = vshrl.u32 %v5288, 7
    %v5290 = vsub.s32 %v5287, %v5289
    %v5291 = vrot.slane %v5283, %v5290
    %v5293 = vunpack.c.l.s4 1983009808
    %v5294 = vunpack.c.0.s8 %v5293
    %v5295 = vlaneseq
    %v5296 = vshrl.u32 %v5295, 7
    %v5297 = vsub.s32 %v5294, %v5296
    %v5298 = vrot.slane %v5284, %v5297
    %v5299 = vcombine.low %v5104, %v5112
    %v5300 = vcombine.high %v5104, %v5112
    %v5302 = vunpack.c.l.s4 1983009808
    %v5303 = vunpack.c.0.s8 %v5302
    %v5304 = vlaneseq
    %v5305 = vshrl.u32 %v5304, 7
    %v5306 = vsub.s32 %v5303, %v5305
    %v5307 = vrot.slane %v5299, %v5306
    %v5309 = vunpack.c.l.s4 1983009808
    %v5310 = vunpack.c.0.s8 %v5309
    %v5311 = vlaneseq
    %v5312 = vshrl.u32 %v5311, 7
    %v5313 = vsub.s32 %v5310, %v5312
    %v5314 = vrot.slane %v5300, %v5313
    %v5315 = vcombine.low %v5259, %v5275
    %v5316 = vcombine.high %v5259, %v5275
    %v5318 = vunpack.c.l.s4 1934713408
    %v5319 = vunpack.c.0.s8 %v5318
    %v5320 = vlaneseq
    %v5321 = vshrl.u32 %v5320, 7
    %v5322 = vsub.s32 %v5319, %v5321
    %v5323 = vrot.slane %v5315, %v5322
    %v5325 = vunpack.c.l.s4 1934713408
    %v5326 = vunpack.c.0.s8 %v5325
    %v5327 = vlaneseq
    %v5328 = vshrl.u32 %v5327, 7
    %v5329 = vsub.s32 %v5326, %v5328
    %v5330 = vrot.slane %v5316, %v5329
    %v5331 = vcombine.low %v5266, %v5282
    %v5332 = vcombine.high %v5266, %v5282
    %v5334 = vunpack.c.l.s4 1934713408
    %v5335 = vunpack.c.0.s8 %v5334
    %v5336 = vlaneseq
    %v5337 = vshrl.u32 %v5336, 7
    %v5338 = vsub.s32 %v5335, %v5337
    %v5339 = vrot.slane %v5331, %v5338
    %v5341 = vunpack.c.l.s4 1934713408
    %v5342 = vunpack.c.0.s8 %v5341
    %v5343 = vlaneseq
    %v5344 = vshrl.u32 %v5343, 7
    %v5345 = vsub.s32 %v5342, %v5344
    %v5346 = vrot.slane %v5332, %v5345
    %v5347 = vcombine.low %v5291, %v5307
    %v5348 = vcombine.high %v5291, %v5307
    %v5350 = vunpack.c.l.s4 1934713408
    %v5351 = vunpack.c.0.s8 %v5350
    %v5352 = vlaneseq
    %v5353 = vshrl.u32 %v5352, 7
    %v5354 = vsub.s32 %v5351, %v5353
    %v5355 = vrot.slane %v5347, %v5354
    %v5357 = vunpack.c.l.s4 1934713408
    %v5358 = vunpack.c.0.s8 %v5357
    %v5359 = vlaneseq
    %v5360 = vshrl.u32 %v5359, 7
    %v5361 = vsub.s32 %v5358, %v5360
    %v5362 = vrot.slane %v5348, %v5361
    %v5363 = vcombine.low %v5298, %v5314
    %v5364 = vcombine.high %v5298, %v5314
    %v5366 = vunpack.c.l.s4 1934713408
    %v5367 = vunpack.c.0.s8 %v5366
    %v5368 = vlaneseq
    %v5369 = vshrl.u32 %v5368, 7
    %v5370 = vsub.s32 %v5367, %v5369
    %v5371 = vrot.slane %v5363, %v5370
    %v5373 = vunpack.c.l.s4 1934713408
    %v5374 = vunpack.c.0.s8 %v5373
    %v5375 = vlaneseq
    %v5376 = vshrl.u32 %v5375, 7
    %v5377 = vsub.s32 %v5374, %v5376
    %v5378 = vrot.slane %v5364, %v5377
    %v5379 = vcombine.low %v5323, %v5355
    %v5380 = vcombine.high %v5323, %v5355
    %v5381 = vcombine.low %v5330, %v5362
    %v5382 = vcombine.high %v5330, %v5362
    %v5383 = vcombine.low %v5339, %v5371
    %v5384 = vcombine.high %v5339, %v5371
    %v5385 = vcombine.low %v5346, %v5378
    %v5386 = vcombine.high %v5346, %v5378
    %v5387 = vcombine.low %v5085, %v5093
    %v5388 = vcombine.high %v5085, %v5093
    %v5390 = vunpack.c.l.s4 1983009808
    %v5391 = vunpack.c.0.s8 %v5390
    %v5392 = vlaneseq
    %v5393 = vshrl.u32 %v5392, 7
    %v5394 = vsub.s32 %v5391, %v5393
    %v5395 = vrot.slane %v5387, %v5394
    %v5397 = vunpack.c.l.s4 1983009808
    %v5398 = vunpack.c.0.s8 %v5397
    %v5399 = vlaneseq
    %v5400 = vshrl.u32 %v5399, 7
    %v5401 = vsub.s32 %v5398, %v5400
    %v5402 = vrot.slane %v5388, %v5401
    %v5403 = vcombine.low %v5089, %v5097
    %v5404 = vcombine.high %v5089, %v5097
    %v5406 = vunpack.c.l.s4 1983009808
    %v5407 = vunpack.c.0.s8 %v5406
    %v5408 = vlaneseq
    %v5409 = vshrl.u32 %v5408, 7
    %v5410 = vsub.s32 %v5407, %v5409
    %v5411 = vrot.slane %v5403, %v5410
    %v5413 = vunpack.c.l.s4 1983009808
    %v5414 = vunpack.c.0.s8 %v5413
    %v5415 = vlaneseq
    %v5416 = vshrl.u32 %v5415, 7
    %v5417 = vsub.s32 %v5414, %v5416
    %v5418 = vrot.slane %v5404, %v5417
    %v5419 = vcombine.low %v5101, %v5109
    %v5420 = vcombine.high %v5101, %v5109
    %v5422 = vunpack.c.l.s4 1983009808
    %v5423 = vunpack.c.0.s8 %v5422
    %v5424 = vlaneseq
    %v5425 = vshrl.u32 %v5424, 7
    %v5426 = vsub.s32 %v5423, %v5425
    %v5427 = vrot.slane %v5419, %v5426
    %v5429 = vunpack.c.l.s4 1983009808
    %v5430 = vunpack.c.0.s8 %v5429
    %v5431 = vlaneseq
    %v5432 = vshrl.u32 %v5431, 7
    %v5433 = vsub.s32 %v5430, %v5432
    %v5434 = vrot.slane %v5420, %v5433
    %v5435 = vcombine.low %v5105, %v5113
    %v5436 = vcombine.high %v5105, %v5113
    %v5438 = vunpack.c.l.s4 1983009808
    %v5439 = vunpack.c.0.s8 %v5438
    %v5440 = vlaneseq
    %v5441 = vshrl.u32 %v5440, 7
    %v5442 = vsub.s32 %v5439, %v5441
    %v5443 = vrot.slane %v5435, %v5442
    %v5445 = vunpack.c.l.s4 1983009808
    %v5446 = vunpack.c.0.s8 %v5445
    %v5447 = vlaneseq
    %v5448 = vshrl.u32 %v5447, 7
    %v5449 = vsub.s32 %v5446, %v5448
    %v5450 = vrot.slane %v5436, %v5449
    %v5451 = vcombine.low %v5395, %v5411
    %v5452 = vcombine.high %v5395, %v5411
    %v5454 = vunpack.c.l.s4 1934713408
    %v5455 = vunpack.c.0.s8 %v5454
    %v5456 = vlaneseq
    %v5457 = vshrl.u32 %v5456, 7
    %v5458 = vsub.s32 %v5455, %v5457
    %v5459 = vrot.slane %v5451, %v5458
    %v5461 = vunpack.c.l.s4 1934713408
    %v5462 = vunpack.c.0.s8 %v5461
    %v5463 = vlaneseq
    %v5464 = vshrl.u32 %v5463, 7
    %v5465 = vsub.s32 %v5462, %v5464
    %v5466 = vrot.slane %v5452, %v5465
    %v5467 = vcombine.low %v5402, %v5418
    %v5468 = vcombine.high %v5402, %v5418
    %v5470 = vunpack.c.l.s4 1934713408
    %v5471 = vunpack.c.0.s8 %v5470
    %v5472 = vlaneseq
    %v5473 = vshrl.u32 %v5472, 7
    %v5474 = vsub.s32 %v5471, %v5473
    %v5475 = vrot.slane %v5467, %v5474
    %v5477 = vunpack.c.l.s4 1934713408
    %v5478 = vunpack.c.0.s8 %v5477
    %v5479 = vlaneseq
    %v5480 = vshrl.u32 %v5479, 7
    %v5481 = vsub.s32 %v5478, %v5480
    %v5482 = vrot.slane %v5468, %v5481
    %v5483 = vcombine.low %v5427, %v5443
    %v5484 = vcombine.high %v5427, %v5443
    %v5486 = vunpack.c.l.s4 1934713408
    %v5487 = vunpack.c.0.s8 %v5486
    %v5488 = vlaneseq
    %v5489 = vshrl.u32 %v5488, 7
    %v5490 = vsub.s32 %v5487, %v5489
    %v5491 = vrot.slane %v5483, %v5490
    %v5493 = vunpack.c.l.s4 1934713408
    %v5494 = vunpack.c.0.s8 %v5493
    %v5495 = vlaneseq
    %v5496 = vshrl.u32 %v5495, 7
    %v5497 = vsub.s32 %v5494, %v5496
    %v5498 = vrot.slane %v5484, %v5497
    %v5499 = vcombine.low %v5434, %v5450
    %v5500 = vcombine.high %v5434, %v5450
    %v5502 = vunpack.c.l.s4 1934713408
    %v5503 = vunpack.c.0.s8 %v5502
    %v5504 = vlaneseq
    %v5505 = vshrl.u32 %v5504, 7
    %v5506 = vsub.s32 %v5503, %v5505
    %v5507 = vrot.slane %v5499, %v5506
    %v5509 = vunpack.c.l.s4 1934713408
    %v5510 = vunpack.c.0.s8 %v5509
    %v5511 = vlaneseq
    %v5512 = vshrl.u32 %v5511, 7
    %v5513 = vsub.s32 %v5510, %v5512
    %v5514 = vrot.slane %v5500, %v5513
    %v5515 = vcombine.low %v5459, %v5491
    %v5516 = vcombine.high %v5459, %v5491
    %v5517 = vcombine.low %v5466, %v5498
    %v5518 = vcombine.high %v5466, %v5498
    %v5519 = vcombine.low %v5475, %v5507
    %v5520 = vcombine.high %v5475, %v5507
    %v5521 = vcombine.low %v5482, %v5514
    %v5522 = vcombine.high %v5482, %v5514
    %v5523 = vcombine.low %v5086, %v5094
    %v5524 = vcombine.high %v5086, %v5094
    %v5526 = vunpack.c.l.s4 1983009808
    %v5527 = vunpack.c.0.s8 %v5526
    %v5528 = vlaneseq
    %v5529 = vshrl.u32 %v5528, 7
    %v5530 = vsub.s32 %v5527, %v5529
    %v5531 = vrot.slane %v5523, %v5530
    %v5533 = vunpack.c.l.s4 1983009808
    %v5534 = vunpack.c.0.s8 %v5533
    %v5535 = vlaneseq
    %v5536 = vshrl.u32 %v5535, 7
    %v5537 = vsub.s32 %v5534, %v5536
    %v5538 = vrot.slane %v5524, %v5537
    %v5539 = vcombine.low %v5090, %v5098
    %v5540 = vcombine.high %v5090, %v5098
    %v5542 = vunpack.c.l.s4 1983009808
    %v5543 = vunpack.c.0.s8 %v5542
    %v5544 = vlaneseq
    %v5545 = vshrl.u32 %v5544, 7
    %v5546 = vsub.s32 %v5543, %v5545
    %v5547 = vrot.slane %v5539, %v5546
    %v5549 = vunpack.c.l.s4 1983009808
    %v5550 = vunpack.c.0.s8 %v5549
    %v5551 = vlaneseq
    %v5552 = vshrl.u32 %v5551, 7
    %v5553 = vsub.s32 %v5550, %v5552
    %v5554 = vrot.slane %v5540, %v5553
    %v5555 = vcombine.low %v5102, %v5110
    %v5556 = vcombine.high %v5102, %v5110
    %v5558 = vunpack.c.l.s4 1983009808
    %v5559 = vunpack.c.0.s8 %v5558
    %v5560 = vlaneseq
    %v5561 = vshrl.u32 %v5560, 7
    %v5562 = vsub.s32 %v5559, %v5561
    %v5563 = vrot.slane %v5555, %v5562
    %v5565 = vunpack.c.l.s4 1983009808
    %v5566 = vunpack.c.0.s8 %v5565
    %v5567 = vlaneseq
    %v5568 = vshrl.u32 %v5567, 7
    %v5569 = vsub.s32 %v5566, %v5568
    %v5570 = vrot.slane %v5556, %v5569
    %v5571 = vcombine.low %v5106, %v5114
    %v5572 = vcombine.high %v5106, %v5114
    %v5574 = vunpack.c.l.s4 1983009808
    %v5575 = vunpack.c.0.s8 %v5574
    %v5576 = vlaneseq
    %v5577 = vshrl.u32 %v5576, 7
    %v5578 = vsub.s32 %v5575, %v5577
    %v5579 = vrot.slane %v5571, %v5578
    %v5581 = vunpack.c.l.s4 1983009808
    %v5582 = vunpack.c.0.s8 %v5581
    %v5583 = vlaneseq
    %v5584 = vshrl.u32 %v5583, 7
    %v5585 = vsub.s32 %v5582, %v5584
    %v5586 = vrot.slane %v5572, %v5585
    %v5587 = vcombine.low %v5531, %v5547
    %v5588 = vcombine.high %v5531, %v5547
    %v5590 = vunpack.c.l.s4 1934713408
    %v5591 = vunpack.c.0.s8 %v5590
    %v5592 = vlaneseq
    %v5593 = vshrl.u32 %v5592, 7
    %v5594 = vsub.s32 %v5591, %v5593
    %v5595 = vrot.slane %v5587, %v5594
    %v5597 = vunpack.c.l.s4 1934713408
    %v5598 = vunpack.c.0.s8 %v5597
    %v5599 = vlaneseq
    %v5600 = vshrl.u32 %v5599, 7
    %v5601 = vsub.s32 %v5598, %v5600
    %v5602 = vrot.slane %v5588, %v5601
    %v5603 = vcombine.low %v5538, %v5554
    %v5604 = vcombine.high %v5538, %v5554
    %v5606 = vunpack.c.l.s4 1934713408
    %v5607 = vunpack.c.0.s8 %v5606
    %v5608 = vlaneseq
    %v5609 = vshrl.u32 %v5608, 7
    %v5610 = vsub.s32 %v5607, %v5609
    %v5611 = vrot.slane %v5603, %v5610
    %v5613 = vunpack.c.l.s4 1934713408
    %v5614 = vunpack.c.0.s8 %v5613
    %v5615 = vlaneseq
    %v5616 = vshrl.u32 %v5615, 7
    %v5617 = vsub.s32 %v5614, %v5616
    %v5618 = vrot.slane %v5604, %v5617
    %v5619 = vcombine.low %v5563, %v5579
    %v5620 = vcombine.high %v5563, %v5579
    %v5622 = vunpack.c.l.s4 1934713408
    %v5623 = vunpack.c.0.s8 %v5622
    %v5624 = vlaneseq
    %v5625 = vshrl.u32 %v5624, 7
    %v5626 = vsub.s32 %v5623, %v5625
    %v5627 = vrot.slane %v5619, %v5626
    %v5629 = vunpack.c.l.s4 1934713408
    %v5630 = vunpack.c.0.s8 %v5629
    %v5631 = vlaneseq
    %v5632 = vshrl.u32 %v5631, 7
    %v5633 = vsub.s32 %v5630, %v5632
    %v5634 = vrot.slane %v5620, %v5633
    %v5635 = vcombine.low %v5570, %v5586
    %v5636 = vcombine.high %v5570, %v5586
    %v5638 = vunpack.c.l.s4 1934713408
    %v5639 = vunpack.c.0.s8 %v5638
    %v5640 = vlaneseq
    %v5641 = vshrl.u32 %v5640, 7
    %v5642 = vsub.s32 %v5639, %v5641
    %v5643 = vrot.slane %v5635, %v5642
    %v5645 = vunpack.c.l.s4 1934713408
    %v5646 = vunpack.c.0.s8 %v5645
    %v5647 = vlaneseq
    %v5648 = vshrl.u32 %v5647, 7
    %v5649 = vsub.s32 %v5646, %v5648
    %v5650 = vrot.slane %v5636, %v5649
    %v5651 = vcombine.low %v5595, %v5627
    %v5652 = vcombine.high %v5595, %v5627
    %v5653 = vcombine.low %v5602, %v5634
    %v5654 = vcombine.high %v5602, %v5634
    %v5655 = vcombine.low %v5611, %v5643
    %v5656 = vcombine.high %v5611, %v5643
    %v5657 = vcombine.low %v5618, %v5650
    %v5658 = vcombine.high %v5618, %v5650
    %5660 = vrot.lane.b32.xlu0 %v5244, 4
    %v5661 = vpop.permute.xlu0 %5660
    %5664 = vrot.lane.b32.xlu0 %v5245, 8
    %v5665 = vpop.permute.xlu0 %5664
    %5668 = vrot.lane.b32.xlu0 %v5246, 12
    %v5669 = vpop.permute.xlu0 %5668
    %5672 = vrot.lane.b32.xlu0 %v5247, 16
    %v5673 = vpop.permute.xlu0 %5672
    %5676 = vrot.lane.b32.xlu0 %v5248, 20
    %v5677 = vpop.permute.xlu0 %5676
    %5680 = vrot.lane.b32.xlu0 %v5249, 24
    %v5681 = vpop.permute.xlu0 %5680
    %5684 = vrot.lane.b32.xlu0 %v5250, 28
    %v5685 = vpop.permute.xlu0 %5684
    %5688 = vrot.lane.b32.xlu0 %v5379, 32
    %v5689 = vpop.permute.xlu0 %5688
    %5692 = vrot.lane.b32.xlu0 %v5380, 36
    %v5693 = vpop.permute.xlu0 %5692
    %5696 = vrot.lane.b32.xlu0 %v5381, 40
    %v5697 = vpop.permute.xlu0 %5696
    %5700 = vrot.lane.b32.xlu0 %v5382, 44
    %v5701 = vpop.permute.xlu0 %5700
    %5704 = vrot.lane.b32.xlu0 %v5383, 48
    %v5705 = vpop.permute.xlu0 %5704
    %5708 = vrot.lane.b32.xlu0 %v5384, 52
    %v5709 = vpop.permute.xlu0 %5708
    %5712 = vrot.lane.b32.xlu0 %v5385, 56
    %v5713 = vpop.permute.xlu0 %5712
    %5716 = vrot.lane.b32.xlu0 %v5386, 60
    %v5717 = vpop.permute.xlu0 %5716
    %5720 = vrot.lane.b32.xlu0 %v5515, 64
    %v5721 = vpop.permute.xlu0 %5720
    %5724 = vrot.lane.b32.xlu0 %v5516, 68
    %v5725 = vpop.permute.xlu0 %5724
    %5728 = vrot.lane.b32.xlu0 %v5517, 72
    %v5729 = vpop.permute.xlu0 %5728
    %5732 = vrot.lane.b32.xlu0 %v5518, 76
    %v5733 = vpop.permute.xlu0 %5732
    %5736 = vrot.lane.b32.xlu0 %v5519, 80
    %v5737 = vpop.permute.xlu0 %5736
    %5740 = vrot.lane.b32.xlu0 %v5520, 84
    %v5741 = vpop.permute.xlu0 %5740
    %5744 = vrot.lane.b32.xlu0 %v5521, 88
    %v5745 = vpop.permute.xlu0 %5744
    %5748 = vrot.lane.b32.xlu0 %v5522, 92
    %v5749 = vpop.permute.xlu0 %5748
    %5752 = vrot.lane.b32.xlu0 %v5651, 96
    %v5753 = vpop.permute.xlu0 %5752
    %5756 = vrot.lane.b32.xlu0 %v5652, 100
    %v5757 = vpop.permute.xlu0 %5756
    %5760 = vrot.lane.b32.xlu0 %v5653, 104
    %v5761 = vpop.permute.xlu0 %5760
    %5764 = vrot.lane.b32.xlu0 %v5654, 108
    %v5765 = vpop.permute.xlu0 %5764
    %5768 = vrot.lane.b32.xlu0 %v5655, 112
    %v5769 = vpop.permute.xlu0 %5768
    %5772 = vrot.lane.b32.xlu0 %v5656, 116
    %v5773 = vpop.permute.xlu0 %5772
    %5776 = vrot.lane.b32.xlu0 %v5657, 120
    %v5777 = vpop.permute.xlu0 %5776
    %5780 = vrot.lane.b32.xlu0 %v5658, 124
    %v5781 = vpop.permute.xlu0 %5780
    %v5783 = vsel %vm1432, %v5243, %v5661
    %v5784 = vsel %vm1434, %v5783, %v5665
    %v5785 = vsel %vm1436, %v5784, %v5669
    %v5786 = vsel %vm1438, %v5785, %v5673
    %v5787 = vsel %vm1440, %v5786, %v5677
    %v5788 = vsel %vm1442, %v5787, %v5681
    %v5789 = vsel %vm1444, %v5788, %v5685
    %v5790 = vsel %vm1446, %v5789, %v5689
    %v5791 = vsel %vm1448, %v5790, %v5693
    %v5792 = vsel %vm1450, %v5791, %v5697
    %v5793 = vsel %vm1452, %v5792, %v5701
    %v5794 = vsel %vm1454, %v5793, %v5705
    %v5795 = vsel %vm1456, %v5794, %v5709
    %v5796 = vsel %vm1458, %v5795, %v5713
    %v5797 = vsel %vm1460, %v5796, %v5717
    %v5798 = vsel %vm1462, %v5797, %v5721
    %v5799 = vsel %vm1464, %v5798, %v5725
    %v5800 = vsel %vm1466, %v5799, %v5729
    %v5801 = vsel %vm1468, %v5800, %v5733
    %v5802 = vsel %vm1470, %v5801, %v5737
    %v5803 = vsel %vm1472, %v5802, %v5741
    %v5804 = vsel %vm1474, %v5803, %v5745
    %v5805 = vsel %vm1476, %v5804, %v5749
    %v5806 = vsel %vm1478, %v5805, %v5753
    %v5807 = vsel %vm1480, %v5806, %v5757
    %v5808 = vsel %vm1482, %v5807, %v5761
    %v5809 = vsel %vm1484, %v5808, %v5765
    %v5810 = vsel %vm1486, %v5809, %v5769
    %v5811 = vsel %vm1488, %v5810, %v5773
    %v5812 = vsel %vm1490, %v5811, %v5777
    %v5813 = vsel %vm1492, %v5812, %v5781
    %5814 = vst [vmem:[#allocation8 + $0x18] sm:$0xff] %v5813
    // Predicated region
    $region30: #{tpu_custom_call.1} parent=1 // pred_check
      _
    $region31: #{tpu_custom_call.1} parent=1 // pred_check_branch
      %5816 = sbr.rel (0) target = $region33
    $region32: #{tpu_custom_call.1} parent=1 // pred_region
      %s5818 = ssub.s32 512, 512
      %5819 = vsyncadd [#allocation4], %s5818
      %s5821 = sshll.u32 [#allocation8], 4
      %s5822 = int_to_ptr.vmem [resolvable:$true] %s5821
      %5824 = dma.vmem_to_hbm [thread:$0]  %s5822, 512, %s4, [#allocation4]
    $region33: #{tpu_custom_call.1} parent=1 // pred_fallthru
      _
    // Predicated region
    $region34: #{tpu_custom_call.1} parent=1 // pred_check
      _
    $region35: #{tpu_custom_call.1} parent=1 // pred_check_branch
      %5826 = sbr.rel (0) target = $region37
    $region36: #{tpu_custom_call.1} parent=1 // pred_region
      %5827 = dma.done [#allocation4], 512
    $region37: #{tpu_custom_call.1} parent=1 // pred_fallthru
      _
    %5828 = vsyncpa [#allocation3], 1
    %5829 = vsyncpa [#allocation6], 1
    %5830 = vsyncpa [#allocation4], 1

</llo_original>
